<compile_context>
chip_gen: v6e
topology: v6e:2x2x1
jax: 0.10.0
libtpu: 0.0.40
codegen_flags: <defaults>
</compile_context>

<pallas_src>
import numpy as np
import jax
import jax.numpy as jnp
from jax.experimental import pallas as pl
from jax.experimental.pallas import tpu as pltpu

P = 128  # lane width; each GRU gate is padded to one 128-lane group


# ----------------------------------------------------------------------------
# Pallas kernel: the entire gap_len recurrence in one invocation.
# ----------------------------------------------------------------------------
def _future_decoder_kernel(h0_ref, wih_ref, whh_ref, whr_ref, w2_ref, bias_ref,
                           out_ref):
    B = h0_ref.shape[0]                 # padded batch (multiple of 8)
    gap_len = w2_ref.shape[0] // P      # static
    L_pad = out_ref.shape[1]            # padded output lanes (multiple of 128)
    SIX = 6 * P
    TWO = 2 * P

    # ---- hoisted bias broadcasts (done once, reused by every unrolled step) --
    bi = jnp.broadcast_to(bias_ref[:, 0:SIX], (B, SIX))                  # GRU input biases
    bh = jnp.broadcast_to(bias_ref[:, SIX:2 * SIX], (B, SIX))            # GRU hidden biases
    bhr = jnp.broadcast_to(bias_ref[:, 2 * SIX:2 * SIX + TWO], (B, TWO))  # head1 | reduce
    b2 = jnp.broadcast_to(
        bias_ref[:, 2 * SIX + TWO:2 * SIX + TWO + L_pad], (B, L_pad))     # head2 (all steps)

    wih = wih_ref[...]   # (P,   6P)  [gi_f(r,z,n) | gi_b(r,z,n)], padded cols zero
    whh = whh_ref[...]   # (2P,  6P)  block-diag over directions
    whr = whr_ref[...]   # (2P,  2P)  cols [0:P]=head layer-1 pre-ReLU, [P:2P]=reduce

    h0 = h0_ref[...]     # (B, P) padded initial state; lanes [H:P] are zero
    x, hf, hb = h0, h0, h0

    def gru_direction(d, gi, gh, h_prev):
        # PyTorch gate order (r, z, n); every slice is 128-lane aligned.
        o = 3 * d * P
        r = jax.nn.sigmoid(gi[:, o:o + P] + gh[:, o:o + P])
        z = jax.nn.sigmoid(gi[:, o + P:o + 2 * P] + gh[:, o + P:o + 2 * P])
        n = jnp.tanh(gi[:, o + 2 * P:o + 3 * P] + r * gh[:, o + 2 * P:o + 3 * P])
        return (1.0 - z) * n + z * h_prev   # padded lanes stay exactly 0

    hids = []
    # Fully unrolled recurrence (equivalent to fori_loop(..., unroll=True);
    # gap_len is small and static so the indices below are compile-time).
    for _ in range(gap_len):
        hcat = jnp.concatenate([hf, hb], axis=-1)                          # (B, 2P)
        gi = jnp.dot(x, wih, preferred_element_type=jnp.float32) + bi      # (B, 6P)
        gh = jnp.dot(hcat, whh, preferred_element_type=jnp.float32) + bh   # (B, 6P)

        hf = gru_direction(0, gi, gh, hf)
        hb = gru_direction(1, gi, gh, hb)

        # head layer-1 (pre-ReLU) and reduce in ONE matmul.
        hr = jnp.dot(jnp.concatenate([hf, hb], axis=-1), whr,
                     preferred_element_type=jnp.float32) + bhr             # (B, 2P)
        hids.append(jnp.maximum(hr[:, 0:P], 0.0))                          # ReLU(hid_t)
        x = hr[:, P:2 * P]                                                 # next GRU input

    # head layer-2 for ALL steps at once: block-diagonal weight places step t's
    # two outputs directly at lanes [2t, 2t+2) of the lane-dense output block.
    hid_all = jnp.concatenate(hids, axis=-1)                               # (B, gap_len*P)
    preds = jnp.dot(hid_all, w2_ref[...],
                    preferred_element_type=jnp.float32) + b2               # (B, L_pad)
    out_ref[...] = preds.astype(out_ref.dtype)                             # one full store


# ----------------------------------------------------------------------------
# Host-side packing of the 16 logical parameters into 5 padded, fused slabs.
# Padded rows/columns/lanes are zero so padded state lanes never pick up junk.
# ----------------------------------------------------------------------------
def pack_params(params, H, gap_len, L_pad):
    as_np = lambda k: np.asarray(params[k], np.float32)
    wih_d = [as_np("wih_f"), as_np("wih_b")]
    whh_d = [as_np("whh_f"), as_np("whh_b")]
    bih_d = [as_np("bih_f"), as_np("bih_b")]
    bhh_d = [as_np("bhh_f"), as_np("bhh_b")]
    w1f, w1b, b1 = as_np("w1f"), as_np("w1b"), as_np("b1")
    w2, b2 = as_np("w2"), as_np("b2")
    wrf, wrb, br = as_np("wrf"), as_np("wrb"), as_np("br")

    wih = np.zeros((P, 6 * P), np.float32)
    whh = np.zeros((2 * P, 6 * P), np.float32)
    bih_row = np.zeros((6 * P,), np.float32)
    bhh_row = np.zeros((6 * P,), np.float32)
    for d in range(2):                          # 0 = forward, 1 = backward
        for g in range(3):                      # PyTorch gate order (r, z, n)
            col = (3 * d + g) * P
            wih[:H, col:col + H] = wih_d[d][:, g * H:(g + 1) * H]
            whh[d * P:d * P + H, col:col + H] = whh_d[d][:, g * H:(g + 1) * H]
            bih_row[col:col + H] = bih_d[d][0, g * H:(g + 1) * H]
            bhh_row[col:col + H] = bhh_d[d][0, g * H:(g + 1) * H]

    whr = np.zeros((2 * P, 2 * P), np.float32)
    whr[:H, :H] = w1f
    whr[P:P + H, :H] = w1b
    whr[:H, P:P + H] = wrf
    whr[P:P + H, P:P + H] = wrb
    bhr_row = np.zeros((2 * P,), np.float32)
    bhr_row[:H] = b1[0]
    bhr_row[P:P + H] = br[0]

    w2_all = np.zeros((gap_len * P, L_pad), np.float32)
    b2_row = np.zeros((L_pad,), np.float32)
    for t in range(gap_len):
        w2_all[t * P:t * P + H, 2 * t:2 * t + 2] = w2
        b2_row[2 * t:2 * t + 2] = b2[0]

    bias_slab = np.concatenate([bih_row, bhh_row, bhr_row, b2_row])[None, :]

    return (jnp.asarray(wih), jnp.asarray(whh), jnp.asarray(whr),
            jnp.asarray(w2_all), jnp.asarray(bias_slab))


# ----------------------------------------------------------------------------
# Wrapper (gap-node gather, padding, pallas_call, unpack)
# ----------------------------------------------------------------------------
def future_decoder_forward(h, batch, params, gap_len, gap_start_idx=4):
    # Host-side gap-node gather (mirrors the PyTorch bincount loop).
    batch = np.asarray(batch)
    if batch.ndim == 0:
        gap_nodes = [gap_start_idx]
    else:
        counts = np.bincount(batch)
        gap_nodes, offset = [], 0
        for c in counts:
            gap_nodes.append(offset + gap_start_idx)
            offset += int(c)
    h_before_gap = h[jnp.asarray(gap_nodes)]          # (B, H)
    B, H = h_before_gap.shape
    assert H <= P, "hidden_dim must be <= 128 for this gate-per-vreg layout"

    B_pad = max(8, ((B + 7) // 8) * 8)                # sublane multiple
    L_pad = ((gap_len * 2 + P - 1) // P) * P          # lane-dense output width

    # Padded initial state: (B_pad, 128); pad rows and pad lanes are zero.
    h0 = jnp.zeros((B_pad, P), jnp.float32).at[:B, :H].set(
        h_before_gap.astype(jnp.float32))

    wih, whh, whr, w2_all, bias_slab = pack_params(params, H, gap_len, L_pad)
    # TODO(synk): for large H on v6e/v7x, cast the weight slabs to bf16 (keep
    # f32 accumulation / elementwise) to halve weight DMA + VMEM footprint.

    def full_spec(arr):
        return pl.BlockSpec(arr.shape, lambda i: (0,) * arr.ndim)

    inputs = (h0, wih, whh, whr, w2_all, bias_slab)

    out = pl.pallas_call(
        _future_decoder_kernel,
        out_shape=jax.ShapeDtypeStruct((B_pad, L_pad), jnp.float32),
        grid_spec=pltpu.PrefetchScalarGridSpec(
            num_scalar_prefetch=0,
            grid=(1,),                                 # single grid point
            in_specs=[full_spec(a) for a in inputs],
            out_specs=pl.BlockSpec((B_pad, L_pad), lambda i: (0, 0)),
        ),
        compiler_params=pltpu.CompilerParams(
            dimension_semantics=("arbitrary",)),
    )(*inputs)

    return out[:B, :gap_len * 2].reshape(B, gap_len, 2)


# ----------------------------------------------------------------------------
# Deterministic parameter init (mirrors nn.GRU / nn.Linear shapes)
# ----------------------------------------------------------------------------
def init_params(key, hidden_dim):
    H = hidden_dim
    ks = jax.random.split(key, 16)
    s = 1.0 / np.sqrt(H)

    def u(k, shape):
        return jax.random.uniform(k, shape, jnp.float32, -s, s)

    # PyTorch GRU weights are (3H, H); store transposed (H, 3H) for x @ W.
    wih_f = u(ks[0], (3 * H, H)).T
    whh_f = u(ks[1], (3 * H, H)).T
    bih_f = u(ks[2], (1, 3 * H))
    bhh_f = u(ks[3], (1, 3 * H))
    wih_b = u(ks[4], (3 * H, H)).T
    whh_b = u(ks[5], (3 * H, H)).T
    bih_b = u(ks[6], (1, 3 * H))
    bhh_b = u(ks[7], (1, 3 * H))
    # head[0]: Linear(2H -> H); split columns into fwd/bwd halves, transpose.
    w1 = u(ks[8], (H, 2 * H))
    b1 = u(ks[9], (1, H))
    w2 = u(ks[10], (2, H)).T
    b2 = u(ks[11], (1, 2))
    # reduce: Linear(2H -> H)
    wr = u(ks[12], (H, 2 * H))
    br = u(ks[13], (1, H))

    return dict(
        wih_f=wih_f, whh_f=whh_f, bih_f=bih_f, bhh_f=bhh_f,
        wih_b=wih_b, whh_b=whh_b, bih_b=bih_b, bhh_b=bhh_b,
        w1f=w1[:, :H].T, w1b=w1[:, H:].T, b1=b1,
        w2=w2, b2=b2,
        wrf=wr[:, :H].T, wrb=wr[:, H:].T, br=br,
    )


# ----------------------------------------------------------------------------
# Pure-JAX reference of the PyTorch forward (for correctness check)
# ----------------------------------------------------------------------------
def reference_forward(h, batch, params, gap_len, gap_start_idx=4):
    batch = np.asarray(batch)
    counts = np.bincount(batch)
    gap_nodes, offset = [], 0
    for c in counts:
        gap_nodes.append(offset + gap_start_idx)
        offset += int(c)
    h0 = h[np.asarray(gap_nodes)]
    H = h0.shape[1]

    def cell(x, hp, wih, whh, bih, bhh):
        gi = x @ wih + bih
        gh = hp @ whh + bhh
        r = jax.nn.sigmoid(gi[:, :H] + gh[:, :H])
        z = jax.nn.sigmoid(gi[:, H:2 * H] + gh[:, H:2 * H])
        n = jnp.tanh(gi[:, 2 * H:] + r * gh[:, 2 * H:])
        return (1.0 - z) * n + z * hp

    x, hf, hb = h0, h0, h0
    preds = []
    for _ in range(gap_len):
        hf = cell(x, hf, params["wih_f"], params["whh_f"], params["bih_f"], params["bhh_f"])
        hb = cell(x, hb, params["wih_b"], params["whh_b"], params["bih_b"], params["bhh_b"])
        hid = jnp.maximum(hf @ params["w1f"] + hb @ params["w1b"] + params["b1"], 0.0)
        preds.append(hid @ params["w2"] + params["b2"])
        x = hf @ params["wrf"] + hb @ params["wrb"] + params["br"]
    return jnp.stack(preds, axis=1)


if __name__ == "__main__":
    HIDDEN = 32
    GAP_LEN = 6
    NODES_PER_GRAPH = 8
    NUM_GRAPHS = 2

    key = jax.random.PRNGKey(0)
    k_h, k_p = jax.random.split(key)

    num_nodes = NODES_PER_GRAPH * NUM_GRAPHS
    h = jax.random.normal(k_h, (num_nodes, HIDDEN), jnp.float32)
    batch = np.repeat(np.arange(NUM_GRAPHS), NODES_PER_GRAPH)  # PyG-style batch vec

    params = init_params(k_p, HIDDEN)

    out = future_decoder_forward(h, batch, params, GAP_LEN, gap_start_idx=4)
    out = jax.block_until_ready(out)

    ref = reference_forward(h, batch, params, GAP_LEN, gap_start_idx=4)
    assert out.shape == (NUM_GRAPHS, GAP_LEN, 2), out.shape
    np.testing.assert_allclose(np.asarray(out), np.asarray(ref), rtol=1e-5, atol=1e-5)

    print("KERNEL_OK")
</pallas_src>

<mosaic_0001>
module attributes {stable_mosaic.version = 11 : i64} {
  func.func @_future_decoder_kernel(%arg0: i32, %arg1: memref<8x128xf32, #tpu.memory_space<vmem>>, %arg2: memref<128x768xf32, #tpu.memory_space<vmem>>, %arg3: memref<256x768xf32, #tpu.memory_space<vmem>>, %arg4: memref<256x256xf32, #tpu.memory_space<vmem>>, %arg5: memref<768x128xf32, #tpu.memory_space<vmem>>, %arg6: memref<1x1920xf32, #tpu.memory_space<vmem>>, %arg7: memref<8x128xf32, #tpu.memory_space<vmem>>) attributes {dimension_semantics = [#tpu.dimension_semantics<arbitrary>], iteration_bounds = array<i64: 1>, scalar_prefetch = 0 : i64, scratch_operands = 0 : i64, tpu.core_type = #tpu.core_type<tc>, window_params = [{pipeline_mode = #tpu.pipeline_mode<synchronous>, transform_indices = @transform_0, window_bounds = array<i64: 8, 128>}, {pipeline_mode = #tpu.pipeline_mode<synchronous>, transform_indices = @transform_1, window_bounds = array<i64: 128, 768>}, {pipeline_mode = #tpu.pipeline_mode<synchronous>, transform_indices = @transform_2, window_bounds = array<i64: 256, 768>}, {pipeline_mode = #tpu.pipeline_mode<synchronous>, transform_indices = @transform_3, window_bounds = array<i64: 256, 256>}, {pipeline_mode = #tpu.pipeline_mode<synchronous>, transform_indices = @transform_4, window_bounds = array<i64: 768, 128>}, {pipeline_mode = #tpu.pipeline_mode<synchronous>, transform_indices = @transform_5, window_bounds = array<i64: 1, 1920>}, {pipeline_mode = #tpu.pipeline_mode<synchronous>, transform_indices = @transform_6, window_bounds = array<i64: 8, 128>}]} {
    %c0 = arith.constant 0 : index
    %c0_0 = arith.constant 0 : index
    %0 = vector.load %arg6[%c0, %c0_0] : memref<1x1920xf32, #tpu.memory_space<vmem>>, vector<1x768xf32>
    %1 = vector.shape_cast %0 : vector<1x768xf32> to vector<1x768xf32>
    %2 = vector.broadcast %1 : vector<1x768xf32> to vector<8x768xf32>
    %c0_1 = arith.constant 0 : index
    %c768 = arith.constant 768 : index
    %3 = vector.load %arg6[%c0_1, %c768] : memref<1x1920xf32, #tpu.memory_space<vmem>>, vector<1x768xf32>
    %4 = vector.shape_cast %3 : vector<1x768xf32> to vector<1x768xf32>
    %5 = vector.broadcast %4 : vector<1x768xf32> to vector<8x768xf32>
    %c0_2 = arith.constant 0 : index
    %c1536 = arith.constant 1536 : index
    %6 = vector.load %arg6[%c0_2, %c1536] : memref<1x1920xf32, #tpu.memory_space<vmem>>, vector<1x256xf32>
    %7 = vector.shape_cast %6 : vector<1x256xf32> to vector<1x256xf32>
    %8 = vector.broadcast %7 : vector<1x256xf32> to vector<8x256xf32>
    %c0_3 = arith.constant 0 : index
    %c1792 = arith.constant 1792 : index
    %9 = vector.load %arg6[%c0_3, %c1792] : memref<1x1920xf32, #tpu.memory_space<vmem>>, vector<1x128xf32>
    %10 = vector.shape_cast %9 : vector<1x128xf32> to vector<1x128xf32>
    %11 = vector.broadcast %10 : vector<1x128xf32> to vector<8x128xf32>
    %c0_4 = arith.constant 0 : index
    %c0_5 = arith.constant 0 : index
    %12 = vector.load %arg2[%c0_4, %c0_5] : memref<128x768xf32, #tpu.memory_space<vmem>>, vector<128x768xf32>
    %c0_6 = arith.constant 0 : index
    %c0_7 = arith.constant 0 : index
    %13 = vector.load %arg3[%c0_6, %c0_7] : memref<256x768xf32, #tpu.memory_space<vmem>>, vector<256x768xf32>
    %c0_8 = arith.constant 0 : index
    %c0_9 = arith.constant 0 : index
    %14 = vector.load %arg4[%c0_8, %c0_9] : memref<256x256xf32, #tpu.memory_space<vmem>>, vector<256x256xf32>
    %c0_10 = arith.constant 0 : index
    %c0_11 = arith.constant 0 : index
    %15 = vector.load %arg1[%c0_10, %c0_11] : memref<8x128xf32, #tpu.memory_space<vmem>>, vector<8x128xf32>
    %16 = tpu.concatenate %15, %15 in 1 : vector<8x128xf32>, vector<8x128xf32> -> vector<8x256xf32>
    %cst = arith.constant dense<0.000000e+00> : vector<8x768xf32>
    %17 = tpu.matmul %15, %12, %cst {dimension_numbers = #tpu.dot_dimension_numbers<[1], [0], [0], [1], [0, 0, 1, 1], [], []>} : vector<8x128xf32>, vector<128x768xf32>, vector<8x768xf32> -> vector<8x768xf32>
    %18 = arith.addf %17, %2 : vector<8x768xf32>
    %cst_12 = arith.constant dense<0.000000e+00> : vector<8x768xf32>
    %19 = tpu.matmul %16, %13, %cst_12 {dimension_numbers = #tpu.dot_dimension_numbers<[1], [0], [0], [1], [0, 0, 1, 1], [], []>} : vector<8x256xf32>, vector<256x768xf32>, vector<8x768xf32> -> vector<8x768xf32>
    %20 = arith.addf %19, %5 : vector<8x768xf32>
    %21 = vector.extract_strided_slice %18 {offsets = [0, 0], sizes = [8, 128], strides = [1, 1]} : vector<8x768xf32> to vector<8x128xf32>
    %22 = vector.extract_strided_slice %20 {offsets = [0, 0], sizes = [8, 128], strides = [1, 1]} : vector<8x768xf32> to vector<8x128xf32>
    %23 = arith.addf %21, %22 : vector<8x128xf32>
    %24 = arith.negf %23 : vector<8x128xf32>
    %25 = math.exp %24 : vector<8x128xf32>
    %cst_13 = arith.constant 1.000000e+00 : f32
    %26 = vector.broadcast %cst_13 : f32 to vector<8x128xf32>
    %27 = arith.addf %26, %25 : vector<8x128xf32>
    %28 = arith.divf %26, %27 : vector<8x128xf32>
    %29 = vector.extract_strided_slice %18 {offsets = [0, 128], sizes = [8, 128], strides = [1, 1]} : vector<8x768xf32> to vector<8x128xf32>
    %30 = vector.extract_strided_slice %20 {offsets = [0, 128], sizes = [8, 128], strides = [1, 1]} : vector<8x768xf32> to vector<8x128xf32>
    %31 = arith.addf %29, %30 : vector<8x128xf32>
    %32 = arith.negf %31 : vector<8x128xf32>
    %33 = math.exp %32 : vector<8x128xf32>
    %cst_14 = arith.constant 1.000000e+00 : f32
    %34 = vector.broadcast %cst_14 : f32 to vector<8x128xf32>
    %35 = arith.addf %34, %33 : vector<8x128xf32>
    %36 = arith.divf %34, %35 : vector<8x128xf32>
    %37 = vector.extract_strided_slice %18 {offsets = [0, 256], sizes = [8, 128], strides = [1, 1]} : vector<8x768xf32> to vector<8x128xf32>
    %38 = vector.extract_strided_slice %20 {offsets = [0, 256], sizes = [8, 128], strides = [1, 1]} : vector<8x768xf32> to vector<8x128xf32>
    %39 = arith.mulf %28, %38 : vector<8x128xf32>
    %40 = arith.addf %37, %39 : vector<8x128xf32>
    %41 = math.tanh %40 : vector<8x128xf32>
    %cst_15 = arith.constant 1.000000e+00 : f32
    %42 = vector.broadcast %cst_15 : f32 to vector<8x128xf32>
    %43 = arith.subf %42, %36 : vector<8x128xf32>
    %44 = arith.mulf %43, %41 : vector<8x128xf32>
    %45 = arith.mulf %36, %15 : vector<8x128xf32>
    %46 = arith.addf %44, %45 : vector<8x128xf32>
    %47 = vector.extract_strided_slice %18 {offsets = [0, 384], sizes = [8, 128], strides = [1, 1]} : vector<8x768xf32> to vector<8x128xf32>
    %48 = vector.extract_strided_slice %20 {offsets = [0, 384], sizes = [8, 128], strides = [1, 1]} : vector<8x768xf32> to vector<8x128xf32>
    %49 = arith.addf %47, %48 : vector<8x128xf32>
    %50 = arith.negf %49 : vector<8x128xf32>
    %51 = math.exp %50 : vector<8x128xf32>
    %cst_16 = arith.constant 1.000000e+00 : f32
    %52 = vector.broadcast %cst_16 : f32 to vector<8x128xf32>
    %53 = arith.addf %52, %51 : vector<8x128xf32>
    %54 = arith.divf %52, %53 : vector<8x128xf32>
    %55 = vector.extract_strided_slice %18 {offsets = [0, 512], sizes = [8, 128], strides = [1, 1]} : vector<8x768xf32> to vector<8x128xf32>
    %56 = vector.extract_strided_slice %20 {offsets = [0, 512], sizes = [8, 128], strides = [1, 1]} : vector<8x768xf32> to vector<8x128xf32>
    %57 = arith.addf %55, %56 : vector<8x128xf32>
    %58 = arith.negf %57 : vector<8x128xf32>
    %59 = math.exp %58 : vector<8x128xf32>
    %cst_17 = arith.constant 1.000000e+00 : f32
    %60 = vector.broadcast %cst_17 : f32 to vector<8x128xf32>
    %61 = arith.addf %60, %59 : vector<8x128xf32>
    %62 = arith.divf %60, %61 : vector<8x128xf32>
    %63 = vector.extract_strided_slice %18 {offsets = [0, 640], sizes = [8, 128], strides = [1, 1]} : vector<8x768xf32> to vector<8x128xf32>
    %64 = vector.extract_strided_slice %20 {offsets = [0, 640], sizes = [8, 128], strides = [1, 1]} : vector<8x768xf32> to vector<8x128xf32>
    %65 = arith.mulf %54, %64 : vector<8x128xf32>
    %66 = arith.addf %63, %65 : vector<8x128xf32>
    %67 = math.tanh %66 : vector<8x128xf32>
    %cst_18 = arith.constant 1.000000e+00 : f32
    %68 = vector.broadcast %cst_18 : f32 to vector<8x128xf32>
    %69 = arith.subf %68, %62 : vector<8x128xf32>
    %70 = arith.mulf %69, %67 : vector<8x128xf32>
    %71 = arith.mulf %62, %15 : vector<8x128xf32>
    %72 = arith.addf %70, %71 : vector<8x128xf32>
    %73 = tpu.concatenate %46, %72 in 1 : vector<8x128xf32>, vector<8x128xf32> -> vector<8x256xf32>
    %cst_19 = arith.constant dense<0.000000e+00> : vector<8x256xf32>
    %74 = tpu.matmul %73, %14, %cst_19 {dimension_numbers = #tpu.dot_dimension_numbers<[1], [0], [0], [1], [0, 0, 1, 1], [], []>} : vector<8x256xf32>, vector<256x256xf32>, vector<8x256xf32> -> vector<8x256xf32>
    %75 = arith.addf %74, %8 : vector<8x256xf32>
    %76 = vector.extract_strided_slice %75 {offsets = [0, 0], sizes = [8, 128], strides = [1, 1]} : vector<8x256xf32> to vector<8x128xf32>
    %cst_20 = arith.constant 0.000000e+00 : f32
    %77 = vector.broadcast %cst_20 : f32 to vector<8x128xf32>
    %78 = arith.maximumf %76, %77 : vector<8x128xf32>
    %79 = vector.extract_strided_slice %75 {offsets = [0, 128], sizes = [8, 128], strides = [1, 1]} : vector<8x256xf32> to vector<8x128xf32>
    %80 = tpu.concatenate %46, %72 in 1 : vector<8x128xf32>, vector<8x128xf32> -> vector<8x256xf32>
    %cst_21 = arith.constant dense<0.000000e+00> : vector<8x768xf32>
    %81 = tpu.matmul %79, %12, %cst_21 {dimension_numbers = #tpu.dot_dimension_numbers<[1], [0], [0], [1], [0, 0, 1, 1], [], []>} : vector<8x128xf32>, vector<128x768xf32>, vector<8x768xf32> -> vector<8x768xf32>
    %82 = arith.addf %81, %2 : vector<8x768xf32>
    %cst_22 = arith.constant dense<0.000000e+00> : vector<8x768xf32>
    %83 = tpu.matmul %80, %13, %cst_22 {dimension_numbers = #tpu.dot_dimension_numbers<[1], [0], [0], [1], [0, 0, 1, 1], [], []>} : vector<8x256xf32>, vector<256x768xf32>, vector<8x768xf32> -> vector<8x768xf32>
    %84 = arith.addf %83, %5 : vector<8x768xf32>
    %85 = vector.extract_strided_slice %82 {offsets = [0, 0], sizes = [8, 128], strides = [1, 1]} : vector<8x768xf32> to vector<8x128xf32>
    %86 = vector.extract_strided_slice %84 {offsets = [0, 0], sizes = [8, 128], strides = [1, 1]} : vector<8x768xf32> to vector<8x128xf32>
    %87 = arith.addf %85, %86 : vector<8x128xf32>
    %88 = arith.negf %87 : vector<8x128xf32>
    %89 = math.exp %88 : vector<8x128xf32>
    %cst_23 = arith.constant 1.000000e+00 : f32
    %90 = vector.broadcast %cst_23 : f32 to vector<8x128xf32>
    %91 = arith.addf %90, %89 : vector<8x128xf32>
    %92 = arith.divf %90, %91 : vector<8x128xf32>
    %93 = vector.extract_strided_slice %82 {offsets = [0, 128], sizes = [8, 128], strides = [1, 1]} : vector<8x768xf32> to vector<8x128xf32>
    %94 = vector.extract_strided_slice %84 {offsets = [0, 128], sizes = [8, 128], strides = [1, 1]} : vector<8x768xf32> to vector<8x128xf32>
    %95 = arith.addf %93, %94 : vector<8x128xf32>
    %96 = arith.negf %95 : vector<8x128xf32>
    %97 = math.exp %96 : vector<8x128xf32>
    %cst_24 = arith.constant 1.000000e+00 : f32
    %98 = vector.broadcast %cst_24 : f32 to vector<8x128xf32>
    %99 = arith.addf %98, %97 : vector<8x128xf32>
    %100 = arith.divf %98, %99 : vector<8x128xf32>
    %101 = vector.extract_strided_slice %82 {offsets = [0, 256], sizes = [8, 128], strides = [1, 1]} : vector<8x768xf32> to vector<8x128xf32>
    %102 = vector.extract_strided_slice %84 {offsets = [0, 256], sizes = [8, 128], strides = [1, 1]} : vector<8x768xf32> to vector<8x128xf32>
    %103 = arith.mulf %92, %102 : vector<8x128xf32>
    %104 = arith.addf %101, %103 : vector<8x128xf32>
    %105 = math.tanh %104 : vector<8x128xf32>
    %cst_25 = arith.constant 1.000000e+00 : f32
    %106 = vector.broadcast %cst_25 : f32 to vector<8x128xf32>
    %107 = arith.subf %106, %100 : vector<8x128xf32>
    %108 = arith.mulf %107, %105 : vector<8x128xf32>
    %109 = arith.mulf %100, %46 : vector<8x128xf32>
    %110 = arith.addf %108, %109 : vector<8x128xf32>
    %111 = vector.extract_strided_slice %82 {offsets = [0, 384], sizes = [8, 128], strides = [1, 1]} : vector<8x768xf32> to vector<8x128xf32>
    %112 = vector.extract_strided_slice %84 {offsets = [0, 384], sizes = [8, 128], strides = [1, 1]} : vector<8x768xf32> to vector<8x128xf32>
    %113 = arith.addf %111, %112 : vector<8x128xf32>
    %114 = arith.negf %113 : vector<8x128xf32>
    %115 = math.exp %114 : vector<8x128xf32>
    %cst_26 = arith.constant 1.000000e+00 : f32
    %116 = vector.broadcast %cst_26 : f32 to vector<8x128xf32>
    %117 = arith.addf %116, %115 : vector<8x128xf32>
    %118 = arith.divf %116, %117 : vector<8x128xf32>
    %119 = vector.extract_strided_slice %82 {offsets = [0, 512], sizes = [8, 128], strides = [1, 1]} : vector<8x768xf32> to vector<8x128xf32>
    %120 = vector.extract_strided_slice %84 {offsets = [0, 512], sizes = [8, 128], strides = [1, 1]} : vector<8x768xf32> to vector<8x128xf32>
    %121 = arith.addf %119, %120 : vector<8x128xf32>
    %122 = arith.negf %121 : vector<8x128xf32>
    %123 = math.exp %122 : vector<8x128xf32>
    %cst_27 = arith.constant 1.000000e+00 : f32
    %124 = vector.broadcast %cst_27 : f32 to vector<8x128xf32>
    %125 = arith.addf %124, %123 : vector<8x128xf32>
    %126 = arith.divf %124, %125 : vector<8x128xf32>
    %127 = vector.extract_strided_slice %82 {offsets = [0, 640], sizes = [8, 128], strides = [1, 1]} : vector<8x768xf32> to vector<8x128xf32>
    %128 = vector.extract_strided_slice %84 {offsets = [0, 640], sizes = [8, 128], strides = [1, 1]} : vector<8x768xf32> to vector<8x128xf32>
    %129 = arith.mulf %118, %128 : vector<8x128xf32>
    %130 = arith.addf %127, %129 : vector<8x128xf32>
    %131 = math.tanh %130 : vector<8x128xf32>
    %cst_28 = arith.constant 1.000000e+00 : f32
    %132 = vector.broadcast %cst_28 : f32 to vector<8x128xf32>
    %133 = arith.subf %132, %126 : vector<8x128xf32>
    %134 = arith.mulf %133, %131 : vector<8x128xf32>
    %135 = arith.mulf %126, %72 : vector<8x128xf32>
    %136 = arith.addf %134, %135 : vector<8x128xf32>
    %137 = tpu.concatenate %110, %136 in 1 : vector<8x128xf32>, vector<8x128xf32> -> vector<8x256xf32>
    %cst_29 = arith.constant dense<0.000000e+00> : vector<8x256xf32>
    %138 = tpu.matmul %137, %14, %cst_29 {dimension_numbers = #tpu.dot_dimension_numbers<[1], [0], [0], [1], [0, 0, 1, 1], [], []>} : vector<8x256xf32>, vector<256x256xf32>, vector<8x256xf32> -> vector<8x256xf32>
    %139 = arith.addf %138, %8 : vector<8x256xf32>
    %140 = vector.extract_strided_slice %139 {offsets = [0, 0], sizes = [8, 128], strides = [1, 1]} : vector<8x256xf32> to vector<8x128xf32>
    %cst_30 = arith.constant 0.000000e+00 : f32
    %141 = vector.broadcast %cst_30 : f32 to vector<8x128xf32>
    %142 = arith.maximumf %140, %141 : vector<8x128xf32>
    %143 = vector.extract_strided_slice %139 {offsets = [0, 128], sizes = [8, 128], strides = [1, 1]} : vector<8x256xf32> to vector<8x128xf32>
    %144 = tpu.concatenate %110, %136 in 1 : vector<8x128xf32>, vector<8x128xf32> -> vector<8x256xf32>
    %cst_31 = arith.constant dense<0.000000e+00> : vector<8x768xf32>
    %145 = tpu.matmul %143, %12, %cst_31 {dimension_numbers = #tpu.dot_dimension_numbers<[1], [0], [0], [1], [0, 0, 1, 1], [], []>} : vector<8x128xf32>, vector<128x768xf32>, vector<8x768xf32> -> vector<8x768xf32>
    %146 = arith.addf %145, %2 : vector<8x768xf32>
    %cst_32 = arith.constant dense<0.000000e+00> : vector<8x768xf32>
    %147 = tpu.matmul %144, %13, %cst_32 {dimension_numbers = #tpu.dot_dimension_numbers<[1], [0], [0], [1], [0, 0, 1, 1], [], []>} : vector<8x256xf32>, vector<256x768xf32>, vector<8x768xf32> -> vector<8x768xf32>
    %148 = arith.addf %147, %5 : vector<8x768xf32>
    %149 = vector.extract_strided_slice %146 {offsets = [0, 0], sizes = [8, 128], strides = [1, 1]} : vector<8x768xf32> to vector<8x128xf32>
    %150 = vector.extract_strided_slice %148 {offsets = [0, 0], sizes = [8, 128], strides = [1, 1]} : vector<8x768xf32> to vector<8x128xf32>
    %151 = arith.addf %149, %150 : vector<8x128xf32>
    %152 = arith.negf %151 : vector<8x128xf32>
    %153 = math.exp %152 : vector<8x128xf32>
    %cst_33 = arith.constant 1.000000e+00 : f32
    %154 = vector.broadcast %cst_33 : f32 to vector<8x128xf32>
    %155 = arith.addf %154, %153 : vector<8x128xf32>
    %156 = arith.divf %154, %155 : vector<8x128xf32>
    %157 = vector.extract_strided_slice %146 {offsets = [0, 128], sizes = [8, 128], strides = [1, 1]} : vector<8x768xf32> to vector<8x128xf32>
    %158 = vector.extract_strided_slice %148 {offsets = [0, 128], sizes = [8, 128], strides = [1, 1]} : vector<8x768xf32> to vector<8x128xf32>
    %159 = arith.addf %157, %158 : vector<8x128xf32>
    %160 = arith.negf %159 : vector<8x128xf32>
    %161 = math.exp %160 : vector<8x128xf32>
    %cst_34 = arith.constant 1.000000e+00 : f32
    %162 = vector.broadcast %cst_34 : f32 to vector<8x128xf32>
    %163 = arith.addf %162, %161 : vector<8x128xf32>
    %164 = arith.divf %162, %163 : vector<8x128xf32>
    %165 = vector.extract_strided_slice %146 {offsets = [0, 256], sizes = [8, 128], strides = [1, 1]} : vector<8x768xf32> to vector<8x128xf32>
    %166 = vector.extract_strided_slice %148 {offsets = [0, 256], sizes = [8, 128], strides = [1, 1]} : vector<8x768xf32> to vector<8x128xf32>
    %167 = arith.mulf %156, %166 : vector<8x128xf32>
    %168 = arith.addf %165, %167 : vector<8x128xf32>
    %169 = math.tanh %168 : vector<8x128xf32>
    %cst_35 = arith.constant 1.000000e+00 : f32
    %170 = vector.broadcast %cst_35 : f32 to vector<8x128xf32>
    %171 = arith.subf %170, %164 : vector<8x128xf32>
    %172 = arith.mulf %171, %169 : vector<8x128xf32>
    %173 = arith.mulf %164, %110 : vector<8x128xf32>
    %174 = arith.addf %172, %173 : vector<8x128xf32>
    %175 = vector.extract_strided_slice %146 {offsets = [0, 384], sizes = [8, 128], strides = [1, 1]} : vector<8x768xf32> to vector<8x128xf32>
    %176 = vector.extract_strided_slice %148 {offsets = [0, 384], sizes = [8, 128], strides = [1, 1]} : vector<8x768xf32> to vector<8x128xf32>
    %177 = arith.addf %175, %176 : vector<8x128xf32>
    %178 = arith.negf %177 : vector<8x128xf32>
    %179 = math.exp %178 : vector<8x128xf32>
    %cst_36 = arith.constant 1.000000e+00 : f32
    %180 = vector.broadcast %cst_36 : f32 to vector<8x128xf32>
    %181 = arith.addf %180, %179 : vector<8x128xf32>
    %182 = arith.divf %180, %181 : vector<8x128xf32>
    %183 = vector.extract_strided_slice %146 {offsets = [0, 512], sizes = [8, 128], strides = [1, 1]} : vector<8x768xf32> to vector<8x128xf32>
    %184 = vector.extract_strided_slice %148 {offsets = [0, 512], sizes = [8, 128], strides = [1, 1]} : vector<8x768xf32> to vector<8x128xf32>
    %185 = arith.addf %183, %184 : vector<8x128xf32>
    %186 = arith.negf %185 : vector<8x128xf32>
    %187 = math.exp %186 : vector<8x128xf32>
    %cst_37 = arith.constant 1.000000e+00 : f32
    %188 = vector.broadcast %cst_37 : f32 to vector<8x128xf32>
    %189 = arith.addf %188, %187 : vector<8x128xf32>
    %190 = arith.divf %188, %189 : vector<8x128xf32>
    %191 = vector.extract_strided_slice %146 {offsets = [0, 640], sizes = [8, 128], strides = [1, 1]} : vector<8x768xf32> to vector<8x128xf32>
    %192 = vector.extract_strided_slice %148 {offsets = [0, 640], sizes = [8, 128], strides = [1, 1]} : vector<8x768xf32> to vector<8x128xf32>
    %193 = arith.mulf %182, %192 : vector<8x128xf32>
    %194 = arith.addf %191, %193 : vector<8x128xf32>
    %195 = math.tanh %194 : vector<8x128xf32>
    %cst_38 = arith.constant 1.000000e+00 : f32
    %196 = vector.broadcast %cst_38 : f32 to vector<8x128xf32>
    %197 = arith.subf %196, %190 : vector<8x128xf32>
    %198 = arith.mulf %197, %195 : vector<8x128xf32>
    %199 = arith.mulf %190, %136 : vector<8x128xf32>
    %200 = arith.addf %198, %199 : vector<8x128xf32>
    %201 = tpu.concatenate %174, %200 in 1 : vector<8x128xf32>, vector<8x128xf32> -> vector<8x256xf32>
    %cst_39 = arith.constant dense<0.000000e+00> : vector<8x256xf32>
    %202 = tpu.matmul %201, %14, %cst_39 {dimension_numbers = #tpu.dot_dimension_numbers<[1], [0], [0], [1], [0, 0, 1, 1], [], []>} : vector<8x256xf32>, vector<256x256xf32>, vector<8x256xf32> -> vector<8x256xf32>
    %203 = arith.addf %202, %8 : vector<8x256xf32>
    %204 = vector.extract_strided_slice %203 {offsets = [0, 0], sizes = [8, 128], strides = [1, 1]} : vector<8x256xf32> to vector<8x128xf32>
    %cst_40 = arith.constant 0.000000e+00 : f32
    %205 = vector.broadcast %cst_40 : f32 to vector<8x128xf32>
    %206 = arith.maximumf %204, %205 : vector<8x128xf32>
    %207 = vector.extract_strided_slice %203 {offsets = [0, 128], sizes = [8, 128], strides = [1, 1]} : vector<8x256xf32> to vector<8x128xf32>
    %208 = tpu.concatenate %174, %200 in 1 : vector<8x128xf32>, vector<8x128xf32> -> vector<8x256xf32>
    %cst_41 = arith.constant dense<0.000000e+00> : vector<8x768xf32>
    %209 = tpu.matmul %207, %12, %cst_41 {dimension_numbers = #tpu.dot_dimension_numbers<[1], [0], [0], [1], [0, 0, 1, 1], [], []>} : vector<8x128xf32>, vector<128x768xf32>, vector<8x768xf32> -> vector<8x768xf32>
    %210 = arith.addf %209, %2 : vector<8x768xf32>
    %cst_42 = arith.constant dense<0.000000e+00> : vector<8x768xf32>
    %211 = tpu.matmul %208, %13, %cst_42 {dimension_numbers = #tpu.dot_dimension_numbers<[1], [0], [0], [1], [0, 0, 1, 1], [], []>} : vector<8x256xf32>, vector<256x768xf32>, vector<8x768xf32> -> vector<8x768xf32>
    %212 = arith.addf %211, %5 : vector<8x768xf32>
    %213 = vector.extract_strided_slice %210 {offsets = [0, 0], sizes = [8, 128], strides = [1, 1]} : vector<8x768xf32> to vector<8x128xf32>
    %214 = vector.extract_strided_slice %212 {offsets = [0, 0], sizes = [8, 128], strides = [1, 1]} : vector<8x768xf32> to vector<8x128xf32>
    %215 = arith.addf %213, %214 : vector<8x128xf32>
    %216 = arith.negf %215 : vector<8x128xf32>
    %217 = math.exp %216 : vector<8x128xf32>
    %cst_43 = arith.constant 1.000000e+00 : f32
    %218 = vector.broadcast %cst_43 : f32 to vector<8x128xf32>
    %219 = arith.addf %218, %217 : vector<8x128xf32>
    %220 = arith.divf %218, %219 : vector<8x128xf32>
    %221 = vector.extract_strided_slice %210 {offsets = [0, 128], sizes = [8, 128], strides = [1, 1]} : vector<8x768xf32> to vector<8x128xf32>
    %222 = vector.extract_strided_slice %212 {offsets = [0, 128], sizes = [8, 128], strides = [1, 1]} : vector<8x768xf32> to vector<8x128xf32>
    %223 = arith.addf %221, %222 : vector<8x128xf32>
    %224 = arith.negf %223 : vector<8x128xf32>
    %225 = math.exp %224 : vector<8x128xf32>
    %cst_44 = arith.constant 1.000000e+00 : f32
    %226 = vector.broadcast %cst_44 : f32 to vector<8x128xf32>
    %227 = arith.addf %226, %225 : vector<8x128xf32>
    %228 = arith.divf %226, %227 : vector<8x128xf32>
    %229 = vector.extract_strided_slice %210 {offsets = [0, 256], sizes = [8, 128], strides = [1, 1]} : vector<8x768xf32> to vector<8x128xf32>
    %230 = vector.extract_strided_slice %212 {offsets = [0, 256], sizes = [8, 128], strides = [1, 1]} : vector<8x768xf32> to vector<8x128xf32>
    %231 = arith.mulf %220, %230 : vector<8x128xf32>
    %232 = arith.addf %229, %231 : vector<8x128xf32>
    %233 = math.tanh %232 : vector<8x128xf32>
    %cst_45 = arith.constant 1.000000e+00 : f32
    %234 = vector.broadcast %cst_45 : f32 to vector<8x128xf32>
    %235 = arith.subf %234, %228 : vector<8x128xf32>
    %236 = arith.mulf %235, %233 : vector<8x128xf32>
    %237 = arith.mulf %228, %174 : vector<8x128xf32>
    %238 = arith.addf %236, %237 : vector<8x128xf32>
    %239 = vector.extract_strided_slice %210 {offsets = [0, 384], sizes = [8, 128], strides = [1, 1]} : vector<8x768xf32> to vector<8x128xf32>
    %240 = vector.extract_strided_slice %212 {offsets = [0, 384], sizes = [8, 128], strides = [1, 1]} : vector<8x768xf32> to vector<8x128xf32>
    %241 = arith.addf %239, %240 : vector<8x128xf32>
    %242 = arith.negf %241 : vector<8x128xf32>
    %243 = math.exp %242 : vector<8x128xf32>
    %cst_46 = arith.constant 1.000000e+00 : f32
    %244 = vector.broadcast %cst_46 : f32 to vector<8x128xf32>
    %245 = arith.addf %244, %243 : vector<8x128xf32>
    %246 = arith.divf %244, %245 : vector<8x128xf32>
    %247 = vector.extract_strided_slice %210 {offsets = [0, 512], sizes = [8, 128], strides = [1, 1]} : vector<8x768xf32> to vector<8x128xf32>
    %248 = vector.extract_strided_slice %212 {offsets = [0, 512], sizes = [8, 128], strides = [1, 1]} : vector<8x768xf32> to vector<8x128xf32>
    %249 = arith.addf %247, %248 : vector<8x128xf32>
    %250 = arith.negf %249 : vector<8x128xf32>
    %251 = math.exp %250 : vector<8x128xf32>
    %cst_47 = arith.constant 1.000000e+00 : f32
    %252 = vector.broadcast %cst_47 : f32 to vector<8x128xf32>
    %253 = arith.addf %252, %251 : vector<8x128xf32>
    %254 = arith.divf %252, %253 : vector<8x128xf32>
    %255 = vector.extract_strided_slice %210 {offsets = [0, 640], sizes = [8, 128], strides = [1, 1]} : vector<8x768xf32> to vector<8x128xf32>
    %256 = vector.extract_strided_slice %212 {offsets = [0, 640], sizes = [8, 128], strides = [1, 1]} : vector<8x768xf32> to vector<8x128xf32>
    %257 = arith.mulf %246, %256 : vector<8x128xf32>
    %258 = arith.addf %255, %257 : vector<8x128xf32>
    %259 = math.tanh %258 : vector<8x128xf32>
    %cst_48 = arith.constant 1.000000e+00 : f32
    %260 = vector.broadcast %cst_48 : f32 to vector<8x128xf32>
    %261 = arith.subf %260, %254 : vector<8x128xf32>
    %262 = arith.mulf %261, %259 : vector<8x128xf32>
    %263 = arith.mulf %254, %200 : vector<8x128xf32>
    %264 = arith.addf %262, %263 : vector<8x128xf32>
    %265 = tpu.concatenate %238, %264 in 1 : vector<8x128xf32>, vector<8x128xf32> -> vector<8x256xf32>
    %cst_49 = arith.constant dense<0.000000e+00> : vector<8x256xf32>
    %266 = tpu.matmul %265, %14, %cst_49 {dimension_numbers = #tpu.dot_dimension_numbers<[1], [0], [0], [1], [0, 0, 1, 1], [], []>} : vector<8x256xf32>, vector<256x256xf32>, vector<8x256xf32> -> vector<8x256xf32>
    %267 = arith.addf %266, %8 : vector<8x256xf32>
    %268 = vector.extract_strided_slice %267 {offsets = [0, 0], sizes = [8, 128], strides = [1, 1]} : vector<8x256xf32> to vector<8x128xf32>
    %cst_50 = arith.constant 0.000000e+00 : f32
    %269 = vector.broadcast %cst_50 : f32 to vector<8x128xf32>
    %270 = arith.maximumf %268, %269 : vector<8x128xf32>
    %271 = vector.extract_strided_slice %267 {offsets = [0, 128], sizes = [8, 128], strides = [1, 1]} : vector<8x256xf32> to vector<8x128xf32>
    %272 = tpu.concatenate %238, %264 in 1 : vector<8x128xf32>, vector<8x128xf32> -> vector<8x256xf32>
    %cst_51 = arith.constant dense<0.000000e+00> : vector<8x768xf32>
    %273 = tpu.matmul %271, %12, %cst_51 {dimension_numbers = #tpu.dot_dimension_numbers<[1], [0], [0], [1], [0, 0, 1, 1], [], []>} : vector<8x128xf32>, vector<128x768xf32>, vector<8x768xf32> -> vector<8x768xf32>
    %274 = arith.addf %273, %2 : vector<8x768xf32>
    %cst_52 = arith.constant dense<0.000000e+00> : vector<8x768xf32>
    %275 = tpu.matmul %272, %13, %cst_52 {dimension_numbers = #tpu.dot_dimension_numbers<[1], [0], [0], [1], [0, 0, 1, 1], [], []>} : vector<8x256xf32>, vector<256x768xf32>, vector<8x768xf32> -> vector<8x768xf32>
    %276 = arith.addf %275, %5 : vector<8x768xf32>
    %277 = vector.extract_strided_slice %274 {offsets = [0, 0], sizes = [8, 128], strides = [1, 1]} : vector<8x768xf32> to vector<8x128xf32>
    %278 = vector.extract_strided_slice %276 {offsets = [0, 0], sizes = [8, 128], strides = [1, 1]} : vector<8x768xf32> to vector<8x128xf32>
    %279 = arith.addf %277, %278 : vector<8x128xf32>
    %280 = arith.negf %279 : vector<8x128xf32>
    %281 = math.exp %280 : vector<8x128xf32>
    %cst_53 = arith.constant 1.000000e+00 : f32
    %282 = vector.broadcast %cst_53 : f32 to vector<8x128xf32>
    %283 = arith.addf %282, %281 : vector<8x128xf32>
    %284 = arith.divf %282, %283 : vector<8x128xf32>
    %285 = vector.extract_strided_slice %274 {offsets = [0, 128], sizes = [8, 128], strides = [1, 1]} : vector<8x768xf32> to vector<8x128xf32>
    %286 = vector.extract_strided_slice %276 {offsets = [0, 128], sizes = [8, 128], strides = [1, 1]} : vector<8x768xf32> to vector<8x128xf32>
    %287 = arith.addf %285, %286 : vector<8x128xf32>
    %288 = arith.negf %287 : vector<8x128xf32>
    %289 = math.exp %288 : vector<8x128xf32>
    %cst_54 = arith.constant 1.000000e+00 : f32
    %290 = vector.broadcast %cst_54 : f32 to vector<8x128xf32>
    %291 = arith.addf %290, %289 : vector<8x128xf32>
    %292 = arith.divf %290, %291 : vector<8x128xf32>
    %293 = vector.extract_strided_slice %274 {offsets = [0, 256], sizes = [8, 128], strides = [1, 1]} : vector<8x768xf32> to vector<8x128xf32>
    %294 = vector.extract_strided_slice %276 {offsets = [0, 256], sizes = [8, 128], strides = [1, 1]} : vector<8x768xf32> to vector<8x128xf32>
    %295 = arith.mulf %284, %294 : vector<8x128xf32>
    %296 = arith.addf %293, %295 : vector<8x128xf32>
    %297 = math.tanh %296 : vector<8x128xf32>
    %cst_55 = arith.constant 1.000000e+00 : f32
    %298 = vector.broadcast %cst_55 : f32 to vector<8x128xf32>
    %299 = arith.subf %298, %292 : vector<8x128xf32>
    %300 = arith.mulf %299, %297 : vector<8x128xf32>
    %301 = arith.mulf %292, %238 : vector<8x128xf32>
    %302 = arith.addf %300, %301 : vector<8x128xf32>
    %303 = vector.extract_strided_slice %274 {offsets = [0, 384], sizes = [8, 128], strides = [1, 1]} : vector<8x768xf32> to vector<8x128xf32>
    %304 = vector.extract_strided_slice %276 {offsets = [0, 384], sizes = [8, 128], strides = [1, 1]} : vector<8x768xf32> to vector<8x128xf32>
    %305 = arith.addf %303, %304 : vector<8x128xf32>
    %306 = arith.negf %305 : vector<8x128xf32>
    %307 = math.exp %306 : vector<8x128xf32>
    %cst_56 = arith.constant 1.000000e+00 : f32
    %308 = vector.broadcast %cst_56 : f32 to vector<8x128xf32>
    %309 = arith.addf %308, %307 : vector<8x128xf32>
    %310 = arith.divf %308, %309 : vector<8x128xf32>
    %311 = vector.extract_strided_slice %274 {offsets = [0, 512], sizes = [8, 128], strides = [1, 1]} : vector<8x768xf32> to vector<8x128xf32>
    %312 = vector.extract_strided_slice %276 {offsets = [0, 512], sizes = [8, 128], strides = [1, 1]} : vector<8x768xf32> to vector<8x128xf32>
    %313 = arith.addf %311, %312 : vector<8x128xf32>
    %314 = arith.negf %313 : vector<8x128xf32>
    %315 = math.exp %314 : vector<8x128xf32>
    %cst_57 = arith.constant 1.000000e+00 : f32
    %316 = vector.broadcast %cst_57 : f32 to vector<8x128xf32>
    %317 = arith.addf %316, %315 : vector<8x128xf32>
    %318 = arith.divf %316, %317 : vector<8x128xf32>
    %319 = vector.extract_strided_slice %274 {offsets = [0, 640], sizes = [8, 128], strides = [1, 1]} : vector<8x768xf32> to vector<8x128xf32>
    %320 = vector.extract_strided_slice %276 {offsets = [0, 640], sizes = [8, 128], strides = [1, 1]} : vector<8x768xf32> to vector<8x128xf32>
    %321 = arith.mulf %310, %320 : vector<8x128xf32>
    %322 = arith.addf %319, %321 : vector<8x128xf32>
    %323 = math.tanh %322 : vector<8x128xf32>
    %cst_58 = arith.constant 1.000000e+00 : f32
    %324 = vector.broadcast %cst_58 : f32 to vector<8x128xf32>
    %325 = arith.subf %324, %318 : vector<8x128xf32>
    %326 = arith.mulf %325, %323 : vector<8x128xf32>
    %327 = arith.mulf %318, %264 : vector<8x128xf32>
    %328 = arith.addf %326, %327 : vector<8x128xf32>
    %329 = tpu.concatenate %302, %328 in 1 : vector<8x128xf32>, vector<8x128xf32> -> vector<8x256xf32>
    %cst_59 = arith.constant dense<0.000000e+00> : vector<8x256xf32>
    %330 = tpu.matmul %329, %14, %cst_59 {dimension_numbers = #tpu.dot_dimension_numbers<[1], [0], [0], [1], [0, 0, 1, 1], [], []>} : vector<8x256xf32>, vector<256x256xf32>, vector<8x256xf32> -> vector<8x256xf32>
    %331 = arith.addf %330, %8 : vector<8x256xf32>
    %332 = vector.extract_strided_slice %331 {offsets = [0, 0], sizes = [8, 128], strides = [1, 1]} : vector<8x256xf32> to vector<8x128xf32>
    %cst_60 = arith.constant 0.000000e+00 : f32
    %333 = vector.broadcast %cst_60 : f32 to vector<8x128xf32>
    %334 = arith.maximumf %332, %333 : vector<8x128xf32>
    %335 = vector.extract_strided_slice %331 {offsets = [0, 128], sizes = [8, 128], strides = [1, 1]} : vector<8x256xf32> to vector<8x128xf32>
    %336 = tpu.concatenate %302, %328 in 1 : vector<8x128xf32>, vector<8x128xf32> -> vector<8x256xf32>
    %cst_61 = arith.constant dense<0.000000e+00> : vector<8x768xf32>
    %337 = tpu.matmul %335, %12, %cst_61 {dimension_numbers = #tpu.dot_dimension_numbers<[1], [0], [0], [1], [0, 0, 1, 1], [], []>} : vector<8x128xf32>, vector<128x768xf32>, vector<8x768xf32> -> vector<8x768xf32>
    %338 = arith.addf %337, %2 : vector<8x768xf32>
    %cst_62 = arith.constant dense<0.000000e+00> : vector<8x768xf32>
    %339 = tpu.matmul %336, %13, %cst_62 {dimension_numbers = #tpu.dot_dimension_numbers<[1], [0], [0], [1], [0, 0, 1, 1], [], []>} : vector<8x256xf32>, vector<256x768xf32>, vector<8x768xf32> -> vector<8x768xf32>
    %340 = arith.addf %339, %5 : vector<8x768xf32>
    %341 = vector.extract_strided_slice %338 {offsets = [0, 0], sizes = [8, 128], strides = [1, 1]} : vector<8x768xf32> to vector<8x128xf32>
    %342 = vector.extract_strided_slice %340 {offsets = [0, 0], sizes = [8, 128], strides = [1, 1]} : vector<8x768xf32> to vector<8x128xf32>
    %343 = arith.addf %341, %342 : vector<8x128xf32>
    %344 = arith.negf %343 : vector<8x128xf32>
    %345 = math.exp %344 : vector<8x128xf32>
    %cst_63 = arith.constant 1.000000e+00 : f32
    %346 = vector.broadcast %cst_63 : f32 to vector<8x128xf32>
    %347 = arith.addf %346, %345 : vector<8x128xf32>
    %348 = arith.divf %346, %347 : vector<8x128xf32>
    %349 = vector.extract_strided_slice %338 {offsets = [0, 128], sizes = [8, 128], strides = [1, 1]} : vector<8x768xf32> to vector<8x128xf32>
    %350 = vector.extract_strided_slice %340 {offsets = [0, 128], sizes = [8, 128], strides = [1, 1]} : vector<8x768xf32> to vector<8x128xf32>
    %351 = arith.addf %349, %350 : vector<8x128xf32>
    %352 = arith.negf %351 : vector<8x128xf32>
    %353 = math.exp %352 : vector<8x128xf32>
    %cst_64 = arith.constant 1.000000e+00 : f32
    %354 = vector.broadcast %cst_64 : f32 to vector<8x128xf32>
    %355 = arith.addf %354, %353 : vector<8x128xf32>
    %356 = arith.divf %354, %355 : vector<8x128xf32>
    %357 = vector.extract_strided_slice %338 {offsets = [0, 256], sizes = [8, 128], strides = [1, 1]} : vector<8x768xf32> to vector<8x128xf32>
    %358 = vector.extract_strided_slice %340 {offsets = [0, 256], sizes = [8, 128], strides = [1, 1]} : vector<8x768xf32> to vector<8x128xf32>
    %359 = arith.mulf %348, %358 : vector<8x128xf32>
    %360 = arith.addf %357, %359 : vector<8x128xf32>
    %361 = math.tanh %360 : vector<8x128xf32>
    %cst_65 = arith.constant 1.000000e+00 : f32
    %362 = vector.broadcast %cst_65 : f32 to vector<8x128xf32>
    %363 = arith.subf %362, %356 : vector<8x128xf32>
    %364 = arith.mulf %363, %361 : vector<8x128xf32>
    %365 = arith.mulf %356, %302 : vector<8x128xf32>
    %366 = arith.addf %364, %365 : vector<8x128xf32>
    %367 = vector.extract_strided_slice %338 {offsets = [0, 384], sizes = [8, 128], strides = [1, 1]} : vector<8x768xf32> to vector<8x128xf32>
    %368 = vector.extract_strided_slice %340 {offsets = [0, 384], sizes = [8, 128], strides = [1, 1]} : vector<8x768xf32> to vector<8x128xf32>
    %369 = arith.addf %367, %368 : vector<8x128xf32>
    %370 = arith.negf %369 : vector<8x128xf32>
    %371 = math.exp %370 : vector<8x128xf32>
    %cst_66 = arith.constant 1.000000e+00 : f32
    %372 = vector.broadcast %cst_66 : f32 to vector<8x128xf32>
    %373 = arith.addf %372, %371 : vector<8x128xf32>
    %374 = arith.divf %372, %373 : vector<8x128xf32>
    %375 = vector.extract_strided_slice %338 {offsets = [0, 512], sizes = [8, 128], strides = [1, 1]} : vector<8x768xf32> to vector<8x128xf32>
    %376 = vector.extract_strided_slice %340 {offsets = [0, 512], sizes = [8, 128], strides = [1, 1]} : vector<8x768xf32> to vector<8x128xf32>
    %377 = arith.addf %375, %376 : vector<8x128xf32>
    %378 = arith.negf %377 : vector<8x128xf32>
    %379 = math.exp %378 : vector<8x128xf32>
    %cst_67 = arith.constant 1.000000e+00 : f32
    %380 = vector.broadcast %cst_67 : f32 to vector<8x128xf32>
    %381 = arith.addf %380, %379 : vector<8x128xf32>
    %382 = arith.divf %380, %381 : vector<8x128xf32>
    %383 = vector.extract_strided_slice %338 {offsets = [0, 640], sizes = [8, 128], strides = [1, 1]} : vector<8x768xf32> to vector<8x128xf32>
    %384 = vector.extract_strided_slice %340 {offsets = [0, 640], sizes = [8, 128], strides = [1, 1]} : vector<8x768xf32> to vector<8x128xf32>
    %385 = arith.mulf %374, %384 : vector<8x128xf32>
    %386 = arith.addf %383, %385 : vector<8x128xf32>
    %387 = math.tanh %386 : vector<8x128xf32>
    %cst_68 = arith.constant 1.000000e+00 : f32
    %388 = vector.broadcast %cst_68 : f32 to vector<8x128xf32>
    %389 = arith.subf %388, %382 : vector<8x128xf32>
    %390 = arith.mulf %389, %387 : vector<8x128xf32>
    %391 = arith.mulf %382, %328 : vector<8x128xf32>
    %392 = arith.addf %390, %391 : vector<8x128xf32>
    %393 = tpu.concatenate %366, %392 in 1 : vector<8x128xf32>, vector<8x128xf32> -> vector<8x256xf32>
    %cst_69 = arith.constant dense<0.000000e+00> : vector<8x256xf32>
    %394 = tpu.matmul %393, %14, %cst_69 {dimension_numbers = #tpu.dot_dimension_numbers<[1], [0], [0], [1], [0, 0, 1, 1], [], []>} : vector<8x256xf32>, vector<256x256xf32>, vector<8x256xf32> -> vector<8x256xf32>
    %395 = arith.addf %394, %8 : vector<8x256xf32>
    %396 = vector.extract_strided_slice %395 {offsets = [0, 0], sizes = [8, 128], strides = [1, 1]} : vector<8x256xf32> to vector<8x128xf32>
    %cst_70 = arith.constant 0.000000e+00 : f32
    %397 = vector.broadcast %cst_70 : f32 to vector<8x128xf32>
    %398 = arith.maximumf %396, %397 : vector<8x128xf32>
    %399 = tpu.concatenate %78, %142, %206, %270, %334, %398 in 1 : vector<8x128xf32>, vector<8x128xf32>, vector<8x128xf32>, vector<8x128xf32>, vector<8x128xf32>, vector<8x128xf32> -> vector<8x768xf32>
    %c0_71 = arith.constant 0 : index
    %c0_72 = arith.constant 0 : index
    %400 = vector.load %arg5[%c0_71, %c0_72] : memref<768x128xf32, #tpu.memory_space<vmem>>, vector<768x128xf32>
    %cst_73 = arith.constant dense<0.000000e+00> : vector<8x128xf32>
    %401 = tpu.matmul %399, %400, %cst_73 {dimension_numbers = #tpu.dot_dimension_numbers<[1], [0], [0], [1], [0, 0, 1, 1], [], []>} : vector<8x768xf32>, vector<768x128xf32>, vector<8x128xf32> -> vector<8x128xf32>
    %402 = arith.addf %401, %11 : vector<8x128xf32>
    %c0_74 = arith.constant 0 : index
    %c0_75 = arith.constant 0 : index
    %403 = vector.load %arg7[%c0_74, %c0_75] : memref<8x128xf32, #tpu.memory_space<vmem>>, vector<8x128xf32>
    tpu.vector_store %arg7[%c0_74, %c0_75], %402 {strides = array<i32>} : memref<8x128xf32, #tpu.memory_space<vmem>>, vector<8x128xf32>,
    return
  }
  func.func @transform_0(%arg0: i32) -> (i32, i32) {
    %c0_i32 = arith.constant 0 : i32
    %c0_i32_0 = arith.constant 0 : i32
    %c0_i32_1 = arith.constant 0 : i32
    return %c0_i32, %c0_i32_0 : i32, i32
  }
  func.func @transform_1(%arg0: i32) -> (i32, i32) {
    %c0_i32 = arith.constant 0 : i32
    %c0_i32_0 = arith.constant 0 : i32
    %c0_i32_1 = arith.constant 0 : i32
    return %c0_i32, %c0_i32_0 : i32, i32
  }
  func.func @transform_2(%arg0: i32) -> (i32, i32) {
    %c0_i32 = arith.constant 0 : i32
    %c0_i32_0 = arith.constant 0 : i32
    %c0_i32_1 = arith.constant 0 : i32
    return %c0_i32, %c0_i32_0 : i32, i32
  }
  func.func @transform_3(%arg0: i32) -> (i32, i32) {
    %c0_i32 = arith.constant 0 : i32
    %c0_i32_0 = arith.constant 0 : i32
    %c0_i32_1 = arith.constant 0 : i32
    return %c0_i32, %c0_i32_0 : i32, i32
  }
  func.func @transform_4(%arg0: i32) -> (i32, i32) {
    %c0_i32 = arith.constant 0 : i32
    %c0_i32_0 = arith.constant 0 : i32
    %c0_i32_1 = arith.constant 0 : i32
    return %c0_i32, %c0_i32_0 : i32, i32
  }
  func.func @transform_5(%arg0: i32) -> (i32, i32) {
    %c0_i32 = arith.constant 0 : i32
    %c0_i32_0 = arith.constant 0 : i32
    %c0_i32_1 = arith.constant 0 : i32
    return %c0_i32, %c0_i32_0 : i32, i32
  }
  func.func @transform_6(%arg0: i32) -> (i32, i32) {
    %c0_i32 = arith.constant 0 : i32
    %c0_i32_0 = arith.constant 0 : i32
    %c0_i32_1 = arith.constant 0 : i32
    return %c0_i32, %c0_i32_0 : i32, i32
  }
}

</mosaic_0001>

<llo_original>
// kernel: tpu_custom_call.1
$region0: #{tpu_custom_call.1}
  #allocation0 [shape = 'u32[]', space=smem, size = 0x4, offset = 0x4, fixed_abs, tag = 'smem constant byte address 0x4 - core index']
  #allocation1 [shape = 'u32[144,128]{1,0:T(1,128)}', space=vmem, size = 0x12000, scoped, tag = 'internal scratch']
  %s0 = inlined_call_operand.hbm [shape: f32[8,128], index: 0, kind: input, shape index: {}]
  %s1 = inlined_call_operand.hbm [shape: f32[128,768], index: 1, kind: input, shape index: {}]
  %s2 = inlined_call_operand.hbm [shape: f32[256,768], index: 2, kind: input, shape index: {}]
  %s3 = inlined_call_operand.hbm [shape: f32[256,256], index: 3, kind: input, shape index: {}]
  %s4 = inlined_call_operand.hbm [shape: f32[768,128], index: 4, kind: input, shape index: {}]
  %s5 = inlined_call_operand.hbm [shape: f32[1,1920], index: 5, kind: input, shape index: {}]
  %s6 = inlined_call_operand.hbm [shape: f32[8,128], index: 6, kind: output, shape index: {}]
  %s7 = sld [smem:[#allocation0]]
  $region58: #{tpu_custom_call.1} parent=0
    _
  %s9 = ssub.s32 1, %s7
  %s10 = scalar_select 0, %s9, %s7
  $region1: #{tpu_custom_call.1} parent=0
    #allocation2 [shape = 'u8[4096]{0}', space=vmem, size = 0x1000, scoped, tag = 'input window, operand 0, single buffered']
    #allocation3 [shape = 's32[1]{0}', space=sflag, size = 0x4, scoped, tag = 'scoped memory for tpu_custom_call.1']
    #allocation4 [shape = 's32[1]{0}', space=sflag, size = 0x4, scoped, tag = 'scoped memory for tpu_custom_call.1']
    #allocation5 [shape = 'u8[393216]{0}', space=vmem, size = 0x60000, scoped, tag = 'input window, operand 1, single buffered']
    #allocation6 [shape = 's32[1]{0}', space=sflag, size = 0x4, scoped, tag = 'scoped memory for tpu_custom_call.1']
    #allocation7 [shape = 'u8[786432]{0}', space=vmem, size = 0xc0000, scoped, tag = 'input window, operand 2, single buffered']
    #allocation8 [shape = 'u8[262144]{0}', space=vmem, size = 0x40000, scoped, tag = 'input window, operand 3, single buffered']
    #allocation9 [shape = 's32[1]{0}', space=sflag, size = 0x4, scoped, tag = 'scoped memory for tpu_custom_call.1']
    #allocation10 [shape = 'u8[393216]{0}', space=vmem, size = 0x60000, scoped, tag = 'input window, operand 4, single buffered']
    #allocation11 [shape = 'u8[7680]{0}', space=vmem, size = 0x2000, scoped, tag = 'input window, operand 5, single buffered']
    #allocation12 [shape = 's32[1]{0}', space=sflag, size = 0x4, scoped, tag = 'scoped memory for tpu_custom_call.1']
    #allocation13 [shape = 'u8[4096]{0}', space=vmem, size = 0x1000, scoped, tag = 'output window, operand 0, single buffered']
    %11 = vsyncpa [#allocation3], 0
    %12 = vsyncpa [#allocation6], 0
    %13 = vsyncpa [#allocation9], 0
    %14 = vsyncpa [#allocation12], 0
    %15 = vsyncpa [#allocation4], 0
    // Predicated region
    $region2: #{tpu_custom_call.1} parent=1 // pred_check
      _
    $region3: #{tpu_custom_call.1} parent=1 // pred_check_branch
      %17 = sbr.rel (0) target = $region5
    $region4: #{tpu_custom_call.1} parent=1 // pred_region
      %s19 = ssub.s32 128, 128
      %20 = vsyncadd [#allocation3], %s19
      %s22 = sshll.u32 [#allocation2], 4
      %s23 = int_to_ptr.vmem [resolvable:$true] %s22
      %25 = dma.hbm_to_vmem [thread:$0]  %s0, 128, %s23, [#allocation3]
    $region5: #{tpu_custom_call.1} parent=1 // pred_fallthru
      _
    // Predicated region
    $region6: #{tpu_custom_call.1} parent=1 // pred_check
      _
    $region7: #{tpu_custom_call.1} parent=1 // pred_check_branch
      %27 = sbr.rel (0) target = $region9
    $region8: #{tpu_custom_call.1} parent=1 // pred_region
      %s29 = ssub.s32 12288, 12288
      %30 = vsyncadd [#allocation6], %s29
      %s31 = sshll.u32 [#allocation5], 4
      %s32 = int_to_ptr.vmem [resolvable:$true] %s31
      %37 = dma.hbm_to_vmem [thread:$0]  %s1, 12288, %s32, [#allocation6], 768, 768, 48
    $region9: #{tpu_custom_call.1} parent=1 // pred_fallthru
      _
    // Predicated region
    $region10: #{tpu_custom_call.1} parent=1 // pred_check
      _
    $region11: #{tpu_custom_call.1} parent=1 // pred_check_branch
      %39 = sbr.rel (0) target = $region13
    $region12: #{tpu_custom_call.1} parent=1 // pred_region
      %s41 = ssub.s32 24576, 24576
      %42 = vsyncadd [#allocation6], %s41
      %s43 = sshll.u32 [#allocation7], 4
      %s44 = int_to_ptr.vmem [resolvable:$true] %s43
      %49 = dma.hbm_to_vmem [thread:$0]  %s2, 24576, %s44, [#allocation6], 768, 768, 48
    $region13: #{tpu_custom_call.1} parent=1 // pred_fallthru
      _
    // Predicated region
    $region14: #{tpu_custom_call.1} parent=1 // pred_check
      _
    $region15: #{tpu_custom_call.1} parent=1 // pred_check_branch
      %51 = sbr.rel (0) target = $region17
    $region16: #{tpu_custom_call.1} parent=1 // pred_region
      %s53 = ssub.s32 8192, 8192
      %54 = vsyncadd [#allocation9], %s53
      %s55 = sshll.u32 [#allocation8], 4
      %s56 = int_to_ptr.vmem [resolvable:$true] %s55
      %61 = dma.hbm_to_vmem [thread:$0]  %s3, 8192, %s56, [#allocation9], 256, 256, 16
    $region17: #{tpu_custom_call.1} parent=1 // pred_fallthru
      _
    // Predicated region
    $region18: #{tpu_custom_call.1} parent=1 // pred_check
      _
    $region19: #{tpu_custom_call.1} parent=1 // pred_check_branch
      %63 = sbr.rel (0) target = $region21
    $region20: #{tpu_custom_call.1} parent=1 // pred_region
      %s65 = ssub.s32 12288, 12288
      %66 = vsyncadd [#allocation9], %s65
      %s67 = sshll.u32 [#allocation10], 4
      %s68 = int_to_ptr.vmem [resolvable:$true] %s67
      %73 = dma.hbm_to_vmem [thread:$0]  %s4, 12288, %s68, [#allocation9], 128, 128, 8
    $region21: #{tpu_custom_call.1} parent=1 // pred_fallthru
      _
    // Predicated region
    $region22: #{tpu_custom_call.1} parent=1 // pred_check
      _
    $region23: #{tpu_custom_call.1} parent=1 // pred_check_branch
      %75 = sbr.rel (0) target = $region25
    $region24: #{tpu_custom_call.1} parent=1 // pred_region
      %s77 = ssub.s32 240, 240
      %78 = vsyncadd [#allocation12], %s77
      %s80 = sshll.u32 [#allocation11], 4
      %s81 = int_to_ptr.vmem [resolvable:$true] %s80
      %83 = dma.hbm_to_vmem [thread:$0]  %s5, 240, %s81, [#allocation12]
    $region25: #{tpu_custom_call.1} parent=1 // pred_fallthru
      _
    // Predicated region
    $region26: #{tpu_custom_call.1} parent=1 // pred_check
      _
    $region27: #{tpu_custom_call.1} parent=1 // pred_check_branch
      %85 = sbr.rel (0) target = $region29
    $region28: #{tpu_custom_call.1} parent=1 // pred_region
      %86 = dma.done [#allocation3], 128
    $region29: #{tpu_custom_call.1} parent=1 // pred_fallthru
      _
    // Predicated region
    $region30: #{tpu_custom_call.1} parent=1 // pred_check
      _
    $region31: #{tpu_custom_call.1} parent=1 // pred_check_branch
      %88 = sbr.rel (0) target = $region33
    $region32: #{tpu_custom_call.1} parent=1 // pred_region
      %89 = dma.done [#allocation6], 12288
    $region33: #{tpu_custom_call.1} parent=1 // pred_fallthru
      _
    // Predicated region
    $region34: #{tpu_custom_call.1} parent=1 // pred_check
      _
    $region35: #{tpu_custom_call.1} parent=1 // pred_check_branch
      %91 = sbr.rel (0) target = $region37
    $region36: #{tpu_custom_call.1} parent=1 // pred_region
      %92 = dma.done [#allocation6], 24576
    $region37: #{tpu_custom_call.1} parent=1 // pred_fallthru
      _
    // Predicated region
    $region38: #{tpu_custom_call.1} parent=1 // pred_check
      _
    $region39: #{tpu_custom_call.1} parent=1 // pred_check_branch
      %94 = sbr.rel (0) target = $region41
    $region40: #{tpu_custom_call.1} parent=1 // pred_region
      %95 = dma.done [#allocation9], 8192
    $region41: #{tpu_custom_call.1} parent=1 // pred_fallthru
      _
    // Predicated region
    $region42: #{tpu_custom_call.1} parent=1 // pred_check
      _
    $region43: #{tpu_custom_call.1} parent=1 // pred_check_branch
      %97 = sbr.rel (0) target = $region45
    $region44: #{tpu_custom_call.1} parent=1 // pred_region
      %98 = dma.done [#allocation9], 12288
    $region45: #{tpu_custom_call.1} parent=1 // pred_fallthru
      _
    // Predicated region
    $region46: #{tpu_custom_call.1} parent=1 // pred_check
      _
    $region47: #{tpu_custom_call.1} parent=1 // pred_check_branch
      %100 = sbr.rel (0) target = $region49
    $region48: #{tpu_custom_call.1} parent=1 // pred_region
      %101 = dma.done [#allocation12], 240
    $region49: #{tpu_custom_call.1} parent=1 // pred_fallthru
      _
    %v102 = vld [vmem:[#allocation11] sm:$0x3f]
    %v104 = vlaneseq
    %v105 = vshrl.u32 %v104, 7
    %v106 = vsub.s32 0, %v105
    %v107 = vrot.slane %v102, %v106
    %v108 = vlaneseq
    %v109 = vshrl.u32 %v108, 7
    %v110 = vsub.s32 1, %v109
    %v111 = vrot.slane %v102, %v110
    %v112 = vlaneseq
    %v113 = vshrl.u32 %v112, 7
    %v114 = vsub.s32 2, %v113
    %v115 = vrot.slane %v102, %v114
    %v116 = vlaneseq
    %v117 = vshrl.u32 %v116, 7
    %v118 = vsub.s32 3, %v117
    %v119 = vrot.slane %v102, %v118
    %v120 = vlaneseq
    %v121 = vshrl.u32 %v120, 7
    %v122 = vsub.s32 4, %v121
    %v123 = vrot.slane %v102, %v122
    %v124 = vlaneseq
    %v125 = vshrl.u32 %v124, 7
    %v126 = vsub.s32 5, %v125
    %v127 = vrot.slane %v102, %v126
    %v134 = vld [vmem:[#allocation11 + $0x6] sm:$0x3f]
    %v136 = vlaneseq
    %v137 = vshrl.u32 %v136, 7
    %v138 = vsub.s32 0, %v137
    %v139 = vrot.slane %v134, %v138
    %v140 = vlaneseq
    %v141 = vshrl.u32 %v140, 7
    %v142 = vsub.s32 1, %v141
    %v143 = vrot.slane %v134, %v142
    %v144 = vlaneseq
    %v145 = vshrl.u32 %v144, 7
    %v146 = vsub.s32 2, %v145
    %v147 = vrot.slane %v134, %v146
    %v148 = vlaneseq
    %v149 = vshrl.u32 %v148, 7
    %v150 = vsub.s32 3, %v149
    %v151 = vrot.slane %v134, %v150
    %v152 = vlaneseq
    %v153 = vshrl.u32 %v152, 7
    %v154 = vsub.s32 4, %v153
    %v155 = vrot.slane %v134, %v154
    %v156 = vlaneseq
    %v157 = vshrl.u32 %v156, 7
    %v158 = vsub.s32 5, %v157
    %v159 = vrot.slane %v134, %v158
    %v166 = vld [vmem:[#allocation11 + $0xc] sm:$0x3]
    %v168 = vlaneseq
    %v169 = vshrl.u32 %v168, 7
    %v170 = vsub.s32 0, %v169
    %v171 = vrot.slane %v166, %v170
    %v172 = vlaneseq
    %v173 = vshrl.u32 %v172, 7
    %v174 = vsub.s32 1, %v173
    %v175 = vrot.slane %v166, %v174
    %v178 = vld [vmem:[#allocation11 + $0xe] sm:$0x1]
    %v180 = vlaneseq
    %v181 = vshrl.u32 %v180, 7
    %v182 = vsub.s32 0, %v181
    %v183 = vrot.slane %v178, %v182
    %v185 = vld [vmem:[#allocation5] sm:$0xff]
    %v186 = vld [vmem:[#allocation5 + $0x8] sm:$0xff]
    %v187 = vld [vmem:[#allocation5 + $0x10] sm:$0xff]
    %v188 = vld [vmem:[#allocation5 + $0x18] sm:$0xff]
    %v189 = vld [vmem:[#allocation5 + $0x20] sm:$0xff]
    %v190 = vld [vmem:[#allocation5 + $0x28] sm:$0xff]
    %v191 = vld [vmem:[#allocation5 + $0x30] sm:$0xff]
    %v192 = vld [vmem:[#allocation5 + $0x38] sm:$0xff]
    %v193 = vld [vmem:[#allocation5 + $0x40] sm:$0xff]
    %v194 = vld [vmem:[#allocation5 + $0x48] sm:$0xff]
    %v195 = vld [vmem:[#allocation5 + $0x50] sm:$0xff]
    %v196 = vld [vmem:[#allocation5 + $0x58] sm:$0xff]
    %v197 = vld [vmem:[#allocation5 + $0x60] sm:$0xff]
    %v198 = vld [vmem:[#allocation5 + $0x68] sm:$0xff]
    %v199 = vld [vmem:[#allocation5 + $0x70] sm:$0xff]
    %v200 = vld [vmem:[#allocation5 + $0x78] sm:$0xff]
    %v201 = vld [vmem:[#allocation5 + $0x80] sm:$0xff]
    %v202 = vld [vmem:[#allocation5 + $0x88] sm:$0xff]
    %v203 = vld [vmem:[#allocation5 + $0x90] sm:$0xff]
    %v204 = vld [vmem:[#allocation5 + $0x98] sm:$0xff]
    %v205 = vld [vmem:[#allocation5 + $0xa0] sm:$0xff]
    %v206 = vld [vmem:[#allocation5 + $0xa8] sm:$0xff]
    %v207 = vld [vmem:[#allocation5 + $0xb0] sm:$0xff]
    %v208 = vld [vmem:[#allocation5 + $0xb8] sm:$0xff]
    %v209 = vld [vmem:[#allocation5 + $0xc0] sm:$0xff]
    %v210 = vld [vmem:[#allocation5 + $0xc8] sm:$0xff]
    %v211 = vld [vmem:[#allocation5 + $0xd0] sm:$0xff]
    %v212 = vld [vmem:[#allocation5 + $0xd8] sm:$0xff]
    %v213 = vld [vmem:[#allocation5 + $0xe0] sm:$0xff]
    %v214 = vld [vmem:[#allocation5 + $0xe8] sm:$0xff]
    %v215 = vld [vmem:[#allocation5 + $0xf0] sm:$0xff]
    %v216 = vld [vmem:[#allocation5 + $0xf8] sm:$0xff]
    %v217 = vld [vmem:[#allocation5 + $0x100] sm:$0xff]
    %v218 = vld [vmem:[#allocation5 + $0x108] sm:$0xff]
    %v219 = vld [vmem:[#allocation5 + $0x110] sm:$0xff]
    %v220 = vld [vmem:[#allocation5 + $0x118] sm:$0xff]
    %v221 = vld [vmem:[#allocation5 + $0x120] sm:$0xff]
    %v222 = vld [vmem:[#allocation5 + $0x128] sm:$0xff]
    %v223 = vld [vmem:[#allocation5 + $0x130] sm:$0xff]
    %v224 = vld [vmem:[#allocation5 + $0x138] sm:$0xff]
    %v225 = vld [vmem:[#allocation5 + $0x140] sm:$0xff]
    %v226 = vld [vmem:[#allocation5 + $0x148] sm:$0xff]
    %v227 = vld [vmem:[#allocation5 + $0x150] sm:$0xff]
    %v228 = vld [vmem:[#allocation5 + $0x158] sm:$0xff]
    %v229 = vld [vmem:[#allocation5 + $0x160] sm:$0xff]
    %v230 = vld [vmem:[#allocation5 + $0x168] sm:$0xff]
    %v231 = vld [vmem:[#allocation5 + $0x170] sm:$0xff]
    %v232 = vld [vmem:[#allocation5 + $0x178] sm:$0xff]
    %v233 = vld [vmem:[#allocation5 + $0x180] sm:$0xff]
    %v234 = vld [vmem:[#allocation5 + $0x188] sm:$0xff]
    %v235 = vld [vmem:[#allocation5 + $0x190] sm:$0xff]
    %v236 = vld [vmem:[#allocation5 + $0x198] sm:$0xff]
    %v237 = vld [vmem:[#allocation5 + $0x1a0] sm:$0xff]
    %v238 = vld [vmem:[#allocation5 + $0x1a8] sm:$0xff]
    %v239 = vld [vmem:[#allocation5 + $0x1b0] sm:$0xff]
    %v240 = vld [vmem:[#allocation5 + $0x1b8] sm:$0xff]
    %v241 = vld [vmem:[#allocation5 + $0x1c0] sm:$0xff]
    %v242 = vld [vmem:[#allocation5 + $0x1c8] sm:$0xff]
    %v243 = vld [vmem:[#allocation5 + $0x1d0] sm:$0xff]
    %v244 = vld [vmem:[#allocation5 + $0x1d8] sm:$0xff]
    %v245 = vld [vmem:[#allocation5 + $0x1e0] sm:$0xff]
    %v246 = vld [vmem:[#allocation5 + $0x1e8] sm:$0xff]
    %v247 = vld [vmem:[#allocation5 + $0x1f0] sm:$0xff]
    %v248 = vld [vmem:[#allocation5 + $0x1f8] sm:$0xff]
    %v249 = vld [vmem:[#allocation5 + $0x200] sm:$0xff]
    %v250 = vld [vmem:[#allocation5 + $0x208] sm:$0xff]
    %v251 = vld [vmem:[#allocation5 + $0x210] sm:$0xff]
    %v252 = vld [vmem:[#allocation5 + $0x218] sm:$0xff]
    %v253 = vld [vmem:[#allocation5 + $0x220] sm:$0xff]
    %v254 = vld [vmem:[#allocation5 + $0x228] sm:$0xff]
    %v255 = vld [vmem:[#allocation5 + $0x230] sm:$0xff]
    %v256 = vld [vmem:[#allocation5 + $0x238] sm:$0xff]
    %v257 = vld [vmem:[#allocation5 + $0x240] sm:$0xff]
    %v258 = vld [vmem:[#allocation5 + $0x248] sm:$0xff]
    %v259 = vld [vmem:[#allocation5 + $0x250] sm:$0xff]
    %v260 = vld [vmem:[#allocation5 + $0x258] sm:$0xff]
    %v261 = vld [vmem:[#allocation5 + $0x260] sm:$0xff]
    %v262 = vld [vmem:[#allocation5 + $0x268] sm:$0xff]
    %v263 = vld [vmem:[#allocation5 + $0x270] sm:$0xff]
    %v264 = vld [vmem:[#allocation5 + $0x278] sm:$0xff]
    %v265 = vld [vmem:[#allocation5 + $0x280] sm:$0xff]
    %v266 = vld [vmem:[#allocation5 + $0x288] sm:$0xff]
    %v267 = vld [vmem:[#allocation5 + $0x290] sm:$0xff]
    %v268 = vld [vmem:[#allocation5 + $0x298] sm:$0xff]
    %v269 = vld [vmem:[#allocation5 + $0x2a0] sm:$0xff]
    %v270 = vld [vmem:[#allocation5 + $0x2a8] sm:$0xff]
    %v271 = vld [vmem:[#allocation5 + $0x2b0] sm:$0xff]
    %v272 = vld [vmem:[#allocation5 + $0x2b8] sm:$0xff]
    %v273 = vld [vmem:[#allocation5 + $0x2c0] sm:$0xff]
    %v274 = vld [vmem:[#allocation5 + $0x2c8] sm:$0xff]
    %v275 = vld [vmem:[#allocation5 + $0x2d0] sm:$0xff]
    %v276 = vld [vmem:[#allocation5 + $0x2d8] sm:$0xff]
    %v277 = vld [vmem:[#allocation5 + $0x2e0] sm:$0xff]
    %v278 = vld [vmem:[#allocation5 + $0x2e8] sm:$0xff]
    %v279 = vld [vmem:[#allocation5 + $0x2f0] sm:$0xff]
    %v280 = vld [vmem:[#allocation5 + $0x2f8] sm:$0xff]
    %v281 = vld [vmem:[#allocation7] sm:$0xff]
    %v282 = vld [vmem:[#allocation7 + $0x8] sm:$0xff]
    %v283 = vld [vmem:[#allocation7 + $0x10] sm:$0xff]
    %v284 = vld [vmem:[#allocation7 + $0x18] sm:$0xff]
    %v285 = vld [vmem:[#allocation7 + $0x20] sm:$0xff]
    %v286 = vld [vmem:[#allocation7 + $0x28] sm:$0xff]
    %v287 = vld [vmem:[#allocation7 + $0x30] sm:$0xff]
    %v288 = vld [vmem:[#allocation7 + $0x38] sm:$0xff]
    %v289 = vld [vmem:[#allocation7 + $0x40] sm:$0xff]
    %v290 = vld [vmem:[#allocation7 + $0x48] sm:$0xff]
    %v291 = vld [vmem:[#allocation7 + $0x50] sm:$0xff]
    %v292 = vld [vmem:[#allocation7 + $0x58] sm:$0xff]
    %v293 = vld [vmem:[#allocation7 + $0x60] sm:$0xff]
    %v294 = vld [vmem:[#allocation7 + $0x68] sm:$0xff]
    %v295 = vld [vmem:[#allocation7 + $0x70] sm:$0xff]
    %v296 = vld [vmem:[#allocation7 + $0x78] sm:$0xff]
    %v297 = vld [vmem:[#allocation7 + $0x80] sm:$0xff]
    %v298 = vld [vmem:[#allocation7 + $0x88] sm:$0xff]
    %v299 = vld [vmem:[#allocation7 + $0x90] sm:$0xff]
    %v300 = vld [vmem:[#allocation7 + $0x98] sm:$0xff]
    %v301 = vld [vmem:[#allocation7 + $0xa0] sm:$0xff]
    %v302 = vld [vmem:[#allocation7 + $0xa8] sm:$0xff]
    %v303 = vld [vmem:[#allocation7 + $0xb0] sm:$0xff]
    %v304 = vld [vmem:[#allocation7 + $0xb8] sm:$0xff]
    %v305 = vld [vmem:[#allocation7 + $0xc0] sm:$0xff]
    %v306 = vld [vmem:[#allocation7 + $0xc8] sm:$0xff]
    %v307 = vld [vmem:[#allocation7 + $0xd0] sm:$0xff]
    %v308 = vld [vmem:[#allocation7 + $0xd8] sm:$0xff]
    %v309 = vld [vmem:[#allocation7 + $0xe0] sm:$0xff]
    %v310 = vld [vmem:[#allocation7 + $0xe8] sm:$0xff]
    %v311 = vld [vmem:[#allocation7 + $0xf0] sm:$0xff]
    %v312 = vld [vmem:[#allocation7 + $0xf8] sm:$0xff]
    %v313 = vld [vmem:[#allocation7 + $0x100] sm:$0xff]
    %v314 = vld [vmem:[#allocation7 + $0x108] sm:$0xff]
    %v315 = vld [vmem:[#allocation7 + $0x110] sm:$0xff]
    %v316 = vld [vmem:[#allocation7 + $0x118] sm:$0xff]
    %v317 = vld [vmem:[#allocation7 + $0x120] sm:$0xff]
    %v318 = vld [vmem:[#allocation7 + $0x128] sm:$0xff]
    %v319 = vld [vmem:[#allocation7 + $0x130] sm:$0xff]
    %v320 = vld [vmem:[#allocation7 + $0x138] sm:$0xff]
    %v321 = vld [vmem:[#allocation7 + $0x140] sm:$0xff]
    %v322 = vld [vmem:[#allocation7 + $0x148] sm:$0xff]
    %v323 = vld [vmem:[#allocation7 + $0x150] sm:$0xff]
    %v324 = vld [vmem:[#allocation7 + $0x158] sm:$0xff]
    %v325 = vld [vmem:[#allocation7 + $0x160] sm:$0xff]
    %v326 = vld [vmem:[#allocation7 + $0x168] sm:$0xff]
    %v327 = vld [vmem:[#allocation7 + $0x170] sm:$0xff]
    %v328 = vld [vmem:[#allocation7 + $0x178] sm:$0xff]
    %v329 = vld [vmem:[#allocation7 + $0x180] sm:$0xff]
    %v330 = vld [vmem:[#allocation7 + $0x188] sm:$0xff]
    %v331 = vld [vmem:[#allocation7 + $0x190] sm:$0xff]
    %v332 = vld [vmem:[#allocation7 + $0x198] sm:$0xff]
    %v333 = vld [vmem:[#allocation7 + $0x1a0] sm:$0xff]
    %v334 = vld [vmem:[#allocation7 + $0x1a8] sm:$0xff]
    %v335 = vld [vmem:[#allocation7 + $0x1b0] sm:$0xff]
    %v336 = vld [vmem:[#allocation7 + $0x1b8] sm:$0xff]
    %v337 = vld [vmem:[#allocation7 + $0x1c0] sm:$0xff]
    %v338 = vld [vmem:[#allocation7 + $0x1c8] sm:$0xff]
    %v339 = vld [vmem:[#allocation7 + $0x1d0] sm:$0xff]
    %v340 = vld [vmem:[#allocation7 + $0x1d8] sm:$0xff]
    %v341 = vld [vmem:[#allocation7 + $0x1e0] sm:$0xff]
    %v342 = vld [vmem:[#allocation7 + $0x1e8] sm:$0xff]
    %v343 = vld [vmem:[#allocation7 + $0x1f0] sm:$0xff]
    %v344 = vld [vmem:[#allocation7 + $0x1f8] sm:$0xff]
    %v345 = vld [vmem:[#allocation7 + $0x200] sm:$0xff]
    %v346 = vld [vmem:[#allocation7 + $0x208] sm:$0xff]
    %v347 = vld [vmem:[#allocation7 + $0x210] sm:$0xff]
    %v348 = vld [vmem:[#allocation7 + $0x218] sm:$0xff]
    %v349 = vld [vmem:[#allocation7 + $0x220] sm:$0xff]
    %v350 = vld [vmem:[#allocation7 + $0x228] sm:$0xff]
    %v351 = vld [vmem:[#allocation7 + $0x230] sm:$0xff]
    %v352 = vld [vmem:[#allocation7 + $0x238] sm:$0xff]
    %v353 = vld [vmem:[#allocation7 + $0x240] sm:$0xff]
    %v354 = vld [vmem:[#allocation7 + $0x248] sm:$0xff]
    %v355 = vld [vmem:[#allocation7 + $0x250] sm:$0xff]
    %v356 = vld [vmem:[#allocation7 + $0x258] sm:$0xff]
    %v357 = vld [vmem:[#allocation7 + $0x260] sm:$0xff]
    %v358 = vld [vmem:[#allocation7 + $0x268] sm:$0xff]
    %v359 = vld [vmem:[#allocation7 + $0x270] sm:$0xff]
    %v360 = vld [vmem:[#allocation7 + $0x278] sm:$0xff]
    %v361 = vld [vmem:[#allocation7 + $0x280] sm:$0xff]
    %v362 = vld [vmem:[#allocation7 + $0x288] sm:$0xff]
    %v363 = vld [vmem:[#allocation7 + $0x290] sm:$0xff]
    %v364 = vld [vmem:[#allocation7 + $0x298] sm:$0xff]
    %v365 = vld [vmem:[#allocation7 + $0x2a0] sm:$0xff]
    %v366 = vld [vmem:[#allocation7 + $0x2a8] sm:$0xff]
    %v367 = vld [vmem:[#allocation7 + $0x2b0] sm:$0xff]
    %v368 = vld [vmem:[#allocation7 + $0x2b8] sm:$0xff]
    %v369 = vld [vmem:[#allocation7 + $0x2c0] sm:$0xff]
    %v370 = vld [vmem:[#allocation7 + $0x2c8] sm:$0xff]
    %v371 = vld [vmem:[#allocation7 + $0x2d0] sm:$0xff]
    %v372 = vld [vmem:[#allocation7 + $0x2d8] sm:$0xff]
    %v373 = vld [vmem:[#allocation7 + $0x2e0] sm:$0xff]
    %v374 = vld [vmem:[#allocation7 + $0x2e8] sm:$0xff]
    %v375 = vld [vmem:[#allocation7 + $0x2f0] sm:$0xff]
    %v376 = vld [vmem:[#allocation7 + $0x2f8] sm:$0xff]
    %v377 = vld [vmem:[#allocation7 + $0x300] sm:$0xff]
    %v378 = vld [vmem:[#allocation7 + $0x308] sm:$0xff]
    %v379 = vld [vmem:[#allocation7 + $0x310] sm:$0xff]
    %v380 = vld [vmem:[#allocation7 + $0x318] sm:$0xff]
    %v381 = vld [vmem:[#allocation7 + $0x320] sm:$0xff]
    %v382 = vld [vmem:[#allocation7 + $0x328] sm:$0xff]
    %v383 = vld [vmem:[#allocation7 + $0x330] sm:$0xff]
    %v384 = vld [vmem:[#allocation7 + $0x338] sm:$0xff]
    %v385 = vld [vmem:[#allocation7 + $0x340] sm:$0xff]
    %v386 = vld [vmem:[#allocation7 + $0x348] sm:$0xff]
    %v387 = vld [vmem:[#allocation7 + $0x350] sm:$0xff]
    %v388 = vld [vmem:[#allocation7 + $0x358] sm:$0xff]
    %v389 = vld [vmem:[#allocation7 + $0x360] sm:$0xff]
    %v390 = vld [vmem:[#allocation7 + $0x368] sm:$0xff]
    %v391 = vld [vmem:[#allocation7 + $0x370] sm:$0xff]
    %v392 = vld [vmem:[#allocation7 + $0x378] sm:$0xff]
    %v393 = vld [vmem:[#allocation7 + $0x380] sm:$0xff]
    %v394 = vld [vmem:[#allocation7 + $0x388] sm:$0xff]
    %v395 = vld [vmem:[#allocation7 + $0x390] sm:$0xff]
    %v396 = vld [vmem:[#allocation7 + $0x398] sm:$0xff]
    %v397 = vld [vmem:[#allocation7 + $0x3a0] sm:$0xff]
    %v398 = vld [vmem:[#allocation7 + $0x3a8] sm:$0xff]
    %v399 = vld [vmem:[#allocation7 + $0x3b0] sm:$0xff]
    %v400 = vld [vmem:[#allocation7 + $0x3b8] sm:$0xff]
    %v401 = vld [vmem:[#allocation7 + $0x3c0] sm:$0xff]
    %v402 = vld [vmem:[#allocation7 + $0x3c8] sm:$0xff]
    %v403 = vld [vmem:[#allocation7 + $0x3d0] sm:$0xff]
    %v404 = vld [vmem:[#allocation7 + $0x3d8] sm:$0xff]
    %v405 = vld [vmem:[#allocation7 + $0x3e0] sm:$0xff]
    %v406 = vld [vmem:[#allocation7 + $0x3e8] sm:$0xff]
    %v407 = vld [vmem:[#allocation7 + $0x3f0] sm:$0xff]
    %v408 = vld [vmem:[#allocation7 + $0x3f8] sm:$0xff]
    %v409 = vld [vmem:[#allocation7 + $0x400] sm:$0xff]
    %v410 = vld [vmem:[#allocation7 + $0x408] sm:$0xff]
    %v411 = vld [vmem:[#allocation7 + $0x410] sm:$0xff]
    %v412 = vld [vmem:[#allocation7 + $0x418] sm:$0xff]
    %v413 = vld [vmem:[#allocation7 + $0x420] sm:$0xff]
    %v414 = vld [vmem:[#allocation7 + $0x428] sm:$0xff]
    %v415 = vld [vmem:[#allocation7 + $0x430] sm:$0xff]
    %v416 = vld [vmem:[#allocation7 + $0x438] sm:$0xff]
    %v417 = vld [vmem:[#allocation7 + $0x440] sm:$0xff]
    %v418 = vld [vmem:[#allocation7 + $0x448] sm:$0xff]
    %v419 = vld [vmem:[#allocation7 + $0x450] sm:$0xff]
    %v420 = vld [vmem:[#allocation7 + $0x458] sm:$0xff]
    %v421 = vld [vmem:[#allocation7 + $0x460] sm:$0xff]
    %v422 = vld [vmem:[#allocation7 + $0x468] sm:$0xff]
    %v423 = vld [vmem:[#allocation7 + $0x470] sm:$0xff]
    %v424 = vld [vmem:[#allocation7 + $0x478] sm:$0xff]
    %v425 = vld [vmem:[#allocation7 + $0x480] sm:$0xff]
    %v426 = vld [vmem:[#allocation7 + $0x488] sm:$0xff]
    %v427 = vld [vmem:[#allocation7 + $0x490] sm:$0xff]
    %v428 = vld [vmem:[#allocation7 + $0x498] sm:$0xff]
    %v429 = vld [vmem:[#allocation7 + $0x4a0] sm:$0xff]
    %v430 = vld [vmem:[#allocation7 + $0x4a8] sm:$0xff]
    %v431 = vld [vmem:[#allocation7 + $0x4b0] sm:$0xff]
    %v432 = vld [vmem:[#allocation7 + $0x4b8] sm:$0xff]
    %v433 = vld [vmem:[#allocation7 + $0x4c0] sm:$0xff]
    %v434 = vld [vmem:[#allocation7 + $0x4c8] sm:$0xff]
    %v435 = vld [vmem:[#allocation7 + $0x4d0] sm:$0xff]
    %v436 = vld [vmem:[#allocation7 + $0x4d8] sm:$0xff]
    %v437 = vld [vmem:[#allocation7 + $0x4e0] sm:$0xff]
    %v438 = vld [vmem:[#allocation7 + $0x4e8] sm:$0xff]
    %v439 = vld [vmem:[#allocation7 + $0x4f0] sm:$0xff]
    %v440 = vld [vmem:[#allocation7 + $0x4f8] sm:$0xff]
    %v441 = vld [vmem:[#allocation7 + $0x500] sm:$0xff]
    %v442 = vld [vmem:[#allocation7 + $0x508] sm:$0xff]
    %v443 = vld [vmem:[#allocation7 + $0x510] sm:$0xff]
    %v444 = vld [vmem:[#allocation7 + $0x518] sm:$0xff]
    %v445 = vld [vmem:[#allocation7 + $0x520] sm:$0xff]
    %v446 = vld [vmem:[#allocation7 + $0x528] sm:$0xff]
    %v447 = vld [vmem:[#allocation7 + $0x530] sm:$0xff]
    %v448 = vld [vmem:[#allocation7 + $0x538] sm:$0xff]
    %v449 = vld [vmem:[#allocation7 + $0x540] sm:$0xff]
    %v450 = vld [vmem:[#allocation7 + $0x548] sm:$0xff]
    %v451 = vld [vmem:[#allocation7 + $0x550] sm:$0xff]
    %v452 = vld [vmem:[#allocation7 + $0x558] sm:$0xff]
    %v453 = vld [vmem:[#allocation7 + $0x560] sm:$0xff]
    %v454 = vld [vmem:[#allocation7 + $0x568] sm:$0xff]
    %v455 = vld [vmem:[#allocation7 + $0x570] sm:$0xff]
    %v456 = vld [vmem:[#allocation7 + $0x578] sm:$0xff]
    %v457 = vld [vmem:[#allocation7 + $0x580] sm:$0xff]
    %v458 = vld [vmem:[#allocation7 + $0x588] sm:$0xff]
    %v459 = vld [vmem:[#allocation7 + $0x590] sm:$0xff]
    %v460 = vld [vmem:[#allocation7 + $0x598] sm:$0xff]
    %v461 = vld [vmem:[#allocation7 + $0x5a0] sm:$0xff]
    %v462 = vld [vmem:[#allocation7 + $0x5a8] sm:$0xff]
    %v463 = vld [vmem:[#allocation7 + $0x5b0] sm:$0xff]
    %v464 = vld [vmem:[#allocation7 + $0x5b8] sm:$0xff]
    %v465 = vld [vmem:[#allocation7 + $0x5c0] sm:$0xff]
    %v466 = vld [vmem:[#allocation7 + $0x5c8] sm:$0xff]
    %v467 = vld [vmem:[#allocation7 + $0x5d0] sm:$0xff]
    %v468 = vld [vmem:[#allocation7 + $0x5d8] sm:$0xff]
    %v469 = vld [vmem:[#allocation7 + $0x5e0] sm:$0xff]
    %v470 = vld [vmem:[#allocation7 + $0x5e8] sm:$0xff]
    %v471 = vld [vmem:[#allocation7 + $0x5f0] sm:$0xff]
    %v472 = vld [vmem:[#allocation7 + $0x5f8] sm:$0xff]
    %v473 = vld [vmem:[#allocation8] sm:$0xff]
    %v474 = vld [vmem:[#allocation8 + $0x8] sm:$0xff]
    %v475 = vld [vmem:[#allocation8 + $0x10] sm:$0xff]
    %v476 = vld [vmem:[#allocation8 + $0x18] sm:$0xff]
    %v477 = vld [vmem:[#allocation8 + $0x20] sm:$0xff]
    %v478 = vld [vmem:[#allocation8 + $0x28] sm:$0xff]
    %v479 = vld [vmem:[#allocation8 + $0x30] sm:$0xff]
    %v480 = vld [vmem:[#allocation8 + $0x38] sm:$0xff]
    %v481 = vld [vmem:[#allocation8 + $0x40] sm:$0xff]
    %v482 = vld [vmem:[#allocation8 + $0x48] sm:$0xff]
    %v483 = vld [vmem:[#allocation8 + $0x50] sm:$0xff]
    %v484 = vld [vmem:[#allocation8 + $0x58] sm:$0xff]
    %v485 = vld [vmem:[#allocation8 + $0x60] sm:$0xff]
    %v486 = vld [vmem:[#allocation8 + $0x68] sm:$0xff]
    %v487 = vld [vmem:[#allocation8 + $0x70] sm:$0xff]
    %v488 = vld [vmem:[#allocation8 + $0x78] sm:$0xff]
    %v489 = vld [vmem:[#allocation8 + $0x80] sm:$0xff]
    %v490 = vld [vmem:[#allocation8 + $0x88] sm:$0xff]
    %v491 = vld [vmem:[#allocation8 + $0x90] sm:$0xff]
    %v492 = vld [vmem:[#allocation8 + $0x98] sm:$0xff]
    %v493 = vld [vmem:[#allocation8 + $0xa0] sm:$0xff]
    %v494 = vld [vmem:[#allocation8 + $0xa8] sm:$0xff]
    %v495 = vld [vmem:[#allocation8 + $0xb0] sm:$0xff]
    %v496 = vld [vmem:[#allocation8 + $0xb8] sm:$0xff]
    %v497 = vld [vmem:[#allocation8 + $0xc0] sm:$0xff]
    %v498 = vld [vmem:[#allocation8 + $0xc8] sm:$0xff]
    %v499 = vld [vmem:[#allocation8 + $0xd0] sm:$0xff]
    %v500 = vld [vmem:[#allocation8 + $0xd8] sm:$0xff]
    %v501 = vld [vmem:[#allocation8 + $0xe0] sm:$0xff]
    %v502 = vld [vmem:[#allocation8 + $0xe8] sm:$0xff]
    %v503 = vld [vmem:[#allocation8 + $0xf0] sm:$0xff]
    %v504 = vld [vmem:[#allocation8 + $0xf8] sm:$0xff]
    %v505 = vld [vmem:[#allocation8 + $0x100] sm:$0xff]
    %v506 = vld [vmem:[#allocation8 + $0x108] sm:$0xff]
    %v507 = vld [vmem:[#allocation8 + $0x110] sm:$0xff]
    %v508 = vld [vmem:[#allocation8 + $0x118] sm:$0xff]
    %v509 = vld [vmem:[#allocation8 + $0x120] sm:$0xff]
    %v510 = vld [vmem:[#allocation8 + $0x128] sm:$0xff]
    %v511 = vld [vmem:[#allocation8 + $0x130] sm:$0xff]
    %v512 = vld [vmem:[#allocation8 + $0x138] sm:$0xff]
    %v513 = vld [vmem:[#allocation8 + $0x140] sm:$0xff]
    %v514 = vld [vmem:[#allocation8 + $0x148] sm:$0xff]
    %v515 = vld [vmem:[#allocation8 + $0x150] sm:$0xff]
    %v516 = vld [vmem:[#allocation8 + $0x158] sm:$0xff]
    %v517 = vld [vmem:[#allocation8 + $0x160] sm:$0xff]
    %v518 = vld [vmem:[#allocation8 + $0x168] sm:$0xff]
    %v519 = vld [vmem:[#allocation8 + $0x170] sm:$0xff]
    %v520 = vld [vmem:[#allocation8 + $0x178] sm:$0xff]
    %v521 = vld [vmem:[#allocation8 + $0x180] sm:$0xff]
    %v522 = vld [vmem:[#allocation8 + $0x188] sm:$0xff]
    %v523 = vld [vmem:[#allocation8 + $0x190] sm:$0xff]
    %v524 = vld [vmem:[#allocation8 + $0x198] sm:$0xff]
    %v525 = vld [vmem:[#allocation8 + $0x1a0] sm:$0xff]
    %v526 = vld [vmem:[#allocation8 + $0x1a8] sm:$0xff]
    %v527 = vld [vmem:[#allocation8 + $0x1b0] sm:$0xff]
    %v528 = vld [vmem:[#allocation8 + $0x1b8] sm:$0xff]
    %v529 = vld [vmem:[#allocation8 + $0x1c0] sm:$0xff]
    %v530 = vld [vmem:[#allocation8 + $0x1c8] sm:$0xff]
    %v531 = vld [vmem:[#allocation8 + $0x1d0] sm:$0xff]
    %v532 = vld [vmem:[#allocation8 + $0x1d8] sm:$0xff]
    %v533 = vld [vmem:[#allocation8 + $0x1e0] sm:$0xff]
    %v534 = vld [vmem:[#allocation8 + $0x1e8] sm:$0xff]
    %v535 = vld [vmem:[#allocation8 + $0x1f0] sm:$0xff]
    %v536 = vld [vmem:[#allocation8 + $0x1f8] sm:$0xff]
    %v537 = vld [vmem:[#allocation2] sm:$0xff]
    %538 = vmatprep.subr.mxu0 %v276
    %539 = vmatpush1.msra.mxu0 %v275
    %540 = vmatprep.subr.mxu0 %v270
    %541 = vmatpush1.msra.mxu0 %v269
    %542 = vmatprep.subr.mxu0 %v264
    %543 = vmatpush1.msra.mxu0 %v263
    %544 = vmatprep.subr.mxu0 %v258
    %545 = vmatpush1.msra.mxu0 %v257
    %546 = vmatprep.subr.mxu0 %v252
    %547 = vmatpush1.msra.mxu0 %v251
    %548 = vmatprep.subr.mxu0 %v246
    %549 = vmatpush1.msra.mxu0 %v245
    %550 = vmatprep.subr.mxu0 %v240
    %551 = vmatpush1.msra.mxu0 %v239
    %552 = vmatprep.subr.mxu0 %v234
    %553 = vmatpush1.msra.mxu0 %v233
    %554 = vmatprep.subr.mxu0 %v228
    %555 = vmatpush1.msra.mxu0 %v227
    %556 = vmatprep.subr.mxu0 %v222
    %557 = vmatpush1.msra.mxu0 %v221
    %558 = vmatprep.subr.mxu0 %v216
    %559 = vmatpush1.msra.mxu0 %v215
    %560 = vmatprep.subr.mxu0 %v210
    %561 = vmatpush1.msra.mxu0 %v209
    %562 = vmatprep.subr.mxu0 %v204
    %563 = vmatpush1.msra.mxu0 %v203
    %564 = vmatprep.subr.mxu0 %v198
    %565 = vmatpush1.msra.mxu0 %v197
    %566 = vmatprep.subr.mxu0 %v192
    %567 = vmatpush1.msra.mxu0 %v191
    %568 = vmatprep.subr.mxu0 %v186
    %569 = vmatpush1.msra.mxu0 %v185
    %570 = vmatprep.subr.mxu0 0.0
    %571 = vmatpush2.msra.mxu0 0.0
    %572 = vmatprep.subr.mxu0 0.0
    %573 = vmatpush2.msra.mxu0 0.0
    %574 = vmatprep.subr.mxu0 0.0
    %575 = vmatpush2.msra.mxu0 0.0
    %576 = vmatprep.subr.mxu0 0.0
    %577 = vmatpush2.msra.mxu0 0.0
    %578 = vmatprep.subr.mxu0 0.0
    %579 = vmatpush2.msra.mxu0 0.0
    %580 = vmatprep.subr.mxu0 0.0
    %581 = vmatpush2.msra.mxu0 0.0
    %582 = vmatprep.subr.mxu0 0.0
    %583 = vmatpush2.msra.mxu0 0.0
    %584 = vmatprep.subr.mxu0 0.0
    %585 = vmatpush2.msra.mxu0 0.0
    %586 = vmatprep.subr.mxu0 0.0
    %587 = vmatpush2.msra.mxu0 0.0
    %588 = vmatprep.subr.mxu0 0.0
    %589 = vmatpush2.msra.mxu0 0.0
    %590 = vmatprep.subr.mxu0 0.0
    %591 = vmatpush2.msra.mxu0 0.0
    %592 = vmatprep.subr.mxu0 0.0
    %593 = vmatpush2.msra.mxu0 0.0
    %594 = vmatprep.subr.mxu0 0.0
    %595 = vmatpush2.msra.mxu0 0.0
    %596 = vmatprep.subr.mxu0 0.0
    %597 = vmatpush2.msra.mxu0 0.0
    %598 = vmatprep.subr.mxu0 0.0
    %599 = vmatpush2.msra.mxu0 0.0
    %600 = vmatprep.subr.mxu0 0.0
    %601 = vmatpush2.msra.mxu0 0.0
    %602 = vmatprep.mubr.f32.mxu0 0.0
    %603 = vmatmul.mubr.f32.gmra.mxu0 %v537
    %v604 = vpop.f32.mrf.mxu0
    %v605 = vadd.f32 %v107, %v604
    %v606 = vpop.f32.mrf.mxu0
    %v607 = vadd.f32 %v111, %v606
    %608 = vdwg.mxu0
    %609 = vmatprep.subr.mxu0 %v278
    %610 = vmatpush1.msra.mxu0 %v277
    %611 = vmatprep.subr.mxu0 %v272
    %612 = vmatpush1.msra.mxu0 %v271
    %613 = vmatprep.subr.mxu0 %v266
    %614 = vmatpush1.msra.mxu0 %v265
    %615 = vmatprep.subr.mxu0 %v260
    %616 = vmatpush1.msra.mxu0 %v259
    %617 = vmatprep.subr.mxu0 %v254
    %618 = vmatpush1.msra.mxu0 %v253
    %619 = vmatprep.subr.mxu0 %v248
    %620 = vmatpush1.msra.mxu0 %v247
    %621 = vmatprep.subr.mxu0 %v242
    %622 = vmatpush1.msra.mxu0 %v241
    %623 = vmatprep.subr.mxu0 %v236
    %624 = vmatpush1.msra.mxu0 %v235
    %625 = vmatprep.subr.mxu0 %v230
    %626 = vmatpush1.msra.mxu0 %v229
    %627 = vmatprep.subr.mxu0 %v224
    %628 = vmatpush1.msra.mxu0 %v223
    %629 = vmatprep.subr.mxu0 %v218
    %630 = vmatpush1.msra.mxu0 %v217
    %631 = vmatprep.subr.mxu0 %v212
    %632 = vmatpush1.msra.mxu0 %v211
    %633 = vmatprep.subr.mxu0 %v206
    %634 = vmatpush1.msra.mxu0 %v205
    %635 = vmatprep.subr.mxu0 %v200
    %636 = vmatpush1.msra.mxu0 %v199
    %637 = vmatprep.subr.mxu0 %v194
    %638 = vmatpush1.msra.mxu0 %v193
    %639 = vmatprep.subr.mxu0 %v188
    %640 = vmatpush1.msra.mxu0 %v187
    %641 = vmatprep.subr.mxu0 0.0
    %642 = vmatpush2.msra.mxu0 0.0
    %643 = vmatprep.subr.mxu0 0.0
    %644 = vmatpush2.msra.mxu0 0.0
    %645 = vmatprep.subr.mxu0 0.0
    %646 = vmatpush2.msra.mxu0 0.0
    %647 = vmatprep.subr.mxu0 0.0
    %648 = vmatpush2.msra.mxu0 0.0
    %649 = vmatprep.subr.mxu0 0.0
    %650 = vmatpush2.msra.mxu0 0.0
    %651 = vmatprep.subr.mxu0 0.0
    %652 = vmatpush2.msra.mxu0 0.0
    %653 = vmatprep.subr.mxu0 0.0
    %654 = vmatpush2.msra.mxu0 0.0
    %655 = vmatprep.subr.mxu0 0.0
    %656 = vmatpush2.msra.mxu0 0.0
    %657 = vmatprep.subr.mxu0 0.0
    %658 = vmatpush2.msra.mxu0 0.0
    %659 = vmatprep.subr.mxu0 0.0
    %660 = vmatpush2.msra.mxu0 0.0
    %661 = vmatprep.subr.mxu0 0.0
    %662 = vmatpush2.msra.mxu0 0.0
    %663 = vmatprep.subr.mxu0 0.0
    %664 = vmatpush2.msra.mxu0 0.0
    %665 = vmatprep.subr.mxu0 0.0
    %666 = vmatpush2.msra.mxu0 0.0
    %667 = vmatprep.subr.mxu0 0.0
    %668 = vmatpush2.msra.mxu0 0.0
    %669 = vmatprep.subr.mxu0 0.0
    %670 = vmatpush2.msra.mxu0 0.0
    %671 = vmatprep.subr.mxu0 0.0
    %672 = vmatpush2.msra.mxu0 0.0
    %673 = vmatprep.mubr.f32.mxu0 0.0
    %674 = vmatmul.mubr.f32.gmra.mxu0 %v537
    %v675 = vpop.f32.mrf.mxu0
    %v676 = vadd.f32 %v115, %v675
    %v677 = vpop.f32.mrf.mxu0
    %v678 = vadd.f32 %v119, %v677
    %679 = vdwg.mxu0
    %680 = vmatprep.subr.mxu0 %v280
    %681 = vmatpush1.msra.mxu0 %v279
    %682 = vmatprep.subr.mxu0 %v274
    %683 = vmatpush1.msra.mxu0 %v273
    %684 = vmatprep.subr.mxu0 %v268
    %685 = vmatpush1.msra.mxu0 %v267
    %686 = vmatprep.subr.mxu0 %v262
    %687 = vmatpush1.msra.mxu0 %v261
    %688 = vmatprep.subr.mxu0 %v256
    %689 = vmatpush1.msra.mxu0 %v255
    %690 = vmatprep.subr.mxu0 %v250
    %691 = vmatpush1.msra.mxu0 %v249
    %692 = vmatprep.subr.mxu0 %v244
    %693 = vmatpush1.msra.mxu0 %v243
    %694 = vmatprep.subr.mxu0 %v238
    %695 = vmatpush1.msra.mxu0 %v237
    %696 = vmatprep.subr.mxu0 %v232
    %697 = vmatpush1.msra.mxu0 %v231
    %698 = vmatprep.subr.mxu0 %v226
    %699 = vmatpush1.msra.mxu0 %v225
    %700 = vmatprep.subr.mxu0 %v220
    %701 = vmatpush1.msra.mxu0 %v219
    %702 = vmatprep.subr.mxu0 %v214
    %703 = vmatpush1.msra.mxu0 %v213
    %704 = vmatprep.subr.mxu0 %v208
    %705 = vmatpush1.msra.mxu0 %v207
    %706 = vmatprep.subr.mxu0 %v202
    %707 = vmatpush1.msra.mxu0 %v201
    %708 = vmatprep.subr.mxu0 %v196
    %709 = vmatpush1.msra.mxu0 %v195
    %710 = vmatprep.subr.mxu0 %v190
    %711 = vmatpush1.msra.mxu0 %v189
    %712 = vmatprep.subr.mxu0 0.0
    %713 = vmatpush2.msra.mxu0 0.0
    %714 = vmatprep.subr.mxu0 0.0
    %715 = vmatpush2.msra.mxu0 0.0
    %716 = vmatprep.subr.mxu0 0.0
    %717 = vmatpush2.msra.mxu0 0.0
    %718 = vmatprep.subr.mxu0 0.0
    %719 = vmatpush2.msra.mxu0 0.0
    %720 = vmatprep.subr.mxu0 0.0
    %721 = vmatpush2.msra.mxu0 0.0
    %722 = vmatprep.subr.mxu0 0.0
    %723 = vmatpush2.msra.mxu0 0.0
    %724 = vmatprep.subr.mxu0 0.0
    %725 = vmatpush2.msra.mxu0 0.0
    %726 = vmatprep.subr.mxu0 0.0
    %727 = vmatpush2.msra.mxu0 0.0
    %728 = vmatprep.subr.mxu0 0.0
    %729 = vmatpush2.msra.mxu0 0.0
    %730 = vmatprep.subr.mxu0 0.0
    %731 = vmatpush2.msra.mxu0 0.0
    %732 = vmatprep.subr.mxu0 0.0
    %733 = vmatpush2.msra.mxu0 0.0
    %734 = vmatprep.subr.mxu0 0.0
    %735 = vmatpush2.msra.mxu0 0.0
    %736 = vmatprep.subr.mxu0 0.0
    %737 = vmatpush2.msra.mxu0 0.0
    %738 = vmatprep.subr.mxu0 0.0
    %739 = vmatpush2.msra.mxu0 0.0
    %740 = vmatprep.subr.mxu0 0.0
    %741 = vmatpush2.msra.mxu0 0.0
    %742 = vmatprep.subr.mxu0 0.0
    %743 = vmatpush2.msra.mxu0 0.0
    %744 = vmatprep.mubr.f32.mxu0 0.0
    %745 = vmatmul.mubr.f32.gmra.mxu0 %v537
    %v746 = vpop.f32.mrf.mxu0
    %v747 = vadd.f32 %v123, %v746
    %v748 = vpop.f32.mrf.mxu0
    %v749 = vadd.f32 %v127, %v748
    %750 = vdwg.mxu0
    %751 = vmatprep.subr.mxu0 %v372
    %752 = vmatpush1.msra.mxu0 %v371
    %753 = vmatprep.subr.mxu0 %v366
    %754 = vmatpush1.msra.mxu0 %v365
    %755 = vmatprep.subr.mxu0 %v360
    %756 = vmatpush1.msra.mxu0 %v359
    %757 = vmatprep.subr.mxu0 %v354
    %758 = vmatpush1.msra.mxu0 %v353
    %759 = vmatprep.subr.mxu0 %v348
    %760 = vmatpush1.msra.mxu0 %v347
    %761 = vmatprep.subr.mxu0 %v342
    %762 = vmatpush1.msra.mxu0 %v341
    %763 = vmatprep.subr.mxu0 %v336
    %764 = vmatpush1.msra.mxu0 %v335
    %765 = vmatprep.subr.mxu0 %v330
    %766 = vmatpush1.msra.mxu0 %v329
    %767 = vmatprep.subr.mxu0 %v324
    %768 = vmatpush1.msra.mxu0 %v323
    %769 = vmatprep.subr.mxu0 %v318
    %770 = vmatpush1.msra.mxu0 %v317
    %771 = vmatprep.subr.mxu0 %v312
    %772 = vmatpush1.msra.mxu0 %v311
    %773 = vmatprep.subr.mxu0 %v306
    %774 = vmatpush1.msra.mxu0 %v305
    %775 = vmatprep.subr.mxu0 %v300
    %776 = vmatpush1.msra.mxu0 %v299
    %777 = vmatprep.subr.mxu0 %v294
    %778 = vmatpush1.msra.mxu0 %v293
    %779 = vmatprep.subr.mxu0 %v288
    %780 = vmatpush1.msra.mxu0 %v287
    %781 = vmatprep.subr.mxu0 %v282
    %782 = vmatpush1.msra.mxu0 %v281
    %783 = vmatprep.subr.mxu0 %v468
    %784 = vmatpush2.msra.mxu0 %v467
    %785 = vmatprep.subr.mxu0 %v462
    %786 = vmatpush2.msra.mxu0 %v461
    %787 = vmatprep.subr.mxu0 %v456
    %788 = vmatpush2.msra.mxu0 %v455
    %789 = vmatprep.subr.mxu0 %v450
    %790 = vmatpush2.msra.mxu0 %v449
    %791 = vmatprep.subr.mxu0 %v444
    %792 = vmatpush2.msra.mxu0 %v443
    %793 = vmatprep.subr.mxu0 %v438
    %794 = vmatpush2.msra.mxu0 %v437
    %795 = vmatprep.subr.mxu0 %v432
    %796 = vmatpush2.msra.mxu0 %v431
    %797 = vmatprep.subr.mxu0 %v426
    %798 = vmatpush2.msra.mxu0 %v425
    %799 = vmatprep.subr.mxu0 %v420
    %800 = vmatpush2.msra.mxu0 %v419
    %801 = vmatprep.subr.mxu0 %v414
    %802 = vmatpush2.msra.mxu0 %v413
    %803 = vmatprep.subr.mxu0 %v408
    %804 = vmatpush2.msra.mxu0 %v407
    %805 = vmatprep.subr.mxu0 %v402
    %806 = vmatpush2.msra.mxu0 %v401
    %807 = vmatprep.subr.mxu0 %v396
    %808 = vmatpush2.msra.mxu0 %v395
    %809 = vmatprep.subr.mxu0 %v390
    %810 = vmatpush2.msra.mxu0 %v389
    %811 = vmatprep.subr.mxu0 %v384
    %812 = vmatpush2.msra.mxu0 %v383
    %813 = vmatprep.subr.mxu0 %v378
    %814 = vmatpush2.msra.mxu0 %v377
    %815 = vmatprep.mubr.f32.mxu0 %v537
    %816 = vmatmul.mubr.f32.gmra.mxu0 %v537
    %v817 = vpop.f32.mrf.mxu0
    %v818 = vadd.f32 %v139, %v817
    %v819 = vpop.f32.mrf.mxu0
    %v820 = vadd.f32 %v143, %v819
    %821 = vdwg.mxu0
    %822 = vmatprep.subr.mxu0 %v374
    %823 = vmatpush1.msra.mxu0 %v373
    %824 = vmatprep.subr.mxu0 %v368
    %825 = vmatpush1.msra.mxu0 %v367
    %826 = vmatprep.subr.mxu0 %v362
    %827 = vmatpush1.msra.mxu0 %v361
    %828 = vmatprep.subr.mxu0 %v356
    %829 = vmatpush1.msra.mxu0 %v355
    %830 = vmatprep.subr.mxu0 %v350
    %831 = vmatpush1.msra.mxu0 %v349
    %832 = vmatprep.subr.mxu0 %v344
    %833 = vmatpush1.msra.mxu0 %v343
    %834 = vmatprep.subr.mxu0 %v338
    %835 = vmatpush1.msra.mxu0 %v337
    %836 = vmatprep.subr.mxu0 %v332
    %837 = vmatpush1.msra.mxu0 %v331
    %838 = vmatprep.subr.mxu0 %v326
    %839 = vmatpush1.msra.mxu0 %v325
    %840 = vmatprep.subr.mxu0 %v320
    %841 = vmatpush1.msra.mxu0 %v319
    %842 = vmatprep.subr.mxu0 %v314
    %843 = vmatpush1.msra.mxu0 %v313
    %844 = vmatprep.subr.mxu0 %v308
    %845 = vmatpush1.msra.mxu0 %v307
    %846 = vmatprep.subr.mxu0 %v302
    %847 = vmatpush1.msra.mxu0 %v301
    %848 = vmatprep.subr.mxu0 %v296
    %849 = vmatpush1.msra.mxu0 %v295
    %850 = vmatprep.subr.mxu0 %v290
    %851 = vmatpush1.msra.mxu0 %v289
    %852 = vmatprep.subr.mxu0 %v284
    %853 = vmatpush1.msra.mxu0 %v283
    %854 = vmatprep.subr.mxu0 %v470
    %855 = vmatpush2.msra.mxu0 %v469
    %856 = vmatprep.subr.mxu0 %v464
    %857 = vmatpush2.msra.mxu0 %v463
    %858 = vmatprep.subr.mxu0 %v458
    %859 = vmatpush2.msra.mxu0 %v457
    %860 = vmatprep.subr.mxu0 %v452
    %861 = vmatpush2.msra.mxu0 %v451
    %862 = vmatprep.subr.mxu0 %v446
    %863 = vmatpush2.msra.mxu0 %v445
    %864 = vmatprep.subr.mxu0 %v440
    %865 = vmatpush2.msra.mxu0 %v439
    %866 = vmatprep.subr.mxu0 %v434
    %867 = vmatpush2.msra.mxu0 %v433
    %868 = vmatprep.subr.mxu0 %v428
    %869 = vmatpush2.msra.mxu0 %v427
    %870 = vmatprep.subr.mxu0 %v422
    %871 = vmatpush2.msra.mxu0 %v421
    %872 = vmatprep.subr.mxu0 %v416
    %873 = vmatpush2.msra.mxu0 %v415
    %874 = vmatprep.subr.mxu0 %v410
    %875 = vmatpush2.msra.mxu0 %v409
    %876 = vmatprep.subr.mxu0 %v404
    %877 = vmatpush2.msra.mxu0 %v403
    %878 = vmatprep.subr.mxu0 %v398
    %879 = vmatpush2.msra.mxu0 %v397
    %880 = vmatprep.subr.mxu0 %v392
    %881 = vmatpush2.msra.mxu0 %v391
    %882 = vmatprep.subr.mxu0 %v386
    %883 = vmatpush2.msra.mxu0 %v385
    %884 = vmatprep.subr.mxu0 %v380
    %885 = vmatpush2.msra.mxu0 %v379
    %886 = vmatprep.mubr.f32.mxu0 %v537
    %887 = vmatmul.mubr.f32.gmra.mxu0 %v537
    %v888 = vpop.f32.mrf.mxu0
    %v889 = vadd.f32 %v147, %v888
    %v890 = vpop.f32.mrf.mxu0
    %v891 = vadd.f32 %v151, %v890
    %892 = vdwg.mxu0
    %893 = vmatprep.subr.mxu0 %v376
    %894 = vmatpush1.msra.mxu0 %v375
    %895 = vmatprep.subr.mxu0 %v370
    %896 = vmatpush1.msra.mxu0 %v369
    %897 = vmatprep.subr.mxu0 %v364
    %898 = vmatpush1.msra.mxu0 %v363
    %899 = vmatprep.subr.mxu0 %v358
    %900 = vmatpush1.msra.mxu0 %v357
    %901 = vmatprep.subr.mxu0 %v352
    %902 = vmatpush1.msra.mxu0 %v351
    %903 = vmatprep.subr.mxu0 %v346
    %904 = vmatpush1.msra.mxu0 %v345
    %905 = vmatprep.subr.mxu0 %v340
    %906 = vmatpush1.msra.mxu0 %v339
    %907 = vmatprep.subr.mxu0 %v334
    %908 = vmatpush1.msra.mxu0 %v333
    %909 = vmatprep.subr.mxu0 %v328
    %910 = vmatpush1.msra.mxu0 %v327
    %911 = vmatprep.subr.mxu0 %v322
    %912 = vmatpush1.msra.mxu0 %v321
    %913 = vmatprep.subr.mxu0 %v316
    %914 = vmatpush1.msra.mxu0 %v315
    %915 = vmatprep.subr.mxu0 %v310
    %916 = vmatpush1.msra.mxu0 %v309
    %917 = vmatprep.subr.mxu0 %v304
    %918 = vmatpush1.msra.mxu0 %v303
    %919 = vmatprep.subr.mxu0 %v298
    %920 = vmatpush1.msra.mxu0 %v297
    %921 = vmatprep.subr.mxu0 %v292
    %922 = vmatpush1.msra.mxu0 %v291
    %923 = vmatprep.subr.mxu0 %v286
    %924 = vmatpush1.msra.mxu0 %v285
    %925 = vmatprep.subr.mxu0 %v472
    %926 = vmatpush2.msra.mxu0 %v471
    %927 = vmatprep.subr.mxu0 %v466
    %928 = vmatpush2.msra.mxu0 %v465
    %929 = vmatprep.subr.mxu0 %v460
    %930 = vmatpush2.msra.mxu0 %v459
    %931 = vmatprep.subr.mxu0 %v454
    %932 = vmatpush2.msra.mxu0 %v453
    %933 = vmatprep.subr.mxu0 %v448
    %934 = vmatpush2.msra.mxu0 %v447
    %935 = vmatprep.subr.mxu0 %v442
    %936 = vmatpush2.msra.mxu0 %v441
    %937 = vmatprep.subr.mxu0 %v436
    %938 = vmatpush2.msra.mxu0 %v435
    %939 = vmatprep.subr.mxu0 %v430
    %940 = vmatpush2.msra.mxu0 %v429
    %941 = vmatprep.subr.mxu0 %v424
    %942 = vmatpush2.msra.mxu0 %v423
    %943 = vmatprep.subr.mxu0 %v418
    %944 = vmatpush2.msra.mxu0 %v417
    %945 = vmatprep.subr.mxu0 %v412
    %946 = vmatpush2.msra.mxu0 %v411
    %947 = vmatprep.subr.mxu0 %v406
    %948 = vmatpush2.msra.mxu0 %v405
    %949 = vmatprep.subr.mxu0 %v400
    %950 = vmatpush2.msra.mxu0 %v399
    %951 = vmatprep.subr.mxu0 %v394
    %952 = vmatpush2.msra.mxu0 %v393
    %953 = vmatprep.subr.mxu0 %v388
    %954 = vmatpush2.msra.mxu0 %v387
    %955 = vmatprep.subr.mxu0 %v382
    %956 = vmatpush2.msra.mxu0 %v381
    %957 = vmatprep.mubr.f32.mxu0 %v537
    %958 = vmatmul.mubr.f32.gmra.mxu0 %v537
    %v959 = vpop.f32.mrf.mxu0
    %v960 = vadd.f32 %v155, %v959
    %v961 = vpop.f32.mrf.mxu0
    %v962 = vadd.f32 %v159, %v961
    %963 = vdwg.mxu0
    %v964 = vadd.f32 %v605, %v818
    %v965 = vxor.u32 %v964, 2147483648
    %v966 = vmul.f32 %v965, 1.442695
    %v967 = vpow.pop %v966
    %v968 = vadd.f32 %v967, 1.0
    %v969 = vrcp.pop %v968
    %v970 = vmul.f32 1.0, %v969
    %v971 = vadd.f32 %v607, %v820
    %v972 = vxor.u32 %v971, 2147483648
    %v973 = vmul.f32 %v972, 1.442695
    %v974 = vpow.pop %v973
    %v975 = vadd.f32 %v974, 1.0
    %v976 = vrcp.pop %v975
    %v977 = vmul.f32 1.0, %v976
    %v978 = vmul.f32 %v970, %v889
    %v979 = vadd.f32 %v676, %v978
    %v980 = vtanh.pop %v979
    %v981 = vsub.f32 1.0, %v977
    %v982 = vmul.f32 %v981, %v980
    %v983 = vmul.f32 %v977, %v537
    %v984 = vadd.f32 %v982, %v983
    %v985 = vadd.f32 %v678, %v891
    %v986 = vxor.u32 %v985, 2147483648
    %v987 = vmul.f32 %v986, 1.442695
    %v988 = vpow.pop %v987
    %v989 = vadd.f32 %v988, 1.0
    %v990 = vrcp.pop %v989
    %v991 = vmul.f32 1.0, %v990
    %v992 = vadd.f32 %v747, %v960
    %v993 = vxor.u32 %v992, 2147483648
    %v994 = vmul.f32 %v993, 1.442695
    %v995 = vpow.pop %v994
    %v996 = vadd.f32 %v995, 1.0
    %v997 = vrcp.pop %v996
    %v998 = vmul.f32 1.0, %v997
    %v999 = vmul.f32 %v991, %v962
    %v1000 = vadd.f32 %v749, %v999
    %v1001 = vtanh.pop %v1000
    %v1002 = vsub.f32 1.0, %v998
    %v1003 = vmul.f32 %v1002, %v1001
    %v1004 = vmul.f32 %v998, %v537
    %v1005 = vadd.f32 %v1003, %v1004
    %1006 = vmatprep.subr.mxu0 %v504
    %1007 = vmatpush1.msra.mxu0 %v503
    %1008 = vmatprep.subr.mxu0 %v502
    %1009 = vmatpush1.msra.mxu0 %v501
    %1010 = vmatprep.subr.mxu0 %v500
    %1011 = vmatpush1.msra.mxu0 %v499
    %1012 = vmatprep.subr.mxu0 %v498
    %1013 = vmatpush1.msra.mxu0 %v497
    %1014 = vmatprep.subr.mxu0 %v496
    %1015 = vmatpush1.msra.mxu0 %v495
    %1016 = vmatprep.subr.mxu0 %v494
    %1017 = vmatpush1.msra.mxu0 %v493
    %1018 = vmatprep.subr.mxu0 %v492
    %1019 = vmatpush1.msra.mxu0 %v491
    %1020 = vmatprep.subr.mxu0 %v490
    %1021 = vmatpush1.msra.mxu0 %v489
    %1022 = vmatprep.subr.mxu0 %v488
    %1023 = vmatpush1.msra.mxu0 %v487
    %1024 = vmatprep.subr.mxu0 %v486
    %1025 = vmatpush1.msra.mxu0 %v485
    %1026 = vmatprep.subr.mxu0 %v484
    %1027 = vmatpush1.msra.mxu0 %v483
    %1028 = vmatprep.subr.mxu0 %v482
    %1029 = vmatpush1.msra.mxu0 %v481
    %1030 = vmatprep.subr.mxu0 %v480
    %1031 = vmatpush1.msra.mxu0 %v479
    %1032 = vmatprep.subr.mxu0 %v478
    %1033 = vmatpush1.msra.mxu0 %v477
    %1034 = vmatprep.subr.mxu0 %v476
    %1035 = vmatpush1.msra.mxu0 %v475
    %1036 = vmatprep.subr.mxu0 %v474
    %1037 = vmatpush1.msra.mxu0 %v473
    %1038 = vmatprep.subr.mxu0 %v536
    %1039 = vmatpush2.msra.mxu0 %v535
    %1040 = vmatprep.subr.mxu0 %v534
    %1041 = vmatpush2.msra.mxu0 %v533
    %1042 = vmatprep.subr.mxu0 %v532
    %1043 = vmatpush2.msra.mxu0 %v531
    %1044 = vmatprep.subr.mxu0 %v530
    %1045 = vmatpush2.msra.mxu0 %v529
    %1046 = vmatprep.subr.mxu0 %v528
    %1047 = vmatpush2.msra.mxu0 %v527
    %1048 = vmatprep.subr.mxu0 %v526
    %1049 = vmatpush2.msra.mxu0 %v525
    %1050 = vmatprep.subr.mxu0 %v524
    %1051 = vmatpush2.msra.mxu0 %v523
    %1052 = vmatprep.subr.mxu0 %v522
    %1053 = vmatpush2.msra.mxu0 %v521
    %1054 = vmatprep.subr.mxu0 %v520
    %1055 = vmatpush2.msra.mxu0 %v519
    %1056 = vmatprep.subr.mxu0 %v518
    %1057 = vmatpush2.msra.mxu0 %v517
    %1058 = vmatprep.subr.mxu0 %v516
    %1059 = vmatpush2.msra.mxu0 %v515
    %1060 = vmatprep.subr.mxu0 %v514
    %1061 = vmatpush2.msra.mxu0 %v513
    %1062 = vmatprep.subr.mxu0 %v512
    %1063 = vmatpush2.msra.mxu0 %v511
    %1064 = vmatprep.subr.mxu0 %v510
    %1065 = vmatpush2.msra.mxu0 %v509
    %1066 = vmatprep.subr.mxu0 %v508
    %1067 = vmatpush2.msra.mxu0 %v507
    %1068 = vmatprep.subr.mxu0 %v506
    %1069 = vmatpush2.msra.mxu0 %v505
    %1070 = vmatprep.mubr.f32.mxu0 %v1005
    %1071 = vmatmul.mubr.f32.gmra.mxu0 %v984
    %v1072 = vpop.f32.mrf.mxu0
    %v1073 = vadd.f32 %v171, %v1072
    %v1074 = vpop.f32.mrf.mxu0
    %v1075 = vadd.f32 %v175, %v1074
    %1076 = vdwg.mxu0
    %v1077 = vmax.f32 %v1073, 0.0
    %1078 = vmatprep.subr.mxu0 %v276
    %1079 = vmatpush1.msra.mxu0 %v275
    %1080 = vmatprep.subr.mxu0 %v270
    %1081 = vmatpush1.msra.mxu0 %v269
    %1082 = vmatprep.subr.mxu0 %v264
    %1083 = vmatpush1.msra.mxu0 %v263
    %1084 = vmatprep.subr.mxu0 %v258
    %1085 = vmatpush1.msra.mxu0 %v257
    %1086 = vmatprep.subr.mxu0 %v252
    %1087 = vmatpush1.msra.mxu0 %v251
    %1088 = vmatprep.subr.mxu0 %v246
    %1089 = vmatpush1.msra.mxu0 %v245
    %1090 = vmatprep.subr.mxu0 %v240
    %1091 = vmatpush1.msra.mxu0 %v239
    %1092 = vmatprep.subr.mxu0 %v234
    %1093 = vmatpush1.msra.mxu0 %v233
    %1094 = vmatprep.subr.mxu0 %v228
    %1095 = vmatpush1.msra.mxu0 %v227
    %1096 = vmatprep.subr.mxu0 %v222
    %1097 = vmatpush1.msra.mxu0 %v221
    %1098 = vmatprep.subr.mxu0 %v216
    %1099 = vmatpush1.msra.mxu0 %v215
    %1100 = vmatprep.subr.mxu0 %v210
    %1101 = vmatpush1.msra.mxu0 %v209
    %1102 = vmatprep.subr.mxu0 %v204
    %1103 = vmatpush1.msra.mxu0 %v203
    %1104 = vmatprep.subr.mxu0 %v198
    %1105 = vmatpush1.msra.mxu0 %v197
    %1106 = vmatprep.subr.mxu0 %v192
    %1107 = vmatpush1.msra.mxu0 %v191
    %1108 = vmatprep.subr.mxu0 %v186
    %1109 = vmatpush1.msra.mxu0 %v185
    %1110 = vmatprep.subr.mxu0 0.0
    %1111 = vmatpush2.msra.mxu0 0.0
    %1112 = vmatprep.subr.mxu0 0.0
    %1113 = vmatpush2.msra.mxu0 0.0
    %1114 = vmatprep.subr.mxu0 0.0
    %1115 = vmatpush2.msra.mxu0 0.0
    %1116 = vmatprep.subr.mxu0 0.0
    %1117 = vmatpush2.msra.mxu0 0.0
    %1118 = vmatprep.subr.mxu0 0.0
    %1119 = vmatpush2.msra.mxu0 0.0
    %1120 = vmatprep.subr.mxu0 0.0
    %1121 = vmatpush2.msra.mxu0 0.0
    %1122 = vmatprep.subr.mxu0 0.0
    %1123 = vmatpush2.msra.mxu0 0.0
    %1124 = vmatprep.subr.mxu0 0.0
    %1125 = vmatpush2.msra.mxu0 0.0
    %1126 = vmatprep.subr.mxu0 0.0
    %1127 = vmatpush2.msra.mxu0 0.0
    %1128 = vmatprep.subr.mxu0 0.0
    %1129 = vmatpush2.msra.mxu0 0.0
    %1130 = vmatprep.subr.mxu0 0.0
    %1131 = vmatpush2.msra.mxu0 0.0
    %1132 = vmatprep.subr.mxu0 0.0
    %1133 = vmatpush2.msra.mxu0 0.0
    %1134 = vmatprep.subr.mxu0 0.0
    %1135 = vmatpush2.msra.mxu0 0.0
    %1136 = vmatprep.subr.mxu0 0.0
    %1137 = vmatpush2.msra.mxu0 0.0
    %1138 = vmatprep.subr.mxu0 0.0
    %1139 = vmatpush2.msra.mxu0 0.0
    %1140 = vmatprep.subr.mxu0 0.0
    %1141 = vmatpush2.msra.mxu0 0.0
    %1142 = vmatprep.mubr.f32.mxu0 0.0
    %1143 = vmatmul.mubr.f32.gmra.mxu0 %v1075
    %v1144 = vpop.f32.mrf.mxu0
    %v1145 = vadd.f32 %v107, %v1144
    %v1146 = vpop.f32.mrf.mxu0
    %v1147 = vadd.f32 %v111, %v1146
    %1148 = vdwg.mxu0
    %1149 = vmatprep.subr.mxu0 %v278
    %1150 = vmatpush1.msra.mxu0 %v277
    %1151 = vmatprep.subr.mxu0 %v272
    %1152 = vmatpush1.msra.mxu0 %v271
    %1153 = vmatprep.subr.mxu0 %v266
    %1154 = vmatpush1.msra.mxu0 %v265
    %1155 = vmatprep.subr.mxu0 %v260
    %1156 = vmatpush1.msra.mxu0 %v259
    %1157 = vmatprep.subr.mxu0 %v254
    %1158 = vmatpush1.msra.mxu0 %v253
    %1159 = vmatprep.subr.mxu0 %v248
    %1160 = vmatpush1.msra.mxu0 %v247
    %1161 = vmatprep.subr.mxu0 %v242
    %1162 = vmatpush1.msra.mxu0 %v241
    %1163 = vmatprep.subr.mxu0 %v236
    %1164 = vmatpush1.msra.mxu0 %v235
    %1165 = vmatprep.subr.mxu0 %v230
    %1166 = vmatpush1.msra.mxu0 %v229
    %1167 = vmatprep.subr.mxu0 %v224
    %1168 = vmatpush1.msra.mxu0 %v223
    %1169 = vmatprep.subr.mxu0 %v218
    %1170 = vmatpush1.msra.mxu0 %v217
    %1171 = vmatprep.subr.mxu0 %v212
    %1172 = vmatpush1.msra.mxu0 %v211
    %1173 = vmatprep.subr.mxu0 %v206
    %1174 = vmatpush1.msra.mxu0 %v205
    %1175 = vmatprep.subr.mxu0 %v200
    %1176 = vmatpush1.msra.mxu0 %v199
    %1177 = vmatprep.subr.mxu0 %v194
    %1178 = vmatpush1.msra.mxu0 %v193
    %1179 = vmatprep.subr.mxu0 %v188
    %1180 = vmatpush1.msra.mxu0 %v187
    %1181 = vmatprep.subr.mxu0 0.0
    %1182 = vmatpush2.msra.mxu0 0.0
    %1183 = vmatprep.subr.mxu0 0.0
    %1184 = vmatpush2.msra.mxu0 0.0
    %1185 = vmatprep.subr.mxu0 0.0
    %1186 = vmatpush2.msra.mxu0 0.0
    %1187 = vmatprep.subr.mxu0 0.0
    %1188 = vmatpush2.msra.mxu0 0.0
    %1189 = vmatprep.subr.mxu0 0.0
    %1190 = vmatpush2.msra.mxu0 0.0
    %1191 = vmatprep.subr.mxu0 0.0
    %1192 = vmatpush2.msra.mxu0 0.0
    %1193 = vmatprep.subr.mxu0 0.0
    %1194 = vmatpush2.msra.mxu0 0.0
    %1195 = vmatprep.subr.mxu0 0.0
    %1196 = vmatpush2.msra.mxu0 0.0
    %1197 = vmatprep.subr.mxu0 0.0
    %1198 = vmatpush2.msra.mxu0 0.0
    %1199 = vmatprep.subr.mxu0 0.0
    %1200 = vmatpush2.msra.mxu0 0.0
    %1201 = vmatprep.subr.mxu0 0.0
    %1202 = vmatpush2.msra.mxu0 0.0
    %1203 = vmatprep.subr.mxu0 0.0
    %1204 = vmatpush2.msra.mxu0 0.0
    %1205 = vmatprep.subr.mxu0 0.0
    %1206 = vmatpush2.msra.mxu0 0.0
    %1207 = vmatprep.subr.mxu0 0.0
    %1208 = vmatpush2.msra.mxu0 0.0
    %1209 = vmatprep.subr.mxu0 0.0
    %1210 = vmatpush2.msra.mxu0 0.0
    %1211 = vmatprep.subr.mxu0 0.0
    %1212 = vmatpush2.msra.mxu0 0.0
    %1213 = vmatprep.mubr.f32.mxu0 0.0
    %1214 = vmatmul.mubr.f32.gmra.mxu0 %v1075
    %v1215 = vpop.f32.mrf.mxu0
    %v1216 = vadd.f32 %v115, %v1215
    %v1217 = vpop.f32.mrf.mxu0
    %v1218 = vadd.f32 %v119, %v1217
    %1219 = vdwg.mxu0
    %1220 = vmatprep.subr.mxu0 %v280
    %1221 = vmatpush1.msra.mxu0 %v279
    %1222 = vmatprep.subr.mxu0 %v274
    %1223 = vmatpush1.msra.mxu0 %v273
    %1224 = vmatprep.subr.mxu0 %v268
    %1225 = vmatpush1.msra.mxu0 %v267
    %1226 = vmatprep.subr.mxu0 %v262
    %1227 = vmatpush1.msra.mxu0 %v261
    %1228 = vmatprep.subr.mxu0 %v256
    %1229 = vmatpush1.msra.mxu0 %v255
    %1230 = vmatprep.subr.mxu0 %v250
    %1231 = vmatpush1.msra.mxu0 %v249
    %1232 = vmatprep.subr.mxu0 %v244
    %1233 = vmatpush1.msra.mxu0 %v243
    %1234 = vmatprep.subr.mxu0 %v238
    %1235 = vmatpush1.msra.mxu0 %v237
    %1236 = vmatprep.subr.mxu0 %v232
    %1237 = vmatpush1.msra.mxu0 %v231
    %1238 = vmatprep.subr.mxu0 %v226
    %1239 = vmatpush1.msra.mxu0 %v225
    %1240 = vmatprep.subr.mxu0 %v220
    %1241 = vmatpush1.msra.mxu0 %v219
    %1242 = vmatprep.subr.mxu0 %v214
    %1243 = vmatpush1.msra.mxu0 %v213
    %1244 = vmatprep.subr.mxu0 %v208
    %1245 = vmatpush1.msra.mxu0 %v207
    %1246 = vmatprep.subr.mxu0 %v202
    %1247 = vmatpush1.msra.mxu0 %v201
    %1248 = vmatprep.subr.mxu0 %v196
    %1249 = vmatpush1.msra.mxu0 %v195
    %1250 = vmatprep.subr.mxu0 %v190
    %1251 = vmatpush1.msra.mxu0 %v189
    %1252 = vmatprep.subr.mxu0 0.0
    %1253 = vmatpush2.msra.mxu0 0.0
    %1254 = vmatprep.subr.mxu0 0.0
    %1255 = vmatpush2.msra.mxu0 0.0
    %1256 = vmatprep.subr.mxu0 0.0
    %1257 = vmatpush2.msra.mxu0 0.0
    %1258 = vmatprep.subr.mxu0 0.0
    %1259 = vmatpush2.msra.mxu0 0.0
    %1260 = vmatprep.subr.mxu0 0.0
    %1261 = vmatpush2.msra.mxu0 0.0
    %1262 = vmatprep.subr.mxu0 0.0
    %1263 = vmatpush2.msra.mxu0 0.0
    %1264 = vmatprep.subr.mxu0 0.0
    %1265 = vmatpush2.msra.mxu0 0.0
    %1266 = vmatprep.subr.mxu0 0.0
    %1267 = vmatpush2.msra.mxu0 0.0
    %1268 = vmatprep.subr.mxu0 0.0
    %1269 = vmatpush2.msra.mxu0 0.0
    %1270 = vmatprep.subr.mxu0 0.0
    %1271 = vmatpush2.msra.mxu0 0.0
    %1272 = vmatprep.subr.mxu0 0.0
    %1273 = vmatpush2.msra.mxu0 0.0
    %1274 = vmatprep.subr.mxu0 0.0
    %1275 = vmatpush2.msra.mxu0 0.0
    %1276 = vmatprep.subr.mxu0 0.0
    %1277 = vmatpush2.msra.mxu0 0.0
    %1278 = vmatprep.subr.mxu0 0.0
    %1279 = vmatpush2.msra.mxu0 0.0
    %1280 = vmatprep.subr.mxu0 0.0
    %1281 = vmatpush2.msra.mxu0 0.0
    %1282 = vmatprep.subr.mxu0 0.0
    %1283 = vmatpush2.msra.mxu0 0.0
    %1284 = vmatprep.mubr.f32.mxu0 0.0
    %1285 = vmatmul.mubr.f32.gmra.mxu0 %v1075
    %v1286 = vpop.f32.mrf.mxu0
    %v1287 = vadd.f32 %v123, %v1286
    %v1288 = vpop.f32.mrf.mxu0
    %v1289 = vadd.f32 %v127, %v1288
    %1290 = vdwg.mxu0
    %1291 = vmatprep.subr.mxu0 %v372
    %1292 = vmatpush1.msra.mxu0 %v371
    %1293 = vmatprep.subr.mxu0 %v366
    %1294 = vmatpush1.msra.mxu0 %v365
    %1295 = vmatprep.subr.mxu0 %v360
    %1296 = vmatpush1.msra.mxu0 %v359
    %1297 = vmatprep.subr.mxu0 %v354
    %1298 = vmatpush1.msra.mxu0 %v353
    %1299 = vmatprep.subr.mxu0 %v348
    %1300 = vmatpush1.msra.mxu0 %v347
    %1301 = vmatprep.subr.mxu0 %v342
    %1302 = vmatpush1.msra.mxu0 %v341
    %1303 = vmatprep.subr.mxu0 %v336
    %1304 = vmatpush1.msra.mxu0 %v335
    %1305 = vmatprep.subr.mxu0 %v330
    %1306 = vmatpush1.msra.mxu0 %v329
    %1307 = vmatprep.subr.mxu0 %v324
    %1308 = vmatpush1.msra.mxu0 %v323
    %1309 = vmatprep.subr.mxu0 %v318
    %1310 = vmatpush1.msra.mxu0 %v317
    %1311 = vmatprep.subr.mxu0 %v312
    %1312 = vmatpush1.msra.mxu0 %v311
    %1313 = vmatprep.subr.mxu0 %v306
    %1314 = vmatpush1.msra.mxu0 %v305
    %1315 = vmatprep.subr.mxu0 %v300
    %1316 = vmatpush1.msra.mxu0 %v299
    %1317 = vmatprep.subr.mxu0 %v294
    %1318 = vmatpush1.msra.mxu0 %v293
    %1319 = vmatprep.subr.mxu0 %v288
    %1320 = vmatpush1.msra.mxu0 %v287
    %1321 = vmatprep.subr.mxu0 %v282
    %1322 = vmatpush1.msra.mxu0 %v281
    %1323 = vmatprep.subr.mxu0 %v468
    %1324 = vmatpush2.msra.mxu0 %v467
    %1325 = vmatprep.subr.mxu0 %v462
    %1326 = vmatpush2.msra.mxu0 %v461
    %1327 = vmatprep.subr.mxu0 %v456
    %1328 = vmatpush2.msra.mxu0 %v455
    %1329 = vmatprep.subr.mxu0 %v450
    %1330 = vmatpush2.msra.mxu0 %v449
    %1331 = vmatprep.subr.mxu0 %v444
    %1332 = vmatpush2.msra.mxu0 %v443
    %1333 = vmatprep.subr.mxu0 %v438
    %1334 = vmatpush2.msra.mxu0 %v437
    %1335 = vmatprep.subr.mxu0 %v432
    %1336 = vmatpush2.msra.mxu0 %v431
    %1337 = vmatprep.subr.mxu0 %v426
    %1338 = vmatpush2.msra.mxu0 %v425
    %1339 = vmatprep.subr.mxu0 %v420
    %1340 = vmatpush2.msra.mxu0 %v419
    %1341 = vmatprep.subr.mxu0 %v414
    %1342 = vmatpush2.msra.mxu0 %v413
    %1343 = vmatprep.subr.mxu0 %v408
    %1344 = vmatpush2.msra.mxu0 %v407
    %1345 = vmatprep.subr.mxu0 %v402
    %1346 = vmatpush2.msra.mxu0 %v401
    %1347 = vmatprep.subr.mxu0 %v396
    %1348 = vmatpush2.msra.mxu0 %v395
    %1349 = vmatprep.subr.mxu0 %v390
    %1350 = vmatpush2.msra.mxu0 %v389
    %1351 = vmatprep.subr.mxu0 %v384
    %1352 = vmatpush2.msra.mxu0 %v383
    %1353 = vmatprep.subr.mxu0 %v378
    %1354 = vmatpush2.msra.mxu0 %v377
    %1355 = vmatprep.mubr.f32.mxu0 %v1005
    %1356 = vmatmul.mubr.f32.gmra.mxu0 %v984
    %v1357 = vpop.f32.mrf.mxu0
    %v1358 = vadd.f32 %v139, %v1357
    %v1359 = vpop.f32.mrf.mxu0
    %v1360 = vadd.f32 %v143, %v1359
    %1361 = vdwg.mxu0
    %1362 = vmatprep.subr.mxu0 %v374
    %1363 = vmatpush1.msra.mxu0 %v373
    %1364 = vmatprep.subr.mxu0 %v368
    %1365 = vmatpush1.msra.mxu0 %v367
    %1366 = vmatprep.subr.mxu0 %v362
    %1367 = vmatpush1.msra.mxu0 %v361
    %1368 = vmatprep.subr.mxu0 %v356
    %1369 = vmatpush1.msra.mxu0 %v355
    %1370 = vmatprep.subr.mxu0 %v350
    %1371 = vmatpush1.msra.mxu0 %v349
    %1372 = vmatprep.subr.mxu0 %v344
    %1373 = vmatpush1.msra.mxu0 %v343
    %1374 = vmatprep.subr.mxu0 %v338
    %1375 = vmatpush1.msra.mxu0 %v337
    %1376 = vmatprep.subr.mxu0 %v332
    %1377 = vmatpush1.msra.mxu0 %v331
    %1378 = vmatprep.subr.mxu0 %v326
    %1379 = vmatpush1.msra.mxu0 %v325
    %1380 = vmatprep.subr.mxu0 %v320
    %1381 = vmatpush1.msra.mxu0 %v319
    %1382 = vmatprep.subr.mxu0 %v314
    %1383 = vmatpush1.msra.mxu0 %v313
    %1384 = vmatprep.subr.mxu0 %v308
    %1385 = vmatpush1.msra.mxu0 %v307
    %1386 = vmatprep.subr.mxu0 %v302
    %1387 = vmatpush1.msra.mxu0 %v301
    %1388 = vmatprep.subr.mxu0 %v296
    %1389 = vmatpush1.msra.mxu0 %v295
    %1390 = vmatprep.subr.mxu0 %v290
    %1391 = vmatpush1.msra.mxu0 %v289
    %1392 = vmatprep.subr.mxu0 %v284
    %1393 = vmatpush1.msra.mxu0 %v283
    %1394 = vmatprep.subr.mxu0 %v470
    %1395 = vmatpush2.msra.mxu0 %v469
    %1396 = vmatprep.subr.mxu0 %v464
    %1397 = vmatpush2.msra.mxu0 %v463
    %1398 = vmatprep.subr.mxu0 %v458
    %1399 = vmatpush2.msra.mxu0 %v457
    %1400 = vmatprep.subr.mxu0 %v452
    %1401 = vmatpush2.msra.mxu0 %v451
    %1402 = vmatprep.subr.mxu0 %v446
    %1403 = vmatpush2.msra.mxu0 %v445
    %1404 = vmatprep.subr.mxu0 %v440
    %1405 = vmatpush2.msra.mxu0 %v439
    %1406 = vmatprep.subr.mxu0 %v434
    %1407 = vmatpush2.msra.mxu0 %v433
    %1408 = vmatprep.subr.mxu0 %v428
    %1409 = vmatpush2.msra.mxu0 %v427
    %1410 = vmatprep.subr.mxu0 %v422
    %1411 = vmatpush2.msra.mxu0 %v421
    %1412 = vmatprep.subr.mxu0 %v416
    %1413 = vmatpush2.msra.mxu0 %v415
    %1414 = vmatprep.subr.mxu0 %v410
    %1415 = vmatpush2.msra.mxu0 %v409
    %1416 = vmatprep.subr.mxu0 %v404
    %1417 = vmatpush2.msra.mxu0 %v403
    %1418 = vmatprep.subr.mxu0 %v398
    %1419 = vmatpush2.msra.mxu0 %v397
    %1420 = vmatprep.subr.mxu0 %v392
    %1421 = vmatpush2.msra.mxu0 %v391
    %1422 = vmatprep.subr.mxu0 %v386
    %1423 = vmatpush2.msra.mxu0 %v385
    %1424 = vmatprep.subr.mxu0 %v380
    %1425 = vmatpush2.msra.mxu0 %v379
    %1426 = vmatprep.mubr.f32.mxu0 %v1005
    %1427 = vmatmul.mubr.f32.gmra.mxu0 %v984
    %v1428 = vpop.f32.mrf.mxu0
    %v1429 = vadd.f32 %v147, %v1428
    %v1430 = vpop.f32.mrf.mxu0
    %v1431 = vadd.f32 %v151, %v1430
    %1432 = vdwg.mxu0
    %1433 = vmatprep.subr.mxu0 %v376
    %1434 = vmatpush1.msra.mxu0 %v375
    %1435 = vmatprep.subr.mxu0 %v370
    %1436 = vmatpush1.msra.mxu0 %v369
    %1437 = vmatprep.subr.mxu0 %v364
    %1438 = vmatpush1.msra.mxu0 %v363
    %1439 = vmatprep.subr.mxu0 %v358
    %1440 = vmatpush1.msra.mxu0 %v357
    %1441 = vmatprep.subr.mxu0 %v352
    %1442 = vmatpush1.msra.mxu0 %v351
    %1443 = vmatprep.subr.mxu0 %v346
    %1444 = vmatpush1.msra.mxu0 %v345
    %1445 = vmatprep.subr.mxu0 %v340
    %1446 = vmatpush1.msra.mxu0 %v339
    %1447 = vmatprep.subr.mxu0 %v334
    %1448 = vmatpush1.msra.mxu0 %v333
    %1449 = vmatprep.subr.mxu0 %v328
    %1450 = vmatpush1.msra.mxu0 %v327
    %1451 = vmatprep.subr.mxu0 %v322
    %1452 = vmatpush1.msra.mxu0 %v321
    %1453 = vmatprep.subr.mxu0 %v316
    %1454 = vmatpush1.msra.mxu0 %v315
    %1455 = vmatprep.subr.mxu0 %v310
    %1456 = vmatpush1.msra.mxu0 %v309
    %1457 = vmatprep.subr.mxu0 %v304
    %1458 = vmatpush1.msra.mxu0 %v303
    %1459 = vmatprep.subr.mxu0 %v298
    %1460 = vmatpush1.msra.mxu0 %v297
    %1461 = vmatprep.subr.mxu0 %v292
    %1462 = vmatpush1.msra.mxu0 %v291
    %1463 = vmatprep.subr.mxu0 %v286
    %1464 = vmatpush1.msra.mxu0 %v285
    %1465 = vmatprep.subr.mxu0 %v472
    %1466 = vmatpush2.msra.mxu0 %v471
    %1467 = vmatprep.subr.mxu0 %v466
    %1468 = vmatpush2.msra.mxu0 %v465
    %1469 = vmatprep.subr.mxu0 %v460
    %1470 = vmatpush2.msra.mxu0 %v459
    %1471 = vmatprep.subr.mxu0 %v454
    %1472 = vmatpush2.msra.mxu0 %v453
    %1473 = vmatprep.subr.mxu0 %v448
    %1474 = vmatpush2.msra.mxu0 %v447
    %1475 = vmatprep.subr.mxu0 %v442
    %1476 = vmatpush2.msra.mxu0 %v441
    %1477 = vmatprep.subr.mxu0 %v436
    %1478 = vmatpush2.msra.mxu0 %v435
    %1479 = vmatprep.subr.mxu0 %v430
    %1480 = vmatpush2.msra.mxu0 %v429
    %1481 = vmatprep.subr.mxu0 %v424
    %1482 = vmatpush2.msra.mxu0 %v423
    %1483 = vmatprep.subr.mxu0 %v418
    %1484 = vmatpush2.msra.mxu0 %v417
    %1485 = vmatprep.subr.mxu0 %v412
    %1486 = vmatpush2.msra.mxu0 %v411
    %1487 = vmatprep.subr.mxu0 %v406
    %1488 = vmatpush2.msra.mxu0 %v405
    %1489 = vmatprep.subr.mxu0 %v400
    %1490 = vmatpush2.msra.mxu0 %v399
    %1491 = vmatprep.subr.mxu0 %v394
    %1492 = vmatpush2.msra.mxu0 %v393
    %1493 = vmatprep.subr.mxu0 %v388
    %1494 = vmatpush2.msra.mxu0 %v387
    %1495 = vmatprep.subr.mxu0 %v382
    %1496 = vmatpush2.msra.mxu0 %v381
    %1497 = vmatprep.mubr.f32.mxu0 %v1005
    %1498 = vmatmul.mubr.f32.gmra.mxu0 %v984
    %v1499 = vpop.f32.mrf.mxu0
    %v1500 = vadd.f32 %v155, %v1499
    %v1501 = vpop.f32.mrf.mxu0
    %v1502 = vadd.f32 %v159, %v1501
    %1503 = vdwg.mxu0
    %v1504 = vadd.f32 %v1145, %v1358
    %v1505 = vxor.u32 %v1504, 2147483648
    %v1506 = vmul.f32 %v1505, 1.442695
    %v1507 = vpow.pop %v1506
    %v1508 = vadd.f32 %v1507, 1.0
    %v1509 = vrcp.pop %v1508
    %v1510 = vmul.f32 1.0, %v1509
    %v1511 = vadd.f32 %v1147, %v1360
    %v1512 = vxor.u32 %v1511, 2147483648
    %v1513 = vmul.f32 %v1512, 1.442695
    %v1514 = vpow.pop %v1513
    %v1515 = vadd.f32 %v1514, 1.0
    %v1516 = vrcp.pop %v1515
    %v1517 = vmul.f32 1.0, %v1516
    %v1518 = vmul.f32 %v1510, %v1429
    %v1519 = vadd.f32 %v1216, %v1518
    %v1520 = vtanh.pop %v1519
    %v1521 = vsub.f32 1.0, %v1517
    %v1522 = vmul.f32 %v1521, %v1520
    %v1523 = vmul.f32 %v1517, %v984
    %v1524 = vadd.f32 %v1522, %v1523
    %v1525 = vadd.f32 %v1218, %v1431
    %v1526 = vxor.u32 %v1525, 2147483648
    %v1527 = vmul.f32 %v1526, 1.442695
    %v1528 = vpow.pop %v1527
    %v1529 = vadd.f32 %v1528, 1.0
    %v1530 = vrcp.pop %v1529
    %v1531 = vmul.f32 1.0, %v1530
    %v1532 = vadd.f32 %v1287, %v1500
    %v1533 = vxor.u32 %v1532, 2147483648
    %v1534 = vmul.f32 %v1533, 1.442695
    %v1535 = vpow.pop %v1534
    %v1536 = vadd.f32 %v1535, 1.0
    %v1537 = vrcp.pop %v1536
    %v1538 = vmul.f32 1.0, %v1537
    %v1539 = vmul.f32 %v1531, %v1502
    %v1540 = vadd.f32 %v1289, %v1539
    %v1541 = vtanh.pop %v1540
    %v1542 = vsub.f32 1.0, %v1538
    %v1543 = vmul.f32 %v1542, %v1541
    %v1544 = vmul.f32 %v1538, %v1005
    %v1545 = vadd.f32 %v1543, %v1544
    %1546 = vmatprep.subr.mxu0 %v504
    %1547 = vmatpush1.msra.mxu0 %v503
    %1548 = vmatprep.subr.mxu0 %v502
    %1549 = vmatpush1.msra.mxu0 %v501
    %1550 = vmatprep.subr.mxu0 %v500
    %1551 = vmatpush1.msra.mxu0 %v499
    %1552 = vmatprep.subr.mxu0 %v498
    %1553 = vmatpush1.msra.mxu0 %v497
    %1554 = vmatprep.subr.mxu0 %v496
    %1555 = vmatpush1.msra.mxu0 %v495
    %1556 = vmatprep.subr.mxu0 %v494
    %1557 = vmatpush1.msra.mxu0 %v493
    %1558 = vmatprep.subr.mxu0 %v492
    %1559 = vmatpush1.msra.mxu0 %v491
    %1560 = vmatprep.subr.mxu0 %v490
    %1561 = vmatpush1.msra.mxu0 %v489
    %1562 = vmatprep.subr.mxu0 %v488
    %1563 = vmatpush1.msra.mxu0 %v487
    %1564 = vmatprep.subr.mxu0 %v486
    %1565 = vmatpush1.msra.mxu0 %v485
    %1566 = vmatprep.subr.mxu0 %v484
    %1567 = vmatpush1.msra.mxu0 %v483
    %1568 = vmatprep.subr.mxu0 %v482
    %1569 = vmatpush1.msra.mxu0 %v481
    %1570 = vmatprep.subr.mxu0 %v480
    %1571 = vmatpush1.msra.mxu0 %v479
    %1572 = vmatprep.subr.mxu0 %v478
    %1573 = vmatpush1.msra.mxu0 %v477
    %1574 = vmatprep.subr.mxu0 %v476
    %1575 = vmatpush1.msra.mxu0 %v475
    %1576 = vmatprep.subr.mxu0 %v474
    %1577 = vmatpush1.msra.mxu0 %v473
    %1578 = vmatprep.subr.mxu0 %v536
    %1579 = vmatpush2.msra.mxu0 %v535
    %1580 = vmatprep.subr.mxu0 %v534
    %1581 = vmatpush2.msra.mxu0 %v533
    %1582 = vmatprep.subr.mxu0 %v532
    %1583 = vmatpush2.msra.mxu0 %v531
    %1584 = vmatprep.subr.mxu0 %v530
    %1585 = vmatpush2.msra.mxu0 %v529
    %1586 = vmatprep.subr.mxu0 %v528
    %1587 = vmatpush2.msra.mxu0 %v527
    %1588 = vmatprep.subr.mxu0 %v526
    %1589 = vmatpush2.msra.mxu0 %v525
    %1590 = vmatprep.subr.mxu0 %v524
    %1591 = vmatpush2.msra.mxu0 %v523
    %1592 = vmatprep.subr.mxu0 %v522
    %1593 = vmatpush2.msra.mxu0 %v521
    %1594 = vmatprep.subr.mxu0 %v520
    %1595 = vmatpush2.msra.mxu0 %v519
    %1596 = vmatprep.subr.mxu0 %v518
    %1597 = vmatpush2.msra.mxu0 %v517
    %1598 = vmatprep.subr.mxu0 %v516
    %1599 = vmatpush2.msra.mxu0 %v515
    %1600 = vmatprep.subr.mxu0 %v514
    %1601 = vmatpush2.msra.mxu0 %v513
    %1602 = vmatprep.subr.mxu0 %v512
    %1603 = vmatpush2.msra.mxu0 %v511
    %1604 = vmatprep.subr.mxu0 %v510
    %1605 = vmatpush2.msra.mxu0 %v509
    %1606 = vmatprep.subr.mxu0 %v508
    %1607 = vmatpush2.msra.mxu0 %v507
    %1608 = vmatprep.subr.mxu0 %v506
    %1609 = vmatpush2.msra.mxu0 %v505
    %1610 = vmatprep.mubr.f32.mxu0 %v1545
    %1611 = vmatmul.mubr.f32.gmra.mxu0 %v1524
    %v1612 = vpop.f32.mrf.mxu0
    %v1613 = vadd.f32 %v171, %v1612
    %v1614 = vpop.f32.mrf.mxu0
    %v1615 = vadd.f32 %v175, %v1614
    %1616 = vdwg.mxu0
    %v1617 = vmax.f32 %v1613, 0.0
    %1618 = vmatprep.subr.mxu0 %v276
    %1619 = vmatpush1.msra.mxu0 %v275
    %1620 = vmatprep.subr.mxu0 %v270
    %1621 = vmatpush1.msra.mxu0 %v269
    %1622 = vmatprep.subr.mxu0 %v264
    %1623 = vmatpush1.msra.mxu0 %v263
    %1624 = vmatprep.subr.mxu0 %v258
    %1625 = vmatpush1.msra.mxu0 %v257
    %1626 = vmatprep.subr.mxu0 %v252
    %1627 = vmatpush1.msra.mxu0 %v251
    %1628 = vmatprep.subr.mxu0 %v246
    %1629 = vmatpush1.msra.mxu0 %v245
    %1630 = vmatprep.subr.mxu0 %v240
    %1631 = vmatpush1.msra.mxu0 %v239
    %1632 = vmatprep.subr.mxu0 %v234
    %1633 = vmatpush1.msra.mxu0 %v233
    %1634 = vmatprep.subr.mxu0 %v228
    %1635 = vmatpush1.msra.mxu0 %v227
    %1636 = vmatprep.subr.mxu0 %v222
    %1637 = vmatpush1.msra.mxu0 %v221
    %1638 = vmatprep.subr.mxu0 %v216
    %1639 = vmatpush1.msra.mxu0 %v215
    %1640 = vmatprep.subr.mxu0 %v210
    %1641 = vmatpush1.msra.mxu0 %v209
    %1642 = vmatprep.subr.mxu0 %v204
    %1643 = vmatpush1.msra.mxu0 %v203
    %1644 = vmatprep.subr.mxu0 %v198
    %1645 = vmatpush1.msra.mxu0 %v197
    %1646 = vmatprep.subr.mxu0 %v192
    %1647 = vmatpush1.msra.mxu0 %v191
    %1648 = vmatprep.subr.mxu0 %v186
    %1649 = vmatpush1.msra.mxu0 %v185
    %1650 = vmatprep.subr.mxu0 0.0
    %1651 = vmatpush2.msra.mxu0 0.0
    %1652 = vmatprep.subr.mxu0 0.0
    %1653 = vmatpush2.msra.mxu0 0.0
    %1654 = vmatprep.subr.mxu0 0.0
    %1655 = vmatpush2.msra.mxu0 0.0
    %1656 = vmatprep.subr.mxu0 0.0
    %1657 = vmatpush2.msra.mxu0 0.0
    %1658 = vmatprep.subr.mxu0 0.0
    %1659 = vmatpush2.msra.mxu0 0.0
    %1660 = vmatprep.subr.mxu0 0.0
    %1661 = vmatpush2.msra.mxu0 0.0
    %1662 = vmatprep.subr.mxu0 0.0
    %1663 = vmatpush2.msra.mxu0 0.0
    %1664 = vmatprep.subr.mxu0 0.0
    %1665 = vmatpush2.msra.mxu0 0.0
    %1666 = vmatprep.subr.mxu0 0.0
    %1667 = vmatpush2.msra.mxu0 0.0
    %1668 = vmatprep.subr.mxu0 0.0
    %1669 = vmatpush2.msra.mxu0 0.0
    %1670 = vmatprep.subr.mxu0 0.0
    %1671 = vmatpush2.msra.mxu0 0.0
    %1672 = vmatprep.subr.mxu0 0.0
    %1673 = vmatpush2.msra.mxu0 0.0
    %1674 = vmatprep.subr.mxu0 0.0
    %1675 = vmatpush2.msra.mxu0 0.0
    %1676 = vmatprep.subr.mxu0 0.0
    %1677 = vmatpush2.msra.mxu0 0.0
    %1678 = vmatprep.subr.mxu0 0.0
    %1679 = vmatpush2.msra.mxu0 0.0
    %1680 = vmatprep.subr.mxu0 0.0
    %1681 = vmatpush2.msra.mxu0 0.0
    %1682 = vmatprep.mubr.f32.mxu0 0.0
    %1683 = vmatmul.mubr.f32.gmra.mxu0 %v1615
    %v1684 = vpop.f32.mrf.mxu0
    %v1685 = vadd.f32 %v107, %v1684
    %v1686 = vpop.f32.mrf.mxu0
    %v1687 = vadd.f32 %v111, %v1686
    %1688 = vdwg.mxu0
    %1689 = vmatprep.subr.mxu0 %v278
    %1690 = vmatpush1.msra.mxu0 %v277
    %1691 = vmatprep.subr.mxu0 %v272
    %1692 = vmatpush1.msra.mxu0 %v271
    %1693 = vmatprep.subr.mxu0 %v266
    %1694 = vmatpush1.msra.mxu0 %v265
    %1695 = vmatprep.subr.mxu0 %v260
    %1696 = vmatpush1.msra.mxu0 %v259
    %1697 = vmatprep.subr.mxu0 %v254
    %1698 = vmatpush1.msra.mxu0 %v253
    %1699 = vmatprep.subr.mxu0 %v248
    %1700 = vmatpush1.msra.mxu0 %v247
    %1701 = vmatprep.subr.mxu0 %v242
    %1702 = vmatpush1.msra.mxu0 %v241
    %1703 = vmatprep.subr.mxu0 %v236
    %1704 = vmatpush1.msra.mxu0 %v235
    %1705 = vmatprep.subr.mxu0 %v230
    %1706 = vmatpush1.msra.mxu0 %v229
    %1707 = vmatprep.subr.mxu0 %v224
    %1708 = vmatpush1.msra.mxu0 %v223
    %1709 = vmatprep.subr.mxu0 %v218
    %1710 = vmatpush1.msra.mxu0 %v217
    %1711 = vmatprep.subr.mxu0 %v212
    %1712 = vmatpush1.msra.mxu0 %v211
    %1713 = vmatprep.subr.mxu0 %v206
    %1714 = vmatpush1.msra.mxu0 %v205
    %1715 = vmatprep.subr.mxu0 %v200
    %1716 = vmatpush1.msra.mxu0 %v199
    %1717 = vmatprep.subr.mxu0 %v194
    %1718 = vmatpush1.msra.mxu0 %v193
    %1719 = vmatprep.subr.mxu0 %v188
    %1720 = vmatpush1.msra.mxu0 %v187
    %1721 = vmatprep.subr.mxu0 0.0
    %1722 = vmatpush2.msra.mxu0 0.0
    %1723 = vmatprep.subr.mxu0 0.0
    %1724 = vmatpush2.msra.mxu0 0.0
    %1725 = vmatprep.subr.mxu0 0.0
    %1726 = vmatpush2.msra.mxu0 0.0
    %1727 = vmatprep.subr.mxu0 0.0
    %1728 = vmatpush2.msra.mxu0 0.0
    %1729 = vmatprep.subr.mxu0 0.0
    %1730 = vmatpush2.msra.mxu0 0.0
    %1731 = vmatprep.subr.mxu0 0.0
    %1732 = vmatpush2.msra.mxu0 0.0
    %1733 = vmatprep.subr.mxu0 0.0
    %1734 = vmatpush2.msra.mxu0 0.0
    %1735 = vmatprep.subr.mxu0 0.0
    %1736 = vmatpush2.msra.mxu0 0.0
    %1737 = vmatprep.subr.mxu0 0.0
    %1738 = vmatpush2.msra.mxu0 0.0
    %1739 = vmatprep.subr.mxu0 0.0
    %1740 = vmatpush2.msra.mxu0 0.0
    %1741 = vmatprep.subr.mxu0 0.0
    %1742 = vmatpush2.msra.mxu0 0.0
    %1743 = vmatprep.subr.mxu0 0.0
    %1744 = vmatpush2.msra.mxu0 0.0
    %1745 = vmatprep.subr.mxu0 0.0
    %1746 = vmatpush2.msra.mxu0 0.0
    %1747 = vmatprep.subr.mxu0 0.0
    %1748 = vmatpush2.msra.mxu0 0.0
    %1749 = vmatprep.subr.mxu0 0.0
    %1750 = vmatpush2.msra.mxu0 0.0
    %1751 = vmatprep.subr.mxu0 0.0
    %1752 = vmatpush2.msra.mxu0 0.0
    %1753 = vmatprep.mubr.f32.mxu0 0.0
    %1754 = vmatmul.mubr.f32.gmra.mxu0 %v1615
    %v1755 = vpop.f32.mrf.mxu0
    %v1756 = vadd.f32 %v115, %v1755
    %v1757 = vpop.f32.mrf.mxu0
    %v1758 = vadd.f32 %v119, %v1757
    %1759 = vdwg.mxu0
    %1760 = vmatprep.subr.mxu0 %v280
    %1761 = vmatpush1.msra.mxu0 %v279
    %1762 = vmatprep.subr.mxu0 %v274
    %1763 = vmatpush1.msra.mxu0 %v273
    %1764 = vmatprep.subr.mxu0 %v268
    %1765 = vmatpush1.msra.mxu0 %v267
    %1766 = vmatprep.subr.mxu0 %v262
    %1767 = vmatpush1.msra.mxu0 %v261
    %1768 = vmatprep.subr.mxu0 %v256
    %1769 = vmatpush1.msra.mxu0 %v255
    %1770 = vmatprep.subr.mxu0 %v250
    %1771 = vmatpush1.msra.mxu0 %v249
    %1772 = vmatprep.subr.mxu0 %v244
    %1773 = vmatpush1.msra.mxu0 %v243
    %1774 = vmatprep.subr.mxu0 %v238
    %1775 = vmatpush1.msra.mxu0 %v237
    %1776 = vmatprep.subr.mxu0 %v232
    %1777 = vmatpush1.msra.mxu0 %v231
    %1778 = vmatprep.subr.mxu0 %v226
    %1779 = vmatpush1.msra.mxu0 %v225
    %1780 = vmatprep.subr.mxu0 %v220
    %1781 = vmatpush1.msra.mxu0 %v219
    %1782 = vmatprep.subr.mxu0 %v214
    %1783 = vmatpush1.msra.mxu0 %v213
    %1784 = vmatprep.subr.mxu0 %v208
    %1785 = vmatpush1.msra.mxu0 %v207
    %1786 = vmatprep.subr.mxu0 %v202
    %1787 = vmatpush1.msra.mxu0 %v201
    %1788 = vmatprep.subr.mxu0 %v196
    %1789 = vmatpush1.msra.mxu0 %v195
    %1790 = vmatprep.subr.mxu0 %v190
    %1791 = vmatpush1.msra.mxu0 %v189
    %1792 = vmatprep.subr.mxu0 0.0
    %1793 = vmatpush2.msra.mxu0 0.0
    %1794 = vmatprep.subr.mxu0 0.0
    %1795 = vmatpush2.msra.mxu0 0.0
    %1796 = vmatprep.subr.mxu0 0.0
    %1797 = vmatpush2.msra.mxu0 0.0
    %1798 = vmatprep.subr.mxu0 0.0
    %1799 = vmatpush2.msra.mxu0 0.0
    %1800 = vmatprep.subr.mxu0 0.0
    %1801 = vmatpush2.msra.mxu0 0.0
    %1802 = vmatprep.subr.mxu0 0.0
    %1803 = vmatpush2.msra.mxu0 0.0
    %1804 = vmatprep.subr.mxu0 0.0
    %1805 = vmatpush2.msra.mxu0 0.0
    %1806 = vmatprep.subr.mxu0 0.0
    %1807 = vmatpush2.msra.mxu0 0.0
    %1808 = vmatprep.subr.mxu0 0.0
    %1809 = vmatpush2.msra.mxu0 0.0
    %1810 = vmatprep.subr.mxu0 0.0
    %1811 = vmatpush2.msra.mxu0 0.0
    %1812 = vmatprep.subr.mxu0 0.0
    %1813 = vmatpush2.msra.mxu0 0.0
    %1814 = vmatprep.subr.mxu0 0.0
    %1815 = vmatpush2.msra.mxu0 0.0
    %1816 = vmatprep.subr.mxu0 0.0
    %1817 = vmatpush2.msra.mxu0 0.0
    %1818 = vmatprep.subr.mxu0 0.0
    %1819 = vmatpush2.msra.mxu0 0.0
    %1820 = vmatprep.subr.mxu0 0.0
    %1821 = vmatpush2.msra.mxu0 0.0
    %1822 = vmatprep.subr.mxu0 0.0
    %1823 = vmatpush2.msra.mxu0 0.0
    %1824 = vmatprep.mubr.f32.mxu0 0.0
    %1825 = vmatmul.mubr.f32.gmra.mxu0 %v1615
    %v1826 = vpop.f32.mrf.mxu0
    %v1827 = vadd.f32 %v123, %v1826
    %v1828 = vpop.f32.mrf.mxu0
    %v1829 = vadd.f32 %v127, %v1828
    %1830 = vdwg.mxu0
    %1831 = vmatprep.subr.mxu0 %v372
    %1832 = vmatpush1.msra.mxu0 %v371
    %1833 = vmatprep.subr.mxu0 %v366
    %1834 = vmatpush1.msra.mxu0 %v365
    %1835 = vmatprep.subr.mxu0 %v360
    %1836 = vmatpush1.msra.mxu0 %v359
    %1837 = vmatprep.subr.mxu0 %v354
    %1838 = vmatpush1.msra.mxu0 %v353
    %1839 = vmatprep.subr.mxu0 %v348
    %1840 = vmatpush1.msra.mxu0 %v347
    %1841 = vmatprep.subr.mxu0 %v342
    %1842 = vmatpush1.msra.mxu0 %v341
    %1843 = vmatprep.subr.mxu0 %v336
    %1844 = vmatpush1.msra.mxu0 %v335
    %1845 = vmatprep.subr.mxu0 %v330
    %1846 = vmatpush1.msra.mxu0 %v329
    %1847 = vmatprep.subr.mxu0 %v324
    %1848 = vmatpush1.msra.mxu0 %v323
    %1849 = vmatprep.subr.mxu0 %v318
    %1850 = vmatpush1.msra.mxu0 %v317
    %1851 = vmatprep.subr.mxu0 %v312
    %1852 = vmatpush1.msra.mxu0 %v311
    %1853 = vmatprep.subr.mxu0 %v306
    %1854 = vmatpush1.msra.mxu0 %v305
    %1855 = vmatprep.subr.mxu0 %v300
    %1856 = vmatpush1.msra.mxu0 %v299
    %1857 = vmatprep.subr.mxu0 %v294
    %1858 = vmatpush1.msra.mxu0 %v293
    %1859 = vmatprep.subr.mxu0 %v288
    %1860 = vmatpush1.msra.mxu0 %v287
    %1861 = vmatprep.subr.mxu0 %v282
    %1862 = vmatpush1.msra.mxu0 %v281
    %1863 = vmatprep.subr.mxu0 %v468
    %1864 = vmatpush2.msra.mxu0 %v467
    %1865 = vmatprep.subr.mxu0 %v462
    %1866 = vmatpush2.msra.mxu0 %v461
    %1867 = vmatprep.subr.mxu0 %v456
    %1868 = vmatpush2.msra.mxu0 %v455
    %1869 = vmatprep.subr.mxu0 %v450
    %1870 = vmatpush2.msra.mxu0 %v449
    %1871 = vmatprep.subr.mxu0 %v444
    %1872 = vmatpush2.msra.mxu0 %v443
    %1873 = vmatprep.subr.mxu0 %v438
    %1874 = vmatpush2.msra.mxu0 %v437
    %1875 = vmatprep.subr.mxu0 %v432
    %1876 = vmatpush2.msra.mxu0 %v431
    %1877 = vmatprep.subr.mxu0 %v426
    %1878 = vmatpush2.msra.mxu0 %v425
    %1879 = vmatprep.subr.mxu0 %v420
    %1880 = vmatpush2.msra.mxu0 %v419
    %1881 = vmatprep.subr.mxu0 %v414
    %1882 = vmatpush2.msra.mxu0 %v413
    %1883 = vmatprep.subr.mxu0 %v408
    %1884 = vmatpush2.msra.mxu0 %v407
    %1885 = vmatprep.subr.mxu0 %v402
    %1886 = vmatpush2.msra.mxu0 %v401
    %1887 = vmatprep.subr.mxu0 %v396
    %1888 = vmatpush2.msra.mxu0 %v395
    %1889 = vmatprep.subr.mxu0 %v390
    %1890 = vmatpush2.msra.mxu0 %v389
    %1891 = vmatprep.subr.mxu0 %v384
    %1892 = vmatpush2.msra.mxu0 %v383
    %1893 = vmatprep.subr.mxu0 %v378
    %1894 = vmatpush2.msra.mxu0 %v377
    %1895 = vmatprep.mubr.f32.mxu0 %v1545
    %1896 = vmatmul.mubr.f32.gmra.mxu0 %v1524
    %v1897 = vpop.f32.mrf.mxu0
    %v1898 = vadd.f32 %v139, %v1897
    %v1899 = vpop.f32.mrf.mxu0
    %v1900 = vadd.f32 %v143, %v1899
    %1901 = vdwg.mxu0
    %1902 = vmatprep.subr.mxu0 %v374
    %1903 = vmatpush1.msra.mxu0 %v373
    %1904 = vmatprep.subr.mxu0 %v368
    %1905 = vmatpush1.msra.mxu0 %v367
    %1906 = vmatprep.subr.mxu0 %v362
    %1907 = vmatpush1.msra.mxu0 %v361
    %1908 = vmatprep.subr.mxu0 %v356
    %1909 = vmatpush1.msra.mxu0 %v355
    %1910 = vmatprep.subr.mxu0 %v350
    %1911 = vmatpush1.msra.mxu0 %v349
    %1912 = vmatprep.subr.mxu0 %v344
    %1913 = vmatpush1.msra.mxu0 %v343
    %1914 = vmatprep.subr.mxu0 %v338
    %1915 = vmatpush1.msra.mxu0 %v337
    %1916 = vmatprep.subr.mxu0 %v332
    %1917 = vmatpush1.msra.mxu0 %v331
    %1918 = vmatprep.subr.mxu0 %v326
    %1919 = vmatpush1.msra.mxu0 %v325
    %1920 = vmatprep.subr.mxu0 %v320
    %1921 = vmatpush1.msra.mxu0 %v319
    %1922 = vmatprep.subr.mxu0 %v314
    %1923 = vmatpush1.msra.mxu0 %v313
    %1924 = vmatprep.subr.mxu0 %v308
    %1925 = vmatpush1.msra.mxu0 %v307
    %1926 = vmatprep.subr.mxu0 %v302
    %1927 = vmatpush1.msra.mxu0 %v301
    %1928 = vmatprep.subr.mxu0 %v296
    %1929 = vmatpush1.msra.mxu0 %v295
    %1930 = vmatprep.subr.mxu0 %v290
    %1931 = vmatpush1.msra.mxu0 %v289
    %1932 = vmatprep.subr.mxu0 %v284
    %1933 = vmatpush1.msra.mxu0 %v283
    %1934 = vmatprep.subr.mxu0 %v470
    %1935 = vmatpush2.msra.mxu0 %v469
    %1936 = vmatprep.subr.mxu0 %v464
    %1937 = vmatpush2.msra.mxu0 %v463
    %1938 = vmatprep.subr.mxu0 %v458
    %1939 = vmatpush2.msra.mxu0 %v457
    %1940 = vmatprep.subr.mxu0 %v452
    %1941 = vmatpush2.msra.mxu0 %v451
    %1942 = vmatprep.subr.mxu0 %v446
    %1943 = vmatpush2.msra.mxu0 %v445
    %1944 = vmatprep.subr.mxu0 %v440
    %1945 = vmatpush2.msra.mxu0 %v439
    %1946 = vmatprep.subr.mxu0 %v434
    %1947 = vmatpush2.msra.mxu0 %v433
    %1948 = vmatprep.subr.mxu0 %v428
    %1949 = vmatpush2.msra.mxu0 %v427
    %1950 = vmatprep.subr.mxu0 %v422
    %1951 = vmatpush2.msra.mxu0 %v421
    %1952 = vmatprep.subr.mxu0 %v416
    %1953 = vmatpush2.msra.mxu0 %v415
    %1954 = vmatprep.subr.mxu0 %v410
    %1955 = vmatpush2.msra.mxu0 %v409
    %1956 = vmatprep.subr.mxu0 %v404
    %1957 = vmatpush2.msra.mxu0 %v403
    %1958 = vmatprep.subr.mxu0 %v398
    %1959 = vmatpush2.msra.mxu0 %v397
    %1960 = vmatprep.subr.mxu0 %v392
    %1961 = vmatpush2.msra.mxu0 %v391
    %1962 = vmatprep.subr.mxu0 %v386
    %1963 = vmatpush2.msra.mxu0 %v385
    %1964 = vmatprep.subr.mxu0 %v380
    %1965 = vmatpush2.msra.mxu0 %v379
    %1966 = vmatprep.mubr.f32.mxu0 %v1545
    %1967 = vmatmul.mubr.f32.gmra.mxu0 %v1524
    %v1968 = vpop.f32.mrf.mxu0
    %v1969 = vadd.f32 %v147, %v1968
    %v1970 = vpop.f32.mrf.mxu0
    %v1971 = vadd.f32 %v151, %v1970
    %1972 = vdwg.mxu0
    %1973 = vmatprep.subr.mxu0 %v376
    %1974 = vmatpush1.msra.mxu0 %v375
    %1975 = vmatprep.subr.mxu0 %v370
    %1976 = vmatpush1.msra.mxu0 %v369
    %1977 = vmatprep.subr.mxu0 %v364
    %1978 = vmatpush1.msra.mxu0 %v363
    %1979 = vmatprep.subr.mxu0 %v358
    %1980 = vmatpush1.msra.mxu0 %v357
    %1981 = vmatprep.subr.mxu0 %v352
    %1982 = vmatpush1.msra.mxu0 %v351
    %1983 = vmatprep.subr.mxu0 %v346
    %1984 = vmatpush1.msra.mxu0 %v345
    %1985 = vmatprep.subr.mxu0 %v340
    %1986 = vmatpush1.msra.mxu0 %v339
    %1987 = vmatprep.subr.mxu0 %v334
    %1988 = vmatpush1.msra.mxu0 %v333
    %1989 = vmatprep.subr.mxu0 %v328
    %1990 = vmatpush1.msra.mxu0 %v327
    %1991 = vmatprep.subr.mxu0 %v322
    %1992 = vmatpush1.msra.mxu0 %v321
    %1993 = vmatprep.subr.mxu0 %v316
    %1994 = vmatpush1.msra.mxu0 %v315
    %1995 = vmatprep.subr.mxu0 %v310
    %1996 = vmatpush1.msra.mxu0 %v309
    %1997 = vmatprep.subr.mxu0 %v304
    %1998 = vmatpush1.msra.mxu0 %v303
    %1999 = vmatprep.subr.mxu0 %v298
    %2000 = vmatpush1.msra.mxu0 %v297
    %2001 = vmatprep.subr.mxu0 %v292
    %2002 = vmatpush1.msra.mxu0 %v291
    %2003 = vmatprep.subr.mxu0 %v286
    %2004 = vmatpush1.msra.mxu0 %v285
    %2005 = vmatprep.subr.mxu0 %v472
    %2006 = vmatpush2.msra.mxu0 %v471
    %2007 = vmatprep.subr.mxu0 %v466
    %2008 = vmatpush2.msra.mxu0 %v465
    %2009 = vmatprep.subr.mxu0 %v460
    %2010 = vmatpush2.msra.mxu0 %v459
    %2011 = vmatprep.subr.mxu0 %v454
    %2012 = vmatpush2.msra.mxu0 %v453
    %2013 = vmatprep.subr.mxu0 %v448
    %2014 = vmatpush2.msra.mxu0 %v447
    %2015 = vmatprep.subr.mxu0 %v442
    %2016 = vmatpush2.msra.mxu0 %v441
    %2017 = vmatprep.subr.mxu0 %v436
    %2018 = vmatpush2.msra.mxu0 %v435
    %2019 = vmatprep.subr.mxu0 %v430
    %2020 = vmatpush2.msra.mxu0 %v429
    %2021 = vmatprep.subr.mxu0 %v424
    %2022 = vmatpush2.msra.mxu0 %v423
    %2023 = vmatprep.subr.mxu0 %v418
    %2024 = vmatpush2.msra.mxu0 %v417
    %2025 = vmatprep.subr.mxu0 %v412
    %2026 = vmatpush2.msra.mxu0 %v411
    %2027 = vmatprep.subr.mxu0 %v406
    %2028 = vmatpush2.msra.mxu0 %v405
    %2029 = vmatprep.subr.mxu0 %v400
    %2030 = vmatpush2.msra.mxu0 %v399
    %2031 = vmatprep.subr.mxu0 %v394
    %2032 = vmatpush2.msra.mxu0 %v393
    %2033 = vmatprep.subr.mxu0 %v388
    %2034 = vmatpush2.msra.mxu0 %v387
    %2035 = vmatprep.subr.mxu0 %v382
    %2036 = vmatpush2.msra.mxu0 %v381
    %2037 = vmatprep.mubr.f32.mxu0 %v1545
    %2038 = vmatmul.mubr.f32.gmra.mxu0 %v1524
    %v2039 = vpop.f32.mrf.mxu0
    %v2040 = vadd.f32 %v155, %v2039
    %v2041 = vpop.f32.mrf.mxu0
    %v2042 = vadd.f32 %v159, %v2041
    %2043 = vdwg.mxu0
    %v2044 = vadd.f32 %v1685, %v1898
    %v2045 = vxor.u32 %v2044, 2147483648
    %v2046 = vmul.f32 %v2045, 1.442695
    %v2047 = vpow.pop %v2046
    %v2048 = vadd.f32 %v2047, 1.0
    %v2049 = vrcp.pop %v2048
    %v2050 = vmul.f32 1.0, %v2049
    %v2051 = vadd.f32 %v1687, %v1900
    %v2052 = vxor.u32 %v2051, 2147483648
    %v2053 = vmul.f32 %v2052, 1.442695
    %v2054 = vpow.pop %v2053
    %v2055 = vadd.f32 %v2054, 1.0
    %v2056 = vrcp.pop %v2055
    %v2057 = vmul.f32 1.0, %v2056
    %v2058 = vmul.f32 %v2050, %v1969
    %v2059 = vadd.f32 %v1756, %v2058
    %v2060 = vtanh.pop %v2059
    %v2061 = vsub.f32 1.0, %v2057
    %v2062 = vmul.f32 %v2061, %v2060
    %v2063 = vmul.f32 %v2057, %v1524
    %v2064 = vadd.f32 %v2062, %v2063
    %v2065 = vadd.f32 %v1758, %v1971
    %v2066 = vxor.u32 %v2065, 2147483648
    %v2067 = vmul.f32 %v2066, 1.442695
    %v2068 = vpow.pop %v2067
    %v2069 = vadd.f32 %v2068, 1.0
    %v2070 = vrcp.pop %v2069
    %v2071 = vmul.f32 1.0, %v2070
    %v2072 = vadd.f32 %v1827, %v2040
    %v2073 = vxor.u32 %v2072, 2147483648
    %v2074 = vmul.f32 %v2073, 1.442695
    %v2075 = vpow.pop %v2074
    %v2076 = vadd.f32 %v2075, 1.0
    %v2077 = vrcp.pop %v2076
    %v2078 = vmul.f32 1.0, %v2077
    %v2079 = vmul.f32 %v2071, %v2042
    %v2080 = vadd.f32 %v1829, %v2079
    %v2081 = vtanh.pop %v2080
    %v2082 = vsub.f32 1.0, %v2078
    %v2083 = vmul.f32 %v2082, %v2081
    %v2084 = vmul.f32 %v2078, %v1545
    %v2085 = vadd.f32 %v2083, %v2084
    %2086 = vmatprep.subr.mxu0 %v504
    %2087 = vmatpush1.msra.mxu0 %v503
    %2088 = vmatprep.subr.mxu0 %v502
    %2089 = vmatpush1.msra.mxu0 %v501
    %2090 = vmatprep.subr.mxu0 %v500
    %2091 = vmatpush1.msra.mxu0 %v499
    %2092 = vmatprep.subr.mxu0 %v498
    %2093 = vmatpush1.msra.mxu0 %v497
    %2094 = vmatprep.subr.mxu0 %v496
    %2095 = vmatpush1.msra.mxu0 %v495
    %2096 = vmatprep.subr.mxu0 %v494
    %2097 = vmatpush1.msra.mxu0 %v493
    %2098 = vmatprep.subr.mxu0 %v492
    %2099 = vmatpush1.msra.mxu0 %v491
    %2100 = vmatprep.subr.mxu0 %v490
    %2101 = vmatpush1.msra.mxu0 %v489
    %2102 = vmatprep.subr.mxu0 %v488
    %2103 = vmatpush1.msra.mxu0 %v487
    %2104 = vmatprep.subr.mxu0 %v486
    %2105 = vmatpush1.msra.mxu0 %v485
    %2106 = vmatprep.subr.mxu0 %v484
    %2107 = vmatpush1.msra.mxu0 %v483
    %2108 = vmatprep.subr.mxu0 %v482
    %2109 = vmatpush1.msra.mxu0 %v481
    %2110 = vmatprep.subr.mxu0 %v480
    %2111 = vmatpush1.msra.mxu0 %v479
    %2112 = vmatprep.subr.mxu0 %v478
    %2113 = vmatpush1.msra.mxu0 %v477
    %2114 = vmatprep.subr.mxu0 %v476
    %2115 = vmatpush1.msra.mxu0 %v475
    %2116 = vmatprep.subr.mxu0 %v474
    %2117 = vmatpush1.msra.mxu0 %v473
    %2118 = vmatprep.subr.mxu0 %v536
    %2119 = vmatpush2.msra.mxu0 %v535
    %2120 = vmatprep.subr.mxu0 %v534
    %2121 = vmatpush2.msra.mxu0 %v533
    %2122 = vmatprep.subr.mxu0 %v532
    %2123 = vmatpush2.msra.mxu0 %v531
    %2124 = vmatprep.subr.mxu0 %v530
    %2125 = vmatpush2.msra.mxu0 %v529
    %2126 = vmatprep.subr.mxu0 %v528
    %2127 = vmatpush2.msra.mxu0 %v527
    %2128 = vmatprep.subr.mxu0 %v526
    %2129 = vmatpush2.msra.mxu0 %v525
    %2130 = vmatprep.subr.mxu0 %v524
    %2131 = vmatpush2.msra.mxu0 %v523
    %2132 = vmatprep.subr.mxu0 %v522
    %2133 = vmatpush2.msra.mxu0 %v521
    %2134 = vmatprep.subr.mxu0 %v520
    %2135 = vmatpush2.msra.mxu0 %v519
    %2136 = vmatprep.subr.mxu0 %v518
    %2137 = vmatpush2.msra.mxu0 %v517
    %2138 = vmatprep.subr.mxu0 %v516
    %2139 = vmatpush2.msra.mxu0 %v515
    %2140 = vmatprep.subr.mxu0 %v514
    %2141 = vmatpush2.msra.mxu0 %v513
    %2142 = vmatprep.subr.mxu0 %v512
    %2143 = vmatpush2.msra.mxu0 %v511
    %2144 = vmatprep.subr.mxu0 %v510
    %2145 = vmatpush2.msra.mxu0 %v509
    %2146 = vmatprep.subr.mxu0 %v508
    %2147 = vmatpush2.msra.mxu0 %v507
    %2148 = vmatprep.subr.mxu0 %v506
    %2149 = vmatpush2.msra.mxu0 %v505
    %2150 = vmatprep.mubr.f32.mxu0 %v2085
    %2151 = vmatmul.mubr.f32.gmra.mxu0 %v2064
    %v2152 = vpop.f32.mrf.mxu0
    %v2153 = vadd.f32 %v171, %v2152
    %v2154 = vpop.f32.mrf.mxu0
    %v2155 = vadd.f32 %v175, %v2154
    %2156 = vdwg.mxu0
    %v2157 = vmax.f32 %v2153, 0.0
    %2158 = vmatprep.subr.mxu0 %v276
    %2159 = vmatpush1.msra.mxu0 %v275
    %2160 = vmatprep.subr.mxu0 %v270
    %2161 = vmatpush1.msra.mxu0 %v269
    %2162 = vmatprep.subr.mxu0 %v264
    %2163 = vmatpush1.msra.mxu0 %v263
    %2164 = vmatprep.subr.mxu0 %v258
    %2165 = vmatpush1.msra.mxu0 %v257
    %2166 = vmatprep.subr.mxu0 %v252
    %2167 = vmatpush1.msra.mxu0 %v251
    %2168 = vmatprep.subr.mxu0 %v246
    %2169 = vmatpush1.msra.mxu0 %v245
    %2170 = vmatprep.subr.mxu0 %v240
    %2171 = vmatpush1.msra.mxu0 %v239
    %2172 = vmatprep.subr.mxu0 %v234
    %2173 = vmatpush1.msra.mxu0 %v233
    %2174 = vmatprep.subr.mxu0 %v228
    %2175 = vmatpush1.msra.mxu0 %v227
    %2176 = vmatprep.subr.mxu0 %v222
    %2177 = vmatpush1.msra.mxu0 %v221
    %2178 = vmatprep.subr.mxu0 %v216
    %2179 = vmatpush1.msra.mxu0 %v215
    %2180 = vmatprep.subr.mxu0 %v210
    %2181 = vmatpush1.msra.mxu0 %v209
    %2182 = vmatprep.subr.mxu0 %v204
    %2183 = vmatpush1.msra.mxu0 %v203
    %2184 = vmatprep.subr.mxu0 %v198
    %2185 = vmatpush1.msra.mxu0 %v197
    %2186 = vmatprep.subr.mxu0 %v192
    %2187 = vmatpush1.msra.mxu0 %v191
    %2188 = vmatprep.subr.mxu0 %v186
    %2189 = vmatpush1.msra.mxu0 %v185
    %2190 = vmatprep.subr.mxu0 0.0
    %2191 = vmatpush2.msra.mxu0 0.0
    %2192 = vmatprep.subr.mxu0 0.0
    %2193 = vmatpush2.msra.mxu0 0.0
    %2194 = vmatprep.subr.mxu0 0.0
    %2195 = vmatpush2.msra.mxu0 0.0
    %2196 = vmatprep.subr.mxu0 0.0
    %2197 = vmatpush2.msra.mxu0 0.0
    %2198 = vmatprep.subr.mxu0 0.0
    %2199 = vmatpush2.msra.mxu0 0.0
    %2200 = vmatprep.subr.mxu0 0.0
    %2201 = vmatpush2.msra.mxu0 0.0
    %2202 = vmatprep.subr.mxu0 0.0
    %2203 = vmatpush2.msra.mxu0 0.0
    %2204 = vmatprep.subr.mxu0 0.0
    %2205 = vmatpush2.msra.mxu0 0.0
    %2206 = vmatprep.subr.mxu0 0.0
    %2207 = vmatpush2.msra.mxu0 0.0
    %2208 = vmatprep.subr.mxu0 0.0
    %2209 = vmatpush2.msra.mxu0 0.0
    %2210 = vmatprep.subr.mxu0 0.0
    %2211 = vmatpush2.msra.mxu0 0.0
    %2212 = vmatprep.subr.mxu0 0.0
    %2213 = vmatpush2.msra.mxu0 0.0
    %2214 = vmatprep.subr.mxu0 0.0
    %2215 = vmatpush2.msra.mxu0 0.0
    %2216 = vmatprep.subr.mxu0 0.0
    %2217 = vmatpush2.msra.mxu0 0.0
    %2218 = vmatprep.subr.mxu0 0.0
    %2219 = vmatpush2.msra.mxu0 0.0
    %2220 = vmatprep.subr.mxu0 0.0
    %2221 = vmatpush2.msra.mxu0 0.0
    %2222 = vmatprep.mubr.f32.mxu0 0.0
    %2223 = vmatmul.mubr.f32.gmra.mxu0 %v2155
    %v2224 = vpop.f32.mrf.mxu0
    %v2225 = vadd.f32 %v107, %v2224
    %v2226 = vpop.f32.mrf.mxu0
    %v2227 = vadd.f32 %v111, %v2226
    %2228 = vdwg.mxu0
    %2229 = vmatprep.subr.mxu0 %v278
    %2230 = vmatpush1.msra.mxu0 %v277
    %2231 = vmatprep.subr.mxu0 %v272
    %2232 = vmatpush1.msra.mxu0 %v271
    %2233 = vmatprep.subr.mxu0 %v266
    %2234 = vmatpush1.msra.mxu0 %v265
    %2235 = vmatprep.subr.mxu0 %v260
    %2236 = vmatpush1.msra.mxu0 %v259
    %2237 = vmatprep.subr.mxu0 %v254
    %2238 = vmatpush1.msra.mxu0 %v253
    %2239 = vmatprep.subr.mxu0 %v248
    %2240 = vmatpush1.msra.mxu0 %v247
    %2241 = vmatprep.subr.mxu0 %v242
    %2242 = vmatpush1.msra.mxu0 %v241
    %2243 = vmatprep.subr.mxu0 %v236
    %2244 = vmatpush1.msra.mxu0 %v235
    %2245 = vmatprep.subr.mxu0 %v230
    %2246 = vmatpush1.msra.mxu0 %v229
    %2247 = vmatprep.subr.mxu0 %v224
    %2248 = vmatpush1.msra.mxu0 %v223
    %2249 = vmatprep.subr.mxu0 %v218
    %2250 = vmatpush1.msra.mxu0 %v217
    %2251 = vmatprep.subr.mxu0 %v212
    %2252 = vmatpush1.msra.mxu0 %v211
    %2253 = vmatprep.subr.mxu0 %v206
    %2254 = vmatpush1.msra.mxu0 %v205
    %2255 = vmatprep.subr.mxu0 %v200
    %2256 = vmatpush1.msra.mxu0 %v199
    %2257 = vmatprep.subr.mxu0 %v194
    %2258 = vmatpush1.msra.mxu0 %v193
    %2259 = vmatprep.subr.mxu0 %v188
    %2260 = vmatpush1.msra.mxu0 %v187
    %2261 = vmatprep.subr.mxu0 0.0
    %2262 = vmatpush2.msra.mxu0 0.0
    %2263 = vmatprep.subr.mxu0 0.0
    %2264 = vmatpush2.msra.mxu0 0.0
    %2265 = vmatprep.subr.mxu0 0.0
    %2266 = vmatpush2.msra.mxu0 0.0
    %2267 = vmatprep.subr.mxu0 0.0
    %2268 = vmatpush2.msra.mxu0 0.0
    %2269 = vmatprep.subr.mxu0 0.0
    %2270 = vmatpush2.msra.mxu0 0.0
    %2271 = vmatprep.subr.mxu0 0.0
    %2272 = vmatpush2.msra.mxu0 0.0
    %2273 = vmatprep.subr.mxu0 0.0
    %2274 = vmatpush2.msra.mxu0 0.0
    %2275 = vmatprep.subr.mxu0 0.0
    %2276 = vmatpush2.msra.mxu0 0.0
    %2277 = vmatprep.subr.mxu0 0.0
    %2278 = vmatpush2.msra.mxu0 0.0
    %2279 = vmatprep.subr.mxu0 0.0
    %2280 = vmatpush2.msra.mxu0 0.0
    %2281 = vmatprep.subr.mxu0 0.0
    %2282 = vmatpush2.msra.mxu0 0.0
    %2283 = vmatprep.subr.mxu0 0.0
    %2284 = vmatpush2.msra.mxu0 0.0
    %2285 = vmatprep.subr.mxu0 0.0
    %2286 = vmatpush2.msra.mxu0 0.0
    %2287 = vmatprep.subr.mxu0 0.0
    %2288 = vmatpush2.msra.mxu0 0.0
    %2289 = vmatprep.subr.mxu0 0.0
    %2290 = vmatpush2.msra.mxu0 0.0
    %2291 = vmatprep.subr.mxu0 0.0
    %2292 = vmatpush2.msra.mxu0 0.0
    %2293 = vmatprep.mubr.f32.mxu0 0.0
    %2294 = vmatmul.mubr.f32.gmra.mxu0 %v2155
    %v2295 = vpop.f32.mrf.mxu0
    %v2296 = vadd.f32 %v115, %v2295
    %v2297 = vpop.f32.mrf.mxu0
    %v2298 = vadd.f32 %v119, %v2297
    %2299 = vdwg.mxu0
    %2300 = vmatprep.subr.mxu0 %v280
    %2301 = vmatpush1.msra.mxu0 %v279
    %2302 = vmatprep.subr.mxu0 %v274
    %2303 = vmatpush1.msra.mxu0 %v273
    %2304 = vmatprep.subr.mxu0 %v268
    %2305 = vmatpush1.msra.mxu0 %v267
    %2306 = vmatprep.subr.mxu0 %v262
    %2307 = vmatpush1.msra.mxu0 %v261
    %2308 = vmatprep.subr.mxu0 %v256
    %2309 = vmatpush1.msra.mxu0 %v255
    %2310 = vmatprep.subr.mxu0 %v250
    %2311 = vmatpush1.msra.mxu0 %v249
    %2312 = vmatprep.subr.mxu0 %v244
    %2313 = vmatpush1.msra.mxu0 %v243
    %2314 = vmatprep.subr.mxu0 %v238
    %2315 = vmatpush1.msra.mxu0 %v237
    %2316 = vmatprep.subr.mxu0 %v232
    %2317 = vmatpush1.msra.mxu0 %v231
    %2318 = vmatprep.subr.mxu0 %v226
    %2319 = vmatpush1.msra.mxu0 %v225
    %2320 = vmatprep.subr.mxu0 %v220
    %2321 = vmatpush1.msra.mxu0 %v219
    %2322 = vmatprep.subr.mxu0 %v214
    %2323 = vmatpush1.msra.mxu0 %v213
    %2324 = vmatprep.subr.mxu0 %v208
    %2325 = vmatpush1.msra.mxu0 %v207
    %2326 = vmatprep.subr.mxu0 %v202
    %2327 = vmatpush1.msra.mxu0 %v201
    %2328 = vmatprep.subr.mxu0 %v196
    %2329 = vmatpush1.msra.mxu0 %v195
    %2330 = vmatprep.subr.mxu0 %v190
    %2331 = vmatpush1.msra.mxu0 %v189
    %2332 = vmatprep.subr.mxu0 0.0
    %2333 = vmatpush2.msra.mxu0 0.0
    %2334 = vmatprep.subr.mxu0 0.0
    %2335 = vmatpush2.msra.mxu0 0.0
    %2336 = vmatprep.subr.mxu0 0.0
    %2337 = vmatpush2.msra.mxu0 0.0
    %2338 = vmatprep.subr.mxu0 0.0
    %2339 = vmatpush2.msra.mxu0 0.0
    %2340 = vmatprep.subr.mxu0 0.0
    %2341 = vmatpush2.msra.mxu0 0.0
    %2342 = vmatprep.subr.mxu0 0.0
    %2343 = vmatpush2.msra.mxu0 0.0
    %2344 = vmatprep.subr.mxu0 0.0
    %2345 = vmatpush2.msra.mxu0 0.0
    %2346 = vmatprep.subr.mxu0 0.0
    %2347 = vmatpush2.msra.mxu0 0.0
    %2348 = vmatprep.subr.mxu0 0.0
    %2349 = vmatpush2.msra.mxu0 0.0
    %2350 = vmatprep.subr.mxu0 0.0
    %2351 = vmatpush2.msra.mxu0 0.0
    %2352 = vmatprep.subr.mxu0 0.0
    %2353 = vmatpush2.msra.mxu0 0.0
    %2354 = vmatprep.subr.mxu0 0.0
    %2355 = vmatpush2.msra.mxu0 0.0
    %2356 = vmatprep.subr.mxu0 0.0
    %2357 = vmatpush2.msra.mxu0 0.0
    %2358 = vmatprep.subr.mxu0 0.0
    %2359 = vmatpush2.msra.mxu0 0.0
    %2360 = vmatprep.subr.mxu0 0.0
    %2361 = vmatpush2.msra.mxu0 0.0
    %2362 = vmatprep.subr.mxu0 0.0
    %2363 = vmatpush2.msra.mxu0 0.0
    %2364 = vmatprep.mubr.f32.mxu0 0.0
    %2365 = vmatmul.mubr.f32.gmra.mxu0 %v2155
    %v2366 = vpop.f32.mrf.mxu0
    %v2367 = vadd.f32 %v123, %v2366
    %v2368 = vpop.f32.mrf.mxu0
    %v2369 = vadd.f32 %v127, %v2368
    %2370 = vdwg.mxu0
    %2371 = vmatprep.subr.mxu0 %v372
    %2372 = vmatpush1.msra.mxu0 %v371
    %2373 = vmatprep.subr.mxu0 %v366
    %2374 = vmatpush1.msra.mxu0 %v365
    %2375 = vmatprep.subr.mxu0 %v360
    %2376 = vmatpush1.msra.mxu0 %v359
    %2377 = vmatprep.subr.mxu0 %v354
    %2378 = vmatpush1.msra.mxu0 %v353
    %2379 = vmatprep.subr.mxu0 %v348
    %2380 = vmatpush1.msra.mxu0 %v347
    %2381 = vmatprep.subr.mxu0 %v342
    %2382 = vmatpush1.msra.mxu0 %v341
    %2383 = vmatprep.subr.mxu0 %v336
    %2384 = vmatpush1.msra.mxu0 %v335
    %2385 = vmatprep.subr.mxu0 %v330
    %2386 = vmatpush1.msra.mxu0 %v329
    %2387 = vmatprep.subr.mxu0 %v324
    %2388 = vmatpush1.msra.mxu0 %v323
    %2389 = vmatprep.subr.mxu0 %v318
    %2390 = vmatpush1.msra.mxu0 %v317
    %2391 = vmatprep.subr.mxu0 %v312
    %2392 = vmatpush1.msra.mxu0 %v311
    %2393 = vmatprep.subr.mxu0 %v306
    %2394 = vmatpush1.msra.mxu0 %v305
    %2395 = vmatprep.subr.mxu0 %v300
    %2396 = vmatpush1.msra.mxu0 %v299
    %2397 = vmatprep.subr.mxu0 %v294
    %2398 = vmatpush1.msra.mxu0 %v293
    %2399 = vmatprep.subr.mxu0 %v288
    %2400 = vmatpush1.msra.mxu0 %v287
    %2401 = vmatprep.subr.mxu0 %v282
    %2402 = vmatpush1.msra.mxu0 %v281
    %2403 = vmatprep.subr.mxu0 %v468
    %2404 = vmatpush2.msra.mxu0 %v467
    %2405 = vmatprep.subr.mxu0 %v462
    %2406 = vmatpush2.msra.mxu0 %v461
    %2407 = vmatprep.subr.mxu0 %v456
    %2408 = vmatpush2.msra.mxu0 %v455
    %2409 = vmatprep.subr.mxu0 %v450
    %2410 = vmatpush2.msra.mxu0 %v449
    %2411 = vmatprep.subr.mxu0 %v444
    %2412 = vmatpush2.msra.mxu0 %v443
    %2413 = vmatprep.subr.mxu0 %v438
    %2414 = vmatpush2.msra.mxu0 %v437
    %2415 = vmatprep.subr.mxu0 %v432
    %2416 = vmatpush2.msra.mxu0 %v431
    %2417 = vmatprep.subr.mxu0 %v426
    %2418 = vmatpush2.msra.mxu0 %v425
    %2419 = vmatprep.subr.mxu0 %v420
    %2420 = vmatpush2.msra.mxu0 %v419
    %2421 = vmatprep.subr.mxu0 %v414
    %2422 = vmatpush2.msra.mxu0 %v413
    %2423 = vmatprep.subr.mxu0 %v408
    %2424 = vmatpush2.msra.mxu0 %v407
    %2425 = vmatprep.subr.mxu0 %v402
    %2426 = vmatpush2.msra.mxu0 %v401
    %2427 = vmatprep.subr.mxu0 %v396
    %2428 = vmatpush2.msra.mxu0 %v395
    %2429 = vmatprep.subr.mxu0 %v390
    %2430 = vmatpush2.msra.mxu0 %v389
    %2431 = vmatprep.subr.mxu0 %v384
    %2432 = vmatpush2.msra.mxu0 %v383
    %2433 = vmatprep.subr.mxu0 %v378
    %2434 = vmatpush2.msra.mxu0 %v377
    %2435 = vmatprep.mubr.f32.mxu0 %v2085
    %2436 = vmatmul.mubr.f32.gmra.mxu0 %v2064
    %v2437 = vpop.f32.mrf.mxu0
    %v2438 = vadd.f32 %v139, %v2437
    %v2439 = vpop.f32.mrf.mxu0
    %v2440 = vadd.f32 %v143, %v2439
    %2441 = vdwg.mxu0
    %2442 = vmatprep.subr.mxu0 %v374
    %2443 = vmatpush1.msra.mxu0 %v373
    %2444 = vmatprep.subr.mxu0 %v368
    %2445 = vmatpush1.msra.mxu0 %v367
    %2446 = vmatprep.subr.mxu0 %v362
    %2447 = vmatpush1.msra.mxu0 %v361
    %2448 = vmatprep.subr.mxu0 %v356
    %2449 = vmatpush1.msra.mxu0 %v355
    %2450 = vmatprep.subr.mxu0 %v350
    %2451 = vmatpush1.msra.mxu0 %v349
    %2452 = vmatprep.subr.mxu0 %v344
    %2453 = vmatpush1.msra.mxu0 %v343
    %2454 = vmatprep.subr.mxu0 %v338
    %2455 = vmatpush1.msra.mxu0 %v337
    %2456 = vmatprep.subr.mxu0 %v332
    %2457 = vmatpush1.msra.mxu0 %v331
    %2458 = vmatprep.subr.mxu0 %v326
    %2459 = vmatpush1.msra.mxu0 %v325
    %2460 = vmatprep.subr.mxu0 %v320
    %2461 = vmatpush1.msra.mxu0 %v319
    %2462 = vmatprep.subr.mxu0 %v314
    %2463 = vmatpush1.msra.mxu0 %v313
    %2464 = vmatprep.subr.mxu0 %v308
    %2465 = vmatpush1.msra.mxu0 %v307
    %2466 = vmatprep.subr.mxu0 %v302
    %2467 = vmatpush1.msra.mxu0 %v301
    %2468 = vmatprep.subr.mxu0 %v296
    %2469 = vmatpush1.msra.mxu0 %v295
    %2470 = vmatprep.subr.mxu0 %v290
    %2471 = vmatpush1.msra.mxu0 %v289
    %2472 = vmatprep.subr.mxu0 %v284
    %2473 = vmatpush1.msra.mxu0 %v283
    %2474 = vmatprep.subr.mxu0 %v470
    %2475 = vmatpush2.msra.mxu0 %v469
    %2476 = vmatprep.subr.mxu0 %v464
    %2477 = vmatpush2.msra.mxu0 %v463
    %2478 = vmatprep.subr.mxu0 %v458
    %2479 = vmatpush2.msra.mxu0 %v457
    %2480 = vmatprep.subr.mxu0 %v452
    %2481 = vmatpush2.msra.mxu0 %v451
    %2482 = vmatprep.subr.mxu0 %v446
    %2483 = vmatpush2.msra.mxu0 %v445
    %2484 = vmatprep.subr.mxu0 %v440
    %2485 = vmatpush2.msra.mxu0 %v439
    %2486 = vmatprep.subr.mxu0 %v434
    %2487 = vmatpush2.msra.mxu0 %v433
    %2488 = vmatprep.subr.mxu0 %v428
    %2489 = vmatpush2.msra.mxu0 %v427
    %2490 = vmatprep.subr.mxu0 %v422
    %2491 = vmatpush2.msra.mxu0 %v421
    %2492 = vmatprep.subr.mxu0 %v416
    %2493 = vmatpush2.msra.mxu0 %v415
    %2494 = vmatprep.subr.mxu0 %v410
    %2495 = vmatpush2.msra.mxu0 %v409
    %2496 = vmatprep.subr.mxu0 %v404
    %2497 = vmatpush2.msra.mxu0 %v403
    %2498 = vmatprep.subr.mxu0 %v398
    %2499 = vmatpush2.msra.mxu0 %v397
    %2500 = vmatprep.subr.mxu0 %v392
    %2501 = vmatpush2.msra.mxu0 %v391
    %2502 = vmatprep.subr.mxu0 %v386
    %2503 = vmatpush2.msra.mxu0 %v385
    %2504 = vmatprep.subr.mxu0 %v380
    %2505 = vmatpush2.msra.mxu0 %v379
    %2506 = vmatprep.mubr.f32.mxu0 %v2085
    %2507 = vmatmul.mubr.f32.gmra.mxu0 %v2064
    %v2508 = vpop.f32.mrf.mxu0
    %v2509 = vadd.f32 %v147, %v2508
    %v2510 = vpop.f32.mrf.mxu0
    %v2511 = vadd.f32 %v151, %v2510
    %2512 = vdwg.mxu0
    %2513 = vmatprep.subr.mxu0 %v376
    %2514 = vmatpush1.msra.mxu0 %v375
    %2515 = vmatprep.subr.mxu0 %v370
    %2516 = vmatpush1.msra.mxu0 %v369
    %2517 = vmatprep.subr.mxu0 %v364
    %2518 = vmatpush1.msra.mxu0 %v363
    %2519 = vmatprep.subr.mxu0 %v358
    %2520 = vmatpush1.msra.mxu0 %v357
    %2521 = vmatprep.subr.mxu0 %v352
    %2522 = vmatpush1.msra.mxu0 %v351
    %2523 = vmatprep.subr.mxu0 %v346
    %2524 = vmatpush1.msra.mxu0 %v345
    %2525 = vmatprep.subr.mxu0 %v340
    %2526 = vmatpush1.msra.mxu0 %v339
    %2527 = vmatprep.subr.mxu0 %v334
    %2528 = vmatpush1.msra.mxu0 %v333
    %2529 = vmatprep.subr.mxu0 %v328
    %2530 = vmatpush1.msra.mxu0 %v327
    %2531 = vmatprep.subr.mxu0 %v322
    %2532 = vmatpush1.msra.mxu0 %v321
    %2533 = vmatprep.subr.mxu0 %v316
    %2534 = vmatpush1.msra.mxu0 %v315
    %2535 = vmatprep.subr.mxu0 %v310
    %2536 = vmatpush1.msra.mxu0 %v309
    %2537 = vmatprep.subr.mxu0 %v304
    %2538 = vmatpush1.msra.mxu0 %v303
    %2539 = vmatprep.subr.mxu0 %v298
    %2540 = vmatpush1.msra.mxu0 %v297
    %2541 = vmatprep.subr.mxu0 %v292
    %2542 = vmatpush1.msra.mxu0 %v291
    %2543 = vmatprep.subr.mxu0 %v286
    %2544 = vmatpush1.msra.mxu0 %v285
    %2545 = vmatprep.subr.mxu0 %v472
    %2546 = vmatpush2.msra.mxu0 %v471
    %2547 = vmatprep.subr.mxu0 %v466
    %2548 = vmatpush2.msra.mxu0 %v465
    %2549 = vmatprep.subr.mxu0 %v460
    %2550 = vmatpush2.msra.mxu0 %v459
    %2551 = vmatprep.subr.mxu0 %v454
    %2552 = vmatpush2.msra.mxu0 %v453
    %2553 = vmatprep.subr.mxu0 %v448
    %2554 = vmatpush2.msra.mxu0 %v447
    %2555 = vmatprep.subr.mxu0 %v442
    %2556 = vmatpush2.msra.mxu0 %v441
    %2557 = vmatprep.subr.mxu0 %v436
    %2558 = vmatpush2.msra.mxu0 %v435
    %2559 = vmatprep.subr.mxu0 %v430
    %2560 = vmatpush2.msra.mxu0 %v429
    %2561 = vmatprep.subr.mxu0 %v424
    %2562 = vmatpush2.msra.mxu0 %v423
    %2563 = vmatprep.subr.mxu0 %v418
    %2564 = vmatpush2.msra.mxu0 %v417
    %2565 = vmatprep.subr.mxu0 %v412
    %2566 = vmatpush2.msra.mxu0 %v411
    %2567 = vmatprep.subr.mxu0 %v406
    %2568 = vmatpush2.msra.mxu0 %v405
    %2569 = vmatprep.subr.mxu0 %v400
    %2570 = vmatpush2.msra.mxu0 %v399
    %2571 = vmatprep.subr.mxu0 %v394
    %2572 = vmatpush2.msra.mxu0 %v393
    %2573 = vmatprep.subr.mxu0 %v388
    %2574 = vmatpush2.msra.mxu0 %v387
    %2575 = vmatprep.subr.mxu0 %v382
    %2576 = vmatpush2.msra.mxu0 %v381
    %2577 = vmatprep.mubr.f32.mxu0 %v2085
    %2578 = vmatmul.mubr.f32.gmra.mxu0 %v2064
    %v2579 = vpop.f32.mrf.mxu0
    %v2580 = vadd.f32 %v155, %v2579
    %v2581 = vpop.f32.mrf.mxu0
    %v2582 = vadd.f32 %v159, %v2581
    %2583 = vdwg.mxu0
    %v2584 = vadd.f32 %v2225, %v2438
    %v2585 = vxor.u32 %v2584, 2147483648
    %v2586 = vmul.f32 %v2585, 1.442695
    %v2587 = vpow.pop %v2586
    %v2588 = vadd.f32 %v2587, 1.0
    %v2589 = vrcp.pop %v2588
    %v2590 = vmul.f32 1.0, %v2589
    %v2591 = vadd.f32 %v2227, %v2440
    %v2592 = vxor.u32 %v2591, 2147483648
    %v2593 = vmul.f32 %v2592, 1.442695
    %v2594 = vpow.pop %v2593
    %v2595 = vadd.f32 %v2594, 1.0
    %v2596 = vrcp.pop %v2595
    %v2597 = vmul.f32 1.0, %v2596
    %v2598 = vmul.f32 %v2590, %v2509
    %v2599 = vadd.f32 %v2296, %v2598
    %v2600 = vtanh.pop %v2599
    %v2601 = vsub.f32 1.0, %v2597
    %v2602 = vmul.f32 %v2601, %v2600
    %v2603 = vmul.f32 %v2597, %v2064
    %v2604 = vadd.f32 %v2602, %v2603
    %v2605 = vadd.f32 %v2298, %v2511
    %v2606 = vxor.u32 %v2605, 2147483648
    %v2607 = vmul.f32 %v2606, 1.442695
    %v2608 = vpow.pop %v2607
    %v2609 = vadd.f32 %v2608, 1.0
    %v2610 = vrcp.pop %v2609
    %v2611 = vmul.f32 1.0, %v2610
    %v2612 = vadd.f32 %v2367, %v2580
    %v2613 = vxor.u32 %v2612, 2147483648
    %v2614 = vmul.f32 %v2613, 1.442695
    %v2615 = vpow.pop %v2614
    %v2616 = vadd.f32 %v2615, 1.0
    %v2617 = vrcp.pop %v2616
    %v2618 = vmul.f32 1.0, %v2617
    %v2619 = vmul.f32 %v2611, %v2582
    %v2620 = vadd.f32 %v2369, %v2619
    %v2621 = vtanh.pop %v2620
    %v2622 = vsub.f32 1.0, %v2618
    %v2623 = vmul.f32 %v2622, %v2621
    %v2624 = vmul.f32 %v2618, %v2085
    %v2625 = vadd.f32 %v2623, %v2624
    %2626 = vmatprep.subr.mxu0 %v504
    %2627 = vmatpush1.msra.mxu0 %v503
    %2628 = vmatprep.subr.mxu0 %v502
    %2629 = vmatpush1.msra.mxu0 %v501
    %2630 = vmatprep.subr.mxu0 %v500
    %2631 = vmatpush1.msra.mxu0 %v499
    %2632 = vmatprep.subr.mxu0 %v498
    %2633 = vmatpush1.msra.mxu0 %v497
    %2634 = vmatprep.subr.mxu0 %v496
    %2635 = vmatpush1.msra.mxu0 %v495
    %2636 = vmatprep.subr.mxu0 %v494
    %2637 = vmatpush1.msra.mxu0 %v493
    %2638 = vmatprep.subr.mxu0 %v492
    %2639 = vmatpush1.msra.mxu0 %v491
    %2640 = vmatprep.subr.mxu0 %v490
    %2641 = vmatpush1.msra.mxu0 %v489
    %2642 = vmatprep.subr.mxu0 %v488
    %2643 = vmatpush1.msra.mxu0 %v487
    %2644 = vmatprep.subr.mxu0 %v486
    %2645 = vmatpush1.msra.mxu0 %v485
    %2646 = vmatprep.subr.mxu0 %v484
    %2647 = vmatpush1.msra.mxu0 %v483
    %2648 = vmatprep.subr.mxu0 %v482
    %2649 = vmatpush1.msra.mxu0 %v481
    %2650 = vmatprep.subr.mxu0 %v480
    %2651 = vmatpush1.msra.mxu0 %v479
    %2652 = vmatprep.subr.mxu0 %v478
    %2653 = vmatpush1.msra.mxu0 %v477
    %2654 = vmatprep.subr.mxu0 %v476
    %2655 = vmatpush1.msra.mxu0 %v475
    %2656 = vmatprep.subr.mxu0 %v474
    %2657 = vmatpush1.msra.mxu0 %v473
    %2658 = vmatprep.subr.mxu0 %v536
    %2659 = vmatpush2.msra.mxu0 %v535
    %2660 = vmatprep.subr.mxu0 %v534
    %2661 = vmatpush2.msra.mxu0 %v533
    %2662 = vmatprep.subr.mxu0 %v532
    %2663 = vmatpush2.msra.mxu0 %v531
    %2664 = vmatprep.subr.mxu0 %v530
    %2665 = vmatpush2.msra.mxu0 %v529
    %2666 = vmatprep.subr.mxu0 %v528
    %2667 = vmatpush2.msra.mxu0 %v527
    %2668 = vmatprep.subr.mxu0 %v526
    %2669 = vmatpush2.msra.mxu0 %v525
    %2670 = vmatprep.subr.mxu0 %v524
    %2671 = vmatpush2.msra.mxu0 %v523
    %2672 = vmatprep.subr.mxu0 %v522
    %2673 = vmatpush2.msra.mxu0 %v521
    %2674 = vmatprep.subr.mxu0 %v520
    %2675 = vmatpush2.msra.mxu0 %v519
    %2676 = vmatprep.subr.mxu0 %v518
    %2677 = vmatpush2.msra.mxu0 %v517
    %2678 = vmatprep.subr.mxu0 %v516
    %2679 = vmatpush2.msra.mxu0 %v515
    %2680 = vmatprep.subr.mxu0 %v514
    %2681 = vmatpush2.msra.mxu0 %v513
    %2682 = vmatprep.subr.mxu0 %v512
    %2683 = vmatpush2.msra.mxu0 %v511
    %2684 = vmatprep.subr.mxu0 %v510
    %2685 = vmatpush2.msra.mxu0 %v509
    %2686 = vmatprep.subr.mxu0 %v508
    %2687 = vmatpush2.msra.mxu0 %v507
    %2688 = vmatprep.subr.mxu0 %v506
    %2689 = vmatpush2.msra.mxu0 %v505
    %2690 = vmatprep.mubr.f32.mxu0 %v2625
    %2691 = vmatmul.mubr.f32.gmra.mxu0 %v2604
    %v2692 = vpop.f32.mrf.mxu0
    %v2693 = vadd.f32 %v171, %v2692
    %v2694 = vpop.f32.mrf.mxu0
    %v2695 = vadd.f32 %v175, %v2694
    %2696 = vdwg.mxu0
    %v2697 = vmax.f32 %v2693, 0.0
    %2698 = vmatprep.subr.mxu0 %v276
    %2699 = vmatpush1.msra.mxu0 %v275
    %2700 = vmatprep.subr.mxu0 %v270
    %2701 = vmatpush1.msra.mxu0 %v269
    %2702 = vmatprep.subr.mxu0 %v264
    %2703 = vmatpush1.msra.mxu0 %v263
    %2704 = vmatprep.subr.mxu0 %v258
    %2705 = vmatpush1.msra.mxu0 %v257
    %2706 = vmatprep.subr.mxu0 %v252
    %2707 = vmatpush1.msra.mxu0 %v251
    %2708 = vmatprep.subr.mxu0 %v246
    %2709 = vmatpush1.msra.mxu0 %v245
    %2710 = vmatprep.subr.mxu0 %v240
    %2711 = vmatpush1.msra.mxu0 %v239
    %2712 = vmatprep.subr.mxu0 %v234
    %2713 = vmatpush1.msra.mxu0 %v233
    %2714 = vmatprep.subr.mxu0 %v228
    %2715 = vmatpush1.msra.mxu0 %v227
    %2716 = vmatprep.subr.mxu0 %v222
    %2717 = vmatpush1.msra.mxu0 %v221
    %2718 = vmatprep.subr.mxu0 %v216
    %2719 = vmatpush1.msra.mxu0 %v215
    %2720 = vmatprep.subr.mxu0 %v210
    %2721 = vmatpush1.msra.mxu0 %v209
    %2722 = vmatprep.subr.mxu0 %v204
    %2723 = vmatpush1.msra.mxu0 %v203
    %2724 = vmatprep.subr.mxu0 %v198
    %2725 = vmatpush1.msra.mxu0 %v197
    %2726 = vmatprep.subr.mxu0 %v192
    %2727 = vmatpush1.msra.mxu0 %v191
    %2728 = vmatprep.subr.mxu0 %v186
    %2729 = vmatpush1.msra.mxu0 %v185
    %2730 = vmatprep.subr.mxu0 0.0
    %2731 = vmatpush2.msra.mxu0 0.0
    %2732 = vmatprep.subr.mxu0 0.0
    %2733 = vmatpush2.msra.mxu0 0.0
    %2734 = vmatprep.subr.mxu0 0.0
    %2735 = vmatpush2.msra.mxu0 0.0
    %2736 = vmatprep.subr.mxu0 0.0
    %2737 = vmatpush2.msra.mxu0 0.0
    %2738 = vmatprep.subr.mxu0 0.0
    %2739 = vmatpush2.msra.mxu0 0.0
    %2740 = vmatprep.subr.mxu0 0.0
    %2741 = vmatpush2.msra.mxu0 0.0
    %2742 = vmatprep.subr.mxu0 0.0
    %2743 = vmatpush2.msra.mxu0 0.0
    %2744 = vmatprep.subr.mxu0 0.0
    %2745 = vmatpush2.msra.mxu0 0.0
    %2746 = vmatprep.subr.mxu0 0.0
    %2747 = vmatpush2.msra.mxu0 0.0
    %2748 = vmatprep.subr.mxu0 0.0
    %2749 = vmatpush2.msra.mxu0 0.0
    %2750 = vmatprep.subr.mxu0 0.0
    %2751 = vmatpush2.msra.mxu0 0.0
    %2752 = vmatprep.subr.mxu0 0.0
    %2753 = vmatpush2.msra.mxu0 0.0
    %2754 = vmatprep.subr.mxu0 0.0
    %2755 = vmatpush2.msra.mxu0 0.0
    %2756 = vmatprep.subr.mxu0 0.0
    %2757 = vmatpush2.msra.mxu0 0.0
    %2758 = vmatprep.subr.mxu0 0.0
    %2759 = vmatpush2.msra.mxu0 0.0
    %2760 = vmatprep.subr.mxu0 0.0
    %2761 = vmatpush2.msra.mxu0 0.0
    %2762 = vmatprep.mubr.f32.mxu0 0.0
    %2763 = vmatmul.mubr.f32.gmra.mxu0 %v2695
    %v2764 = vpop.f32.mrf.mxu0
    %v2765 = vadd.f32 %v107, %v2764
    %v2766 = vpop.f32.mrf.mxu0
    %v2767 = vadd.f32 %v111, %v2766
    %2768 = vdwg.mxu0
    %2769 = vmatprep.subr.mxu0 %v278
    %2770 = vmatpush1.msra.mxu0 %v277
    %2771 = vmatprep.subr.mxu0 %v272
    %2772 = vmatpush1.msra.mxu0 %v271
    %2773 = vmatprep.subr.mxu0 %v266
    %2774 = vmatpush1.msra.mxu0 %v265
    %2775 = vmatprep.subr.mxu0 %v260
    %2776 = vmatpush1.msra.mxu0 %v259
    %2777 = vmatprep.subr.mxu0 %v254
    %2778 = vmatpush1.msra.mxu0 %v253
    %2779 = vmatprep.subr.mxu0 %v248
    %2780 = vmatpush1.msra.mxu0 %v247
    %2781 = vmatprep.subr.mxu0 %v242
    %2782 = vmatpush1.msra.mxu0 %v241
    %2783 = vmatprep.subr.mxu0 %v236
    %2784 = vmatpush1.msra.mxu0 %v235
    %2785 = vmatprep.subr.mxu0 %v230
    %2786 = vmatpush1.msra.mxu0 %v229
    %2787 = vmatprep.subr.mxu0 %v224
    %2788 = vmatpush1.msra.mxu0 %v223
    %2789 = vmatprep.subr.mxu0 %v218
    %2790 = vmatpush1.msra.mxu0 %v217
    %2791 = vmatprep.subr.mxu0 %v212
    %2792 = vmatpush1.msra.mxu0 %v211
    %2793 = vmatprep.subr.mxu0 %v206
    %2794 = vmatpush1.msra.mxu0 %v205
    %2795 = vmatprep.subr.mxu0 %v200
    %2796 = vmatpush1.msra.mxu0 %v199
    %2797 = vmatprep.subr.mxu0 %v194
    %2798 = vmatpush1.msra.mxu0 %v193
    %2799 = vmatprep.subr.mxu0 %v188
    %2800 = vmatpush1.msra.mxu0 %v187
    %2801 = vmatprep.subr.mxu0 0.0
    %2802 = vmatpush2.msra.mxu0 0.0
    %2803 = vmatprep.subr.mxu0 0.0
    %2804 = vmatpush2.msra.mxu0 0.0
    %2805 = vmatprep.subr.mxu0 0.0
    %2806 = vmatpush2.msra.mxu0 0.0
    %2807 = vmatprep.subr.mxu0 0.0
    %2808 = vmatpush2.msra.mxu0 0.0
    %2809 = vmatprep.subr.mxu0 0.0
    %2810 = vmatpush2.msra.mxu0 0.0
    %2811 = vmatprep.subr.mxu0 0.0
    %2812 = vmatpush2.msra.mxu0 0.0
    %2813 = vmatprep.subr.mxu0 0.0
    %2814 = vmatpush2.msra.mxu0 0.0
    %2815 = vmatprep.subr.mxu0 0.0
    %2816 = vmatpush2.msra.mxu0 0.0
    %2817 = vmatprep.subr.mxu0 0.0
    %2818 = vmatpush2.msra.mxu0 0.0
    %2819 = vmatprep.subr.mxu0 0.0
    %2820 = vmatpush2.msra.mxu0 0.0
    %2821 = vmatprep.subr.mxu0 0.0
    %2822 = vmatpush2.msra.mxu0 0.0
    %2823 = vmatprep.subr.mxu0 0.0
    %2824 = vmatpush2.msra.mxu0 0.0
    %2825 = vmatprep.subr.mxu0 0.0
    %2826 = vmatpush2.msra.mxu0 0.0
    %2827 = vmatprep.subr.mxu0 0.0
    %2828 = vmatpush2.msra.mxu0 0.0
    %2829 = vmatprep.subr.mxu0 0.0
    %2830 = vmatpush2.msra.mxu0 0.0
    %2831 = vmatprep.subr.mxu0 0.0
    %2832 = vmatpush2.msra.mxu0 0.0
    %2833 = vmatprep.mubr.f32.mxu0 0.0
    %2834 = vmatmul.mubr.f32.gmra.mxu0 %v2695
    %v2835 = vpop.f32.mrf.mxu0
    %v2836 = vadd.f32 %v115, %v2835
    %v2837 = vpop.f32.mrf.mxu0
    %v2838 = vadd.f32 %v119, %v2837
    %2839 = vdwg.mxu0
    %2840 = vmatprep.subr.mxu0 %v280
    %2841 = vmatpush1.msra.mxu0 %v279
    %2842 = vmatprep.subr.mxu0 %v274
    %2843 = vmatpush1.msra.mxu0 %v273
    %2844 = vmatprep.subr.mxu0 %v268
    %2845 = vmatpush1.msra.mxu0 %v267
    %2846 = vmatprep.subr.mxu0 %v262
    %2847 = vmatpush1.msra.mxu0 %v261
    %2848 = vmatprep.subr.mxu0 %v256
    %2849 = vmatpush1.msra.mxu0 %v255
    %2850 = vmatprep.subr.mxu0 %v250
    %2851 = vmatpush1.msra.mxu0 %v249
    %2852 = vmatprep.subr.mxu0 %v244
    %2853 = vmatpush1.msra.mxu0 %v243
    %2854 = vmatprep.subr.mxu0 %v238
    %2855 = vmatpush1.msra.mxu0 %v237
    %2856 = vmatprep.subr.mxu0 %v232
    %2857 = vmatpush1.msra.mxu0 %v231
    %2858 = vmatprep.subr.mxu0 %v226
    %2859 = vmatpush1.msra.mxu0 %v225
    %2860 = vmatprep.subr.mxu0 %v220
    %2861 = vmatpush1.msra.mxu0 %v219
    %2862 = vmatprep.subr.mxu0 %v214
    %2863 = vmatpush1.msra.mxu0 %v213
    %2864 = vmatprep.subr.mxu0 %v208
    %2865 = vmatpush1.msra.mxu0 %v207
    %2866 = vmatprep.subr.mxu0 %v202
    %2867 = vmatpush1.msra.mxu0 %v201
    %2868 = vmatprep.subr.mxu0 %v196
    %2869 = vmatpush1.msra.mxu0 %v195
    %2870 = vmatprep.subr.mxu0 %v190
    %2871 = vmatpush1.msra.mxu0 %v189
    %2872 = vmatprep.subr.mxu0 0.0
    %2873 = vmatpush2.msra.mxu0 0.0
    %2874 = vmatprep.subr.mxu0 0.0
    %2875 = vmatpush2.msra.mxu0 0.0
    %2876 = vmatprep.subr.mxu0 0.0
    %2877 = vmatpush2.msra.mxu0 0.0
    %2878 = vmatprep.subr.mxu0 0.0
    %2879 = vmatpush2.msra.mxu0 0.0
    %2880 = vmatprep.subr.mxu0 0.0
    %2881 = vmatpush2.msra.mxu0 0.0
    %2882 = vmatprep.subr.mxu0 0.0
    %2883 = vmatpush2.msra.mxu0 0.0
    %2884 = vmatprep.subr.mxu0 0.0
    %2885 = vmatpush2.msra.mxu0 0.0
    %2886 = vmatprep.subr.mxu0 0.0
    %2887 = vmatpush2.msra.mxu0 0.0
    %2888 = vmatprep.subr.mxu0 0.0
    %2889 = vmatpush2.msra.mxu0 0.0
    %2890 = vmatprep.subr.mxu0 0.0
    %2891 = vmatpush2.msra.mxu0 0.0
    %2892 = vmatprep.subr.mxu0 0.0
    %2893 = vmatpush2.msra.mxu0 0.0
    %2894 = vmatprep.subr.mxu0 0.0
    %2895 = vmatpush2.msra.mxu0 0.0
    %2896 = vmatprep.subr.mxu0 0.0
    %2897 = vmatpush2.msra.mxu0 0.0
    %2898 = vmatprep.subr.mxu0 0.0
    %2899 = vmatpush2.msra.mxu0 0.0
    %2900 = vmatprep.subr.mxu0 0.0
    %2901 = vmatpush2.msra.mxu0 0.0
    %2902 = vmatprep.subr.mxu0 0.0
    %2903 = vmatpush2.msra.mxu0 0.0
    %2904 = vmatprep.mubr.f32.mxu0 0.0
    %2905 = vmatmul.mubr.f32.gmra.mxu0 %v2695
    %v2906 = vpop.f32.mrf.mxu0
    %v2907 = vadd.f32 %v123, %v2906
    %v2908 = vpop.f32.mrf.mxu0
    %v2909 = vadd.f32 %v127, %v2908
    %2910 = vdwg.mxu0
    %2911 = vmatprep.subr.mxu0 %v372
    %2912 = vmatpush1.msra.mxu0 %v371
    %2913 = vmatprep.subr.mxu0 %v366
    %2914 = vmatpush1.msra.mxu0 %v365
    %2915 = vmatprep.subr.mxu0 %v360
    %2916 = vmatpush1.msra.mxu0 %v359
    %2917 = vmatprep.subr.mxu0 %v354
    %2918 = vmatpush1.msra.mxu0 %v353
    %2919 = vmatprep.subr.mxu0 %v348
    %2920 = vmatpush1.msra.mxu0 %v347
    %2921 = vmatprep.subr.mxu0 %v342
    %2922 = vmatpush1.msra.mxu0 %v341
    %2923 = vmatprep.subr.mxu0 %v336
    %2924 = vmatpush1.msra.mxu0 %v335
    %2925 = vmatprep.subr.mxu0 %v330
    %2926 = vmatpush1.msra.mxu0 %v329
    %2927 = vmatprep.subr.mxu0 %v324
    %2928 = vmatpush1.msra.mxu0 %v323
    %2929 = vmatprep.subr.mxu0 %v318
    %2930 = vmatpush1.msra.mxu0 %v317
    %2931 = vmatprep.subr.mxu0 %v312
    %2932 = vmatpush1.msra.mxu0 %v311
    %2933 = vmatprep.subr.mxu0 %v306
    %2934 = vmatpush1.msra.mxu0 %v305
    %2935 = vmatprep.subr.mxu0 %v300
    %2936 = vmatpush1.msra.mxu0 %v299
    %2937 = vmatprep.subr.mxu0 %v294
    %2938 = vmatpush1.msra.mxu0 %v293
    %2939 = vmatprep.subr.mxu0 %v288
    %2940 = vmatpush1.msra.mxu0 %v287
    %2941 = vmatprep.subr.mxu0 %v282
    %2942 = vmatpush1.msra.mxu0 %v281
    %2943 = vmatprep.subr.mxu0 %v468
    %2944 = vmatpush2.msra.mxu0 %v467
    %2945 = vmatprep.subr.mxu0 %v462
    %2946 = vmatpush2.msra.mxu0 %v461
    %2947 = vmatprep.subr.mxu0 %v456
    %2948 = vmatpush2.msra.mxu0 %v455
    %2949 = vmatprep.subr.mxu0 %v450
    %2950 = vmatpush2.msra.mxu0 %v449
    %2951 = vmatprep.subr.mxu0 %v444
    %2952 = vmatpush2.msra.mxu0 %v443
    %2953 = vmatprep.subr.mxu0 %v438
    %2954 = vmatpush2.msra.mxu0 %v437
    %2955 = vmatprep.subr.mxu0 %v432
    %2956 = vmatpush2.msra.mxu0 %v431
    %2957 = vmatprep.subr.mxu0 %v426
    %2958 = vmatpush2.msra.mxu0 %v425
    %2959 = vmatprep.subr.mxu0 %v420
    %2960 = vmatpush2.msra.mxu0 %v419
    %2961 = vmatprep.subr.mxu0 %v414
    %2962 = vmatpush2.msra.mxu0 %v413
    %2963 = vmatprep.subr.mxu0 %v408
    %2964 = vmatpush2.msra.mxu0 %v407
    %2965 = vmatprep.subr.mxu0 %v402
    %2966 = vmatpush2.msra.mxu0 %v401
    %2967 = vmatprep.subr.mxu0 %v396
    %2968 = vmatpush2.msra.mxu0 %v395
    %2969 = vmatprep.subr.mxu0 %v390
    %2970 = vmatpush2.msra.mxu0 %v389
    %2971 = vmatprep.subr.mxu0 %v384
    %2972 = vmatpush2.msra.mxu0 %v383
    %2973 = vmatprep.subr.mxu0 %v378
    %2974 = vmatpush2.msra.mxu0 %v377
    %2975 = vmatprep.mubr.f32.mxu0 %v2625
    %2976 = vmatmul.mubr.f32.gmra.mxu0 %v2604
    %v2977 = vpop.f32.mrf.mxu0
    %v2978 = vadd.f32 %v139, %v2977
    %v2979 = vpop.f32.mrf.mxu0
    %v2980 = vadd.f32 %v143, %v2979
    %2981 = vdwg.mxu0
    %2982 = vmatprep.subr.mxu0 %v374
    %2983 = vmatpush1.msra.mxu0 %v373
    %2984 = vmatprep.subr.mxu0 %v368
    %2985 = vmatpush1.msra.mxu0 %v367
    %2986 = vmatprep.subr.mxu0 %v362
    %2987 = vmatpush1.msra.mxu0 %v361
    %2988 = vmatprep.subr.mxu0 %v356
    %2989 = vmatpush1.msra.mxu0 %v355
    %2990 = vmatprep.subr.mxu0 %v350
    %2991 = vmatpush1.msra.mxu0 %v349
    %2992 = vmatprep.subr.mxu0 %v344
    %2993 = vmatpush1.msra.mxu0 %v343
    %2994 = vmatprep.subr.mxu0 %v338
    %2995 = vmatpush1.msra.mxu0 %v337
    %2996 = vmatprep.subr.mxu0 %v332
    %2997 = vmatpush1.msra.mxu0 %v331
    %2998 = vmatprep.subr.mxu0 %v326
    %2999 = vmatpush1.msra.mxu0 %v325
    %3000 = vmatprep.subr.mxu0 %v320
    %3001 = vmatpush1.msra.mxu0 %v319
    %3002 = vmatprep.subr.mxu0 %v314
    %3003 = vmatpush1.msra.mxu0 %v313
    %3004 = vmatprep.subr.mxu0 %v308
    %3005 = vmatpush1.msra.mxu0 %v307
    %3006 = vmatprep.subr.mxu0 %v302
    %3007 = vmatpush1.msra.mxu0 %v301
    %3008 = vmatprep.subr.mxu0 %v296
    %3009 = vmatpush1.msra.mxu0 %v295
    %3010 = vmatprep.subr.mxu0 %v290
    %3011 = vmatpush1.msra.mxu0 %v289
    %3012 = vmatprep.subr.mxu0 %v284
    %3013 = vmatpush1.msra.mxu0 %v283
    %3014 = vmatprep.subr.mxu0 %v470
    %3015 = vmatpush2.msra.mxu0 %v469
    %3016 = vmatprep.subr.mxu0 %v464
    %3017 = vmatpush2.msra.mxu0 %v463
    %3018 = vmatprep.subr.mxu0 %v458
    %3019 = vmatpush2.msra.mxu0 %v457
    %3020 = vmatprep.subr.mxu0 %v452
    %3021 = vmatpush2.msra.mxu0 %v451
    %3022 = vmatprep.subr.mxu0 %v446
    %3023 = vmatpush2.msra.mxu0 %v445
    %3024 = vmatprep.subr.mxu0 %v440
    %3025 = vmatpush2.msra.mxu0 %v439
    %3026 = vmatprep.subr.mxu0 %v434
    %3027 = vmatpush2.msra.mxu0 %v433
    %3028 = vmatprep.subr.mxu0 %v428
    %3029 = vmatpush2.msra.mxu0 %v427
    %3030 = vmatprep.subr.mxu0 %v422
    %3031 = vmatpush2.msra.mxu0 %v421
    %3032 = vmatprep.subr.mxu0 %v416
    %3033 = vmatpush2.msra.mxu0 %v415
    %3034 = vmatprep.subr.mxu0 %v410
    %3035 = vmatpush2.msra.mxu0 %v409
    %3036 = vmatprep.subr.mxu0 %v404
    %3037 = vmatpush2.msra.mxu0 %v403
    %3038 = vmatprep.subr.mxu0 %v398
    %3039 = vmatpush2.msra.mxu0 %v397
    %3040 = vmatprep.subr.mxu0 %v392
    %3041 = vmatpush2.msra.mxu0 %v391
    %3042 = vmatprep.subr.mxu0 %v386
    %3043 = vmatpush2.msra.mxu0 %v385
    %3044 = vmatprep.subr.mxu0 %v380
    %3045 = vmatpush2.msra.mxu0 %v379
    %3046 = vmatprep.mubr.f32.mxu0 %v2625
    %3047 = vmatmul.mubr.f32.gmra.mxu0 %v2604
    %v3048 = vpop.f32.mrf.mxu0
    %v3049 = vadd.f32 %v147, %v3048
    %v3050 = vpop.f32.mrf.mxu0
    %v3051 = vadd.f32 %v151, %v3050
    %3052 = vdwg.mxu0
    %3053 = vmatprep.subr.mxu0 %v376
    %3054 = vmatpush1.msra.mxu0 %v375
    %3055 = vmatprep.subr.mxu0 %v370
    %3056 = vmatpush1.msra.mxu0 %v369
    %3057 = vmatprep.subr.mxu0 %v364
    %3058 = vmatpush1.msra.mxu0 %v363
    %3059 = vmatprep.subr.mxu0 %v358
    %3060 = vmatpush1.msra.mxu0 %v357
    %3061 = vmatprep.subr.mxu0 %v352
    %3062 = vmatpush1.msra.mxu0 %v351
    %3063 = vmatprep.subr.mxu0 %v346
    %3064 = vmatpush1.msra.mxu0 %v345
    %3065 = vmatprep.subr.mxu0 %v340
    %3066 = vmatpush1.msra.mxu0 %v339
    %3067 = vmatprep.subr.mxu0 %v334
    %3068 = vmatpush1.msra.mxu0 %v333
    %3069 = vmatprep.subr.mxu0 %v328
    %3070 = vmatpush1.msra.mxu0 %v327
    %3071 = vmatprep.subr.mxu0 %v322
    %3072 = vmatpush1.msra.mxu0 %v321
    %3073 = vmatprep.subr.mxu0 %v316
    %3074 = vmatpush1.msra.mxu0 %v315
    %3075 = vmatprep.subr.mxu0 %v310
    %3076 = vmatpush1.msra.mxu0 %v309
    %3077 = vmatprep.subr.mxu0 %v304
    %3078 = vmatpush1.msra.mxu0 %v303
    %3079 = vmatprep.subr.mxu0 %v298
    %3080 = vmatpush1.msra.mxu0 %v297
    %3081 = vmatprep.subr.mxu0 %v292
    %3082 = vmatpush1.msra.mxu0 %v291
    %3083 = vmatprep.subr.mxu0 %v286
    %3084 = vmatpush1.msra.mxu0 %v285
    %3085 = vmatprep.subr.mxu0 %v472
    %3086 = vmatpush2.msra.mxu0 %v471
    %3087 = vmatprep.subr.mxu0 %v466
    %3088 = vmatpush2.msra.mxu0 %v465
    %3089 = vmatprep.subr.mxu0 %v460
    %3090 = vmatpush2.msra.mxu0 %v459
    %3091 = vmatprep.subr.mxu0 %v454
    %3092 = vmatpush2.msra.mxu0 %v453
    %3093 = vmatprep.subr.mxu0 %v448
    %3094 = vmatpush2.msra.mxu0 %v447
    %3095 = vmatprep.subr.mxu0 %v442
    %3096 = vmatpush2.msra.mxu0 %v441
    %3097 = vmatprep.subr.mxu0 %v436
    %3098 = vmatpush2.msra.mxu0 %v435
    %3099 = vmatprep.subr.mxu0 %v430
    %3100 = vmatpush2.msra.mxu0 %v429
    %3101 = vmatprep.subr.mxu0 %v424
    %3102 = vmatpush2.msra.mxu0 %v423
    %3103 = vmatprep.subr.mxu0 %v418
    %3104 = vmatpush2.msra.mxu0 %v417
    %3105 = vmatprep.subr.mxu0 %v412
    %3106 = vmatpush2.msra.mxu0 %v411
    %3107 = vmatprep.subr.mxu0 %v406
    %3108 = vmatpush2.msra.mxu0 %v405
    %3109 = vmatprep.subr.mxu0 %v400
    %3110 = vmatpush2.msra.mxu0 %v399
    %3111 = vmatprep.subr.mxu0 %v394
    %3112 = vmatpush2.msra.mxu0 %v393
    %3113 = vmatprep.subr.mxu0 %v388
    %3114 = vmatpush2.msra.mxu0 %v387
    %3115 = vmatprep.subr.mxu0 %v382
    %3116 = vmatpush2.msra.mxu0 %v381
    %3117 = vmatprep.mubr.f32.mxu0 %v2625
    %3118 = vmatmul.mubr.f32.gmra.mxu0 %v2604
    %v3119 = vpop.f32.mrf.mxu0
    %v3120 = vadd.f32 %v155, %v3119
    %v3121 = vpop.f32.mrf.mxu0
    %v3122 = vadd.f32 %v159, %v3121
    %3123 = vdwg.mxu0
    %v3124 = vadd.f32 %v2765, %v2978
    %v3125 = vxor.u32 %v3124, 2147483648
    %v3126 = vmul.f32 %v3125, 1.442695
    %v3127 = vpow.pop %v3126
    %v3128 = vadd.f32 %v3127, 1.0
    %v3129 = vrcp.pop %v3128
    %v3130 = vmul.f32 1.0, %v3129
    %v3131 = vadd.f32 %v2767, %v2980
    %v3132 = vxor.u32 %v3131, 2147483648
    %v3133 = vmul.f32 %v3132, 1.442695
    %v3134 = vpow.pop %v3133
    %v3135 = vadd.f32 %v3134, 1.0
    %v3136 = vrcp.pop %v3135
    %v3137 = vmul.f32 1.0, %v3136
    %v3138 = vmul.f32 %v3130, %v3049
    %v3139 = vadd.f32 %v2836, %v3138
    %v3140 = vtanh.pop %v3139
    %v3141 = vsub.f32 1.0, %v3137
    %v3142 = vmul.f32 %v3141, %v3140
    %v3143 = vmul.f32 %v3137, %v2604
    %v3144 = vadd.f32 %v3142, %v3143
    %v3145 = vadd.f32 %v2838, %v3051
    %v3146 = vxor.u32 %v3145, 2147483648
    %v3147 = vmul.f32 %v3146, 1.442695
    %v3148 = vpow.pop %v3147
    %v3149 = vadd.f32 %v3148, 1.0
    %v3150 = vrcp.pop %v3149
    %v3151 = vmul.f32 1.0, %v3150
    %v3152 = vadd.f32 %v2907, %v3120
    %v3153 = vxor.u32 %v3152, 2147483648
    %v3154 = vmul.f32 %v3153, 1.442695
    %v3155 = vpow.pop %v3154
    %v3156 = vadd.f32 %v3155, 1.0
    %v3157 = vrcp.pop %v3156
    %v3158 = vmul.f32 1.0, %v3157
    %v3159 = vmul.f32 %v3151, %v3122
    %v3160 = vadd.f32 %v2909, %v3159
    %v3161 = vtanh.pop %v3160
    %v3162 = vsub.f32 1.0, %v3158
    %v3163 = vmul.f32 %v3162, %v3161
    %v3164 = vmul.f32 %v3158, %v2625
    %v3165 = vadd.f32 %v3163, %v3164
    %3166 = vmatprep.subr.mxu0 %v504
    %3167 = vmatpush1.msra.mxu0 %v503
    %3168 = vmatprep.subr.mxu0 %v502
    %3169 = vmatpush1.msra.mxu0 %v501
    %3170 = vmatprep.subr.mxu0 %v500
    %3171 = vmatpush1.msra.mxu0 %v499
    %3172 = vmatprep.subr.mxu0 %v498
    %3173 = vmatpush1.msra.mxu0 %v497
    %3174 = vmatprep.subr.mxu0 %v496
    %3175 = vmatpush1.msra.mxu0 %v495
    %3176 = vmatprep.subr.mxu0 %v494
    %3177 = vmatpush1.msra.mxu0 %v493
    %3178 = vmatprep.subr.mxu0 %v492
    %3179 = vmatpush1.msra.mxu0 %v491
    %3180 = vmatprep.subr.mxu0 %v490
    %3181 = vmatpush1.msra.mxu0 %v489
    %3182 = vmatprep.subr.mxu0 %v488
    %3183 = vmatpush1.msra.mxu0 %v487
    %3184 = vmatprep.subr.mxu0 %v486
    %3185 = vmatpush1.msra.mxu0 %v485
    %3186 = vmatprep.subr.mxu0 %v484
    %3187 = vmatpush1.msra.mxu0 %v483
    %3188 = vmatprep.subr.mxu0 %v482
    %3189 = vmatpush1.msra.mxu0 %v481
    %3190 = vmatprep.subr.mxu0 %v480
    %3191 = vmatpush1.msra.mxu0 %v479
    %3192 = vmatprep.subr.mxu0 %v478
    %3193 = vmatpush1.msra.mxu0 %v477
    %3194 = vmatprep.subr.mxu0 %v476
    %3195 = vmatpush1.msra.mxu0 %v475
    %3196 = vmatprep.subr.mxu0 %v474
    %3197 = vmatpush1.msra.mxu0 %v473
    %3198 = vmatprep.subr.mxu0 %v536
    %3199 = vmatpush2.msra.mxu0 %v535
    %3200 = vmatprep.subr.mxu0 %v534
    %3201 = vmatpush2.msra.mxu0 %v533
    %3202 = vmatprep.subr.mxu0 %v532
    %3203 = vmatpush2.msra.mxu0 %v531
    %3204 = vmatprep.subr.mxu0 %v530
    %3205 = vmatpush2.msra.mxu0 %v529
    %3206 = vmatprep.subr.mxu0 %v528
    %3207 = vmatpush2.msra.mxu0 %v527
    %3208 = vmatprep.subr.mxu0 %v526
    %3209 = vmatpush2.msra.mxu0 %v525
    %3210 = vmatprep.subr.mxu0 %v524
    %3211 = vmatpush2.msra.mxu0 %v523
    %3212 = vmatprep.subr.mxu0 %v522
    %3213 = vmatpush2.msra.mxu0 %v521
    %3214 = vmatprep.subr.mxu0 %v520
    %3215 = vmatpush2.msra.mxu0 %v519
    %3216 = vmatprep.subr.mxu0 %v518
    %3217 = vmatpush2.msra.mxu0 %v517
    %3218 = vmatprep.subr.mxu0 %v516
    %3219 = vmatpush2.msra.mxu0 %v515
    %3220 = vmatprep.subr.mxu0 %v514
    %3221 = vmatpush2.msra.mxu0 %v513
    %3222 = vmatprep.subr.mxu0 %v512
    %3223 = vmatpush2.msra.mxu0 %v511
    %3224 = vmatprep.subr.mxu0 %v510
    %3225 = vmatpush2.msra.mxu0 %v509
    %3226 = vmatprep.subr.mxu0 %v508
    %3227 = vmatpush2.msra.mxu0 %v507
    %3228 = vmatprep.subr.mxu0 %v506
    %3229 = vmatpush2.msra.mxu0 %v505
    %3230 = vmatprep.mubr.f32.mxu0 %v3165
    %3231 = vmatmul.mubr.f32.gmra.mxu0 %v3144
    %v3232 = vpop.f32.mrf.mxu0
    %v3233 = vadd.f32 %v171, %v3232
    %v3234 = vpop.f32.mrf.mxu0
    %v3235 = vadd.f32 %v175, %v3234
    %3236 = vdwg.mxu0
    %v3237 = vmax.f32 %v3233, 0.0
    %3238 = vmatprep.subr.mxu0 %v276
    %3239 = vmatpush1.msra.mxu0 %v275
    %3240 = vmatprep.subr.mxu0 %v270
    %3241 = vmatpush1.msra.mxu0 %v269
    %3242 = vmatprep.subr.mxu0 %v264
    %3243 = vmatpush1.msra.mxu0 %v263
    %3244 = vmatprep.subr.mxu0 %v258
    %3245 = vmatpush1.msra.mxu0 %v257
    %3246 = vmatprep.subr.mxu0 %v252
    %3247 = vmatpush1.msra.mxu0 %v251
    %3248 = vmatprep.subr.mxu0 %v246
    %3249 = vmatpush1.msra.mxu0 %v245
    %3250 = vmatprep.subr.mxu0 %v240
    %3251 = vmatpush1.msra.mxu0 %v239
    %3252 = vmatprep.subr.mxu0 %v234
    %3253 = vmatpush1.msra.mxu0 %v233
    %3254 = vmatprep.subr.mxu0 %v228
    %3255 = vmatpush1.msra.mxu0 %v227
    %3256 = vmatprep.subr.mxu0 %v222
    %3257 = vmatpush1.msra.mxu0 %v221
    %3258 = vmatprep.subr.mxu0 %v216
    %3259 = vmatpush1.msra.mxu0 %v215
    %3260 = vmatprep.subr.mxu0 %v210
    %3261 = vmatpush1.msra.mxu0 %v209
    %3262 = vmatprep.subr.mxu0 %v204
    %3263 = vmatpush1.msra.mxu0 %v203
    %3264 = vmatprep.subr.mxu0 %v198
    %3265 = vmatpush1.msra.mxu0 %v197
    %3266 = vmatprep.subr.mxu0 %v192
    %3267 = vmatpush1.msra.mxu0 %v191
    %3268 = vmatprep.subr.mxu0 %v186
    %3269 = vmatpush1.msra.mxu0 %v185
    %3270 = vmatprep.subr.mxu0 0.0
    %3271 = vmatpush2.msra.mxu0 0.0
    %3272 = vmatprep.subr.mxu0 0.0
    %3273 = vmatpush2.msra.mxu0 0.0
    %3274 = vmatprep.subr.mxu0 0.0
    %3275 = vmatpush2.msra.mxu0 0.0
    %3276 = vmatprep.subr.mxu0 0.0
    %3277 = vmatpush2.msra.mxu0 0.0
    %3278 = vmatprep.subr.mxu0 0.0
    %3279 = vmatpush2.msra.mxu0 0.0
    %3280 = vmatprep.subr.mxu0 0.0
    %3281 = vmatpush2.msra.mxu0 0.0
    %3282 = vmatprep.subr.mxu0 0.0
    %3283 = vmatpush2.msra.mxu0 0.0
    %3284 = vmatprep.subr.mxu0 0.0
    %3285 = vmatpush2.msra.mxu0 0.0
    %3286 = vmatprep.subr.mxu0 0.0
    %3287 = vmatpush2.msra.mxu0 0.0
    %3288 = vmatprep.subr.mxu0 0.0
    %3289 = vmatpush2.msra.mxu0 0.0
    %3290 = vmatprep.subr.mxu0 0.0
    %3291 = vmatpush2.msra.mxu0 0.0
    %3292 = vmatprep.subr.mxu0 0.0
    %3293 = vmatpush2.msra.mxu0 0.0
    %3294 = vmatprep.subr.mxu0 0.0
    %3295 = vmatpush2.msra.mxu0 0.0
    %3296 = vmatprep.subr.mxu0 0.0
    %3297 = vmatpush2.msra.mxu0 0.0
    %3298 = vmatprep.subr.mxu0 0.0
    %3299 = vmatpush2.msra.mxu0 0.0
    %3300 = vmatprep.subr.mxu0 0.0
    %3301 = vmatpush2.msra.mxu0 0.0
    %3302 = vmatprep.mubr.f32.mxu0 0.0
    %3303 = vmatmul.mubr.f32.gmra.mxu0 %v3235
    %v3304 = vpop.f32.mrf.mxu0
    %v3305 = vadd.f32 %v107, %v3304
    %v3306 = vpop.f32.mrf.mxu0
    %v3307 = vadd.f32 %v111, %v3306
    %3308 = vdwg.mxu0
    %3309 = vmatprep.subr.mxu0 %v278
    %3310 = vmatpush1.msra.mxu0 %v277
    %3311 = vmatprep.subr.mxu0 %v272
    %3312 = vmatpush1.msra.mxu0 %v271
    %3313 = vmatprep.subr.mxu0 %v266
    %3314 = vmatpush1.msra.mxu0 %v265
    %3315 = vmatprep.subr.mxu0 %v260
    %3316 = vmatpush1.msra.mxu0 %v259
    %3317 = vmatprep.subr.mxu0 %v254
    %3318 = vmatpush1.msra.mxu0 %v253
    %3319 = vmatprep.subr.mxu0 %v248
    %3320 = vmatpush1.msra.mxu0 %v247
    %3321 = vmatprep.subr.mxu0 %v242
    %3322 = vmatpush1.msra.mxu0 %v241
    %3323 = vmatprep.subr.mxu0 %v236
    %3324 = vmatpush1.msra.mxu0 %v235
    %3325 = vmatprep.subr.mxu0 %v230
    %3326 = vmatpush1.msra.mxu0 %v229
    %3327 = vmatprep.subr.mxu0 %v224
    %3328 = vmatpush1.msra.mxu0 %v223
    %3329 = vmatprep.subr.mxu0 %v218
    %3330 = vmatpush1.msra.mxu0 %v217
    %3331 = vmatprep.subr.mxu0 %v212
    %3332 = vmatpush1.msra.mxu0 %v211
    %3333 = vmatprep.subr.mxu0 %v206
    %3334 = vmatpush1.msra.mxu0 %v205
    %3335 = vmatprep.subr.mxu0 %v200
    %3336 = vmatpush1.msra.mxu0 %v199
    %3337 = vmatprep.subr.mxu0 %v194
    %3338 = vmatpush1.msra.mxu0 %v193
    %3339 = vmatprep.subr.mxu0 %v188
    %3340 = vmatpush1.msra.mxu0 %v187
    %3341 = vmatprep.subr.mxu0 0.0
    %3342 = vmatpush2.msra.mxu0 0.0
    %3343 = vmatprep.subr.mxu0 0.0
    %3344 = vmatpush2.msra.mxu0 0.0
    %3345 = vmatprep.subr.mxu0 0.0
    %3346 = vmatpush2.msra.mxu0 0.0
    %3347 = vmatprep.subr.mxu0 0.0
    %3348 = vmatpush2.msra.mxu0 0.0
    %3349 = vmatprep.subr.mxu0 0.0
    %3350 = vmatpush2.msra.mxu0 0.0
    %3351 = vmatprep.subr.mxu0 0.0
    %3352 = vmatpush2.msra.mxu0 0.0
    %3353 = vmatprep.subr.mxu0 0.0
    %3354 = vmatpush2.msra.mxu0 0.0
    %3355 = vmatprep.subr.mxu0 0.0
    %3356 = vmatpush2.msra.mxu0 0.0
    %3357 = vmatprep.subr.mxu0 0.0
    %3358 = vmatpush2.msra.mxu0 0.0
    %3359 = vmatprep.subr.mxu0 0.0
    %3360 = vmatpush2.msra.mxu0 0.0
    %3361 = vmatprep.subr.mxu0 0.0
    %3362 = vmatpush2.msra.mxu0 0.0
    %3363 = vmatprep.subr.mxu0 0.0
    %3364 = vmatpush2.msra.mxu0 0.0
    %3365 = vmatprep.subr.mxu0 0.0
    %3366 = vmatpush2.msra.mxu0 0.0
    %3367 = vmatprep.subr.mxu0 0.0
    %3368 = vmatpush2.msra.mxu0 0.0
    %3369 = vmatprep.subr.mxu0 0.0
    %3370 = vmatpush2.msra.mxu0 0.0
    %3371 = vmatprep.subr.mxu0 0.0
    %3372 = vmatpush2.msra.mxu0 0.0
    %3373 = vmatprep.mubr.f32.mxu0 0.0
    %3374 = vmatmul.mubr.f32.gmra.mxu0 %v3235
    %v3375 = vpop.f32.mrf.mxu0
    %v3376 = vadd.f32 %v115, %v3375
    %v3377 = vpop.f32.mrf.mxu0
    %v3378 = vadd.f32 %v119, %v3377
    %3379 = vdwg.mxu0
    %3380 = vmatprep.subr.mxu0 %v280
    %3381 = vmatpush1.msra.mxu0 %v279
    %3382 = vmatprep.subr.mxu0 %v274
    %3383 = vmatpush1.msra.mxu0 %v273
    %3384 = vmatprep.subr.mxu0 %v268
    %3385 = vmatpush1.msra.mxu0 %v267
    %3386 = vmatprep.subr.mxu0 %v262
    %3387 = vmatpush1.msra.mxu0 %v261
    %3388 = vmatprep.subr.mxu0 %v256
    %3389 = vmatpush1.msra.mxu0 %v255
    %3390 = vmatprep.subr.mxu0 %v250
    %3391 = vmatpush1.msra.mxu0 %v249
    %3392 = vmatprep.subr.mxu0 %v244
    %3393 = vmatpush1.msra.mxu0 %v243
    %3394 = vmatprep.subr.mxu0 %v238
    %3395 = vmatpush1.msra.mxu0 %v237
    %3396 = vmatprep.subr.mxu0 %v232
    %3397 = vmatpush1.msra.mxu0 %v231
    %3398 = vmatprep.subr.mxu0 %v226
    %3399 = vmatpush1.msra.mxu0 %v225
    %3400 = vmatprep.subr.mxu0 %v220
    %3401 = vmatpush1.msra.mxu0 %v219
    %3402 = vmatprep.subr.mxu0 %v214
    %3403 = vmatpush1.msra.mxu0 %v213
    %3404 = vmatprep.subr.mxu0 %v208
    %3405 = vmatpush1.msra.mxu0 %v207
    %3406 = vmatprep.subr.mxu0 %v202
    %3407 = vmatpush1.msra.mxu0 %v201
    %3408 = vmatprep.subr.mxu0 %v196
    %3409 = vmatpush1.msra.mxu0 %v195
    %3410 = vmatprep.subr.mxu0 %v190
    %3411 = vmatpush1.msra.mxu0 %v189
    %3412 = vmatprep.subr.mxu0 0.0
    %3413 = vmatpush2.msra.mxu0 0.0
    %3414 = vmatprep.subr.mxu0 0.0
    %3415 = vmatpush2.msra.mxu0 0.0
    %3416 = vmatprep.subr.mxu0 0.0
    %3417 = vmatpush2.msra.mxu0 0.0
    %3418 = vmatprep.subr.mxu0 0.0
    %3419 = vmatpush2.msra.mxu0 0.0
    %3420 = vmatprep.subr.mxu0 0.0
    %3421 = vmatpush2.msra.mxu0 0.0
    %3422 = vmatprep.subr.mxu0 0.0
    %3423 = vmatpush2.msra.mxu0 0.0
    %3424 = vmatprep.subr.mxu0 0.0
    %3425 = vmatpush2.msra.mxu0 0.0
    %3426 = vmatprep.subr.mxu0 0.0
    %3427 = vmatpush2.msra.mxu0 0.0
    %3428 = vmatprep.subr.mxu0 0.0
    %3429 = vmatpush2.msra.mxu0 0.0
    %3430 = vmatprep.subr.mxu0 0.0
    %3431 = vmatpush2.msra.mxu0 0.0
    %3432 = vmatprep.subr.mxu0 0.0
    %3433 = vmatpush2.msra.mxu0 0.0
    %3434 = vmatprep.subr.mxu0 0.0
    %3435 = vmatpush2.msra.mxu0 0.0
    %3436 = vmatprep.subr.mxu0 0.0
    %3437 = vmatpush2.msra.mxu0 0.0
    %3438 = vmatprep.subr.mxu0 0.0
    %3439 = vmatpush2.msra.mxu0 0.0
    %3440 = vmatprep.subr.mxu0 0.0
    %3441 = vmatpush2.msra.mxu0 0.0
    %3442 = vmatprep.subr.mxu0 0.0
    %3443 = vmatpush2.msra.mxu0 0.0
    %3444 = vmatprep.mubr.f32.mxu0 0.0
    %3445 = vmatmul.mubr.f32.gmra.mxu0 %v3235
    %v3446 = vpop.f32.mrf.mxu0
    %v3447 = vadd.f32 %v123, %v3446
    %v3448 = vpop.f32.mrf.mxu0
    %v3449 = vadd.f32 %v127, %v3448
    %3450 = vdwg.mxu0
    %3451 = vmatprep.subr.mxu0 %v372
    %3452 = vmatpush1.msra.mxu0 %v371
    %3453 = vmatprep.subr.mxu0 %v366
    %3454 = vmatpush1.msra.mxu0 %v365
    %3455 = vmatprep.subr.mxu0 %v360
    %3456 = vmatpush1.msra.mxu0 %v359
    %3457 = vmatprep.subr.mxu0 %v354
    %3458 = vmatpush1.msra.mxu0 %v353
    %3459 = vmatprep.subr.mxu0 %v348
    %3460 = vmatpush1.msra.mxu0 %v347
    %3461 = vmatprep.subr.mxu0 %v342
    %3462 = vmatpush1.msra.mxu0 %v341
    %3463 = vmatprep.subr.mxu0 %v336
    %3464 = vmatpush1.msra.mxu0 %v335
    %3465 = vmatprep.subr.mxu0 %v330
    %3466 = vmatpush1.msra.mxu0 %v329
    %3467 = vmatprep.subr.mxu0 %v324
    %3468 = vmatpush1.msra.mxu0 %v323
    %3469 = vmatprep.subr.mxu0 %v318
    %3470 = vmatpush1.msra.mxu0 %v317
    %3471 = vmatprep.subr.mxu0 %v312
    %3472 = vmatpush1.msra.mxu0 %v311
    %3473 = vmatprep.subr.mxu0 %v306
    %3474 = vmatpush1.msra.mxu0 %v305
    %3475 = vmatprep.subr.mxu0 %v300
    %3476 = vmatpush1.msra.mxu0 %v299
    %3477 = vmatprep.subr.mxu0 %v294
    %3478 = vmatpush1.msra.mxu0 %v293
    %3479 = vmatprep.subr.mxu0 %v288
    %3480 = vmatpush1.msra.mxu0 %v287
    %3481 = vmatprep.subr.mxu0 %v282
    %3482 = vmatpush1.msra.mxu0 %v281
    %3483 = vmatprep.subr.mxu0 %v468
    %3484 = vmatpush2.msra.mxu0 %v467
    %3485 = vmatprep.subr.mxu0 %v462
    %3486 = vmatpush2.msra.mxu0 %v461
    %3487 = vmatprep.subr.mxu0 %v456
    %3488 = vmatpush2.msra.mxu0 %v455
    %3489 = vmatprep.subr.mxu0 %v450
    %3490 = vmatpush2.msra.mxu0 %v449
    %3491 = vmatprep.subr.mxu0 %v444
    %3492 = vmatpush2.msra.mxu0 %v443
    %3493 = vmatprep.subr.mxu0 %v438
    %3494 = vmatpush2.msra.mxu0 %v437
    %3495 = vmatprep.subr.mxu0 %v432
    %3496 = vmatpush2.msra.mxu0 %v431
    %3497 = vmatprep.subr.mxu0 %v426
    %3498 = vmatpush2.msra.mxu0 %v425
    %3499 = vmatprep.subr.mxu0 %v420
    %3500 = vmatpush2.msra.mxu0 %v419
    %3501 = vmatprep.subr.mxu0 %v414
    %3502 = vmatpush2.msra.mxu0 %v413
    %3503 = vmatprep.subr.mxu0 %v408
    %3504 = vmatpush2.msra.mxu0 %v407
    %3505 = vmatprep.subr.mxu0 %v402
    %3506 = vmatpush2.msra.mxu0 %v401
    %3507 = vmatprep.subr.mxu0 %v396
    %3508 = vmatpush2.msra.mxu0 %v395
    %3509 = vmatprep.subr.mxu0 %v390
    %3510 = vmatpush2.msra.mxu0 %v389
    %3511 = vmatprep.subr.mxu0 %v384
    %3512 = vmatpush2.msra.mxu0 %v383
    %3513 = vmatprep.subr.mxu0 %v378
    %3514 = vmatpush2.msra.mxu0 %v377
    %3515 = vmatprep.mubr.f32.mxu0 %v3165
    %3516 = vmatmul.mubr.f32.gmra.mxu0 %v3144
    %v3517 = vpop.f32.mrf.mxu0
    %v3518 = vadd.f32 %v139, %v3517
    %v3519 = vpop.f32.mrf.mxu0
    %v3520 = vadd.f32 %v143, %v3519
    %3521 = vdwg.mxu0
    %3522 = vmatprep.subr.mxu0 %v374
    %3523 = vmatpush1.msra.mxu0 %v373
    %3524 = vmatprep.subr.mxu0 %v368
    %3525 = vmatpush1.msra.mxu0 %v367
    %3526 = vmatprep.subr.mxu0 %v362
    %3527 = vmatpush1.msra.mxu0 %v361
    %3528 = vmatprep.subr.mxu0 %v356
    %3529 = vmatpush1.msra.mxu0 %v355
    %3530 = vmatprep.subr.mxu0 %v350
    %3531 = vmatpush1.msra.mxu0 %v349
    %3532 = vmatprep.subr.mxu0 %v344
    %3533 = vmatpush1.msra.mxu0 %v343
    %3534 = vmatprep.subr.mxu0 %v338
    %3535 = vmatpush1.msra.mxu0 %v337
    %3536 = vmatprep.subr.mxu0 %v332
    %3537 = vmatpush1.msra.mxu0 %v331
    %3538 = vmatprep.subr.mxu0 %v326
    %3539 = vmatpush1.msra.mxu0 %v325
    %3540 = vmatprep.subr.mxu0 %v320
    %3541 = vmatpush1.msra.mxu0 %v319
    %3542 = vmatprep.subr.mxu0 %v314
    %3543 = vmatpush1.msra.mxu0 %v313
    %3544 = vmatprep.subr.mxu0 %v308
    %3545 = vmatpush1.msra.mxu0 %v307
    %3546 = vmatprep.subr.mxu0 %v302
    %3547 = vmatpush1.msra.mxu0 %v301
    %3548 = vmatprep.subr.mxu0 %v296
    %3549 = vmatpush1.msra.mxu0 %v295
    %3550 = vmatprep.subr.mxu0 %v290
    %3551 = vmatpush1.msra.mxu0 %v289
    %3552 = vmatprep.subr.mxu0 %v284
    %3553 = vmatpush1.msra.mxu0 %v283
    %3554 = vmatprep.subr.mxu0 %v470
    %3555 = vmatpush2.msra.mxu0 %v469
    %3556 = vmatprep.subr.mxu0 %v464
    %3557 = vmatpush2.msra.mxu0 %v463
    %3558 = vmatprep.subr.mxu0 %v458
    %3559 = vmatpush2.msra.mxu0 %v457
    %3560 = vmatprep.subr.mxu0 %v452
    %3561 = vmatpush2.msra.mxu0 %v451
    %3562 = vmatprep.subr.mxu0 %v446
    %3563 = vmatpush2.msra.mxu0 %v445
    %3564 = vmatprep.subr.mxu0 %v440
    %3565 = vmatpush2.msra.mxu0 %v439
    %3566 = vmatprep.subr.mxu0 %v434
    %3567 = vmatpush2.msra.mxu0 %v433
    %3568 = vmatprep.subr.mxu0 %v428
    %3569 = vmatpush2.msra.mxu0 %v427
    %3570 = vmatprep.subr.mxu0 %v422
    %3571 = vmatpush2.msra.mxu0 %v421
    %3572 = vmatprep.subr.mxu0 %v416
    %3573 = vmatpush2.msra.mxu0 %v415
    %3574 = vmatprep.subr.mxu0 %v410
    %3575 = vmatpush2.msra.mxu0 %v409
    %3576 = vmatprep.subr.mxu0 %v404
    %3577 = vmatpush2.msra.mxu0 %v403
    %3578 = vmatprep.subr.mxu0 %v398
    %3579 = vmatpush2.msra.mxu0 %v397
    %3580 = vmatprep.subr.mxu0 %v392
    %3581 = vmatpush2.msra.mxu0 %v391
    %3582 = vmatprep.subr.mxu0 %v386
    %3583 = vmatpush2.msra.mxu0 %v385
    %3584 = vmatprep.subr.mxu0 %v380
    %3585 = vmatpush2.msra.mxu0 %v379
    %3586 = vmatprep.mubr.f32.mxu0 %v3165
    %3587 = vmatmul.mubr.f32.gmra.mxu0 %v3144
    %v3588 = vpop.f32.mrf.mxu0
    %v3589 = vadd.f32 %v147, %v3588
    %v3590 = vpop.f32.mrf.mxu0
    %v3591 = vadd.f32 %v151, %v3590
    %3592 = vdwg.mxu0
    %3593 = vmatprep.subr.mxu0 %v376
    %3594 = vmatpush1.msra.mxu0 %v375
    %3595 = vmatprep.subr.mxu0 %v370
    %3596 = vmatpush1.msra.mxu0 %v369
    %3597 = vmatprep.subr.mxu0 %v364
    %3598 = vmatpush1.msra.mxu0 %v363
    %3599 = vmatprep.subr.mxu0 %v358
    %3600 = vmatpush1.msra.mxu0 %v357
    %3601 = vmatprep.subr.mxu0 %v352
    %3602 = vmatpush1.msra.mxu0 %v351
    %3603 = vmatprep.subr.mxu0 %v346
    %3604 = vmatpush1.msra.mxu0 %v345
    %3605 = vmatprep.subr.mxu0 %v340
    %3606 = vmatpush1.msra.mxu0 %v339
    %3607 = vmatprep.subr.mxu0 %v334
    %3608 = vmatpush1.msra.mxu0 %v333
    %3609 = vmatprep.subr.mxu0 %v328
    %3610 = vmatpush1.msra.mxu0 %v327
    %3611 = vmatprep.subr.mxu0 %v322
    %3612 = vmatpush1.msra.mxu0 %v321
    %3613 = vmatprep.subr.mxu0 %v316
    %3614 = vmatpush1.msra.mxu0 %v315
    %3615 = vmatprep.subr.mxu0 %v310
    %3616 = vmatpush1.msra.mxu0 %v309
    %3617 = vmatprep.subr.mxu0 %v304
    %3618 = vmatpush1.msra.mxu0 %v303
    %3619 = vmatprep.subr.mxu0 %v298
    %3620 = vmatpush1.msra.mxu0 %v297
    %3621 = vmatprep.subr.mxu0 %v292
    %3622 = vmatpush1.msra.mxu0 %v291
    %3623 = vmatprep.subr.mxu0 %v286
    %3624 = vmatpush1.msra.mxu0 %v285
    %3625 = vmatprep.subr.mxu0 %v472
    %3626 = vmatpush2.msra.mxu0 %v471
    %3627 = vmatprep.subr.mxu0 %v466
    %3628 = vmatpush2.msra.mxu0 %v465
    %3629 = vmatprep.subr.mxu0 %v460
    %3630 = vmatpush2.msra.mxu0 %v459
    %3631 = vmatprep.subr.mxu0 %v454
    %3632 = vmatpush2.msra.mxu0 %v453
    %3633 = vmatprep.subr.mxu0 %v448
    %3634 = vmatpush2.msra.mxu0 %v447
    %3635 = vmatprep.subr.mxu0 %v442
    %3636 = vmatpush2.msra.mxu0 %v441
    %3637 = vmatprep.subr.mxu0 %v436
    %3638 = vmatpush2.msra.mxu0 %v435
    %3639 = vmatprep.subr.mxu0 %v430
    %3640 = vmatpush2.msra.mxu0 %v429
    %3641 = vmatprep.subr.mxu0 %v424
    %3642 = vmatpush2.msra.mxu0 %v423
    %3643 = vmatprep.subr.mxu0 %v418
    %3644 = vmatpush2.msra.mxu0 %v417
    %3645 = vmatprep.subr.mxu0 %v412
    %3646 = vmatpush2.msra.mxu0 %v411
    %3647 = vmatprep.subr.mxu0 %v406
    %3648 = vmatpush2.msra.mxu0 %v405
    %3649 = vmatprep.subr.mxu0 %v400
    %3650 = vmatpush2.msra.mxu0 %v399
    %3651 = vmatprep.subr.mxu0 %v394
    %3652 = vmatpush2.msra.mxu0 %v393
    %3653 = vmatprep.subr.mxu0 %v388
    %3654 = vmatpush2.msra.mxu0 %v387
    %3655 = vmatprep.subr.mxu0 %v382
    %3656 = vmatpush2.msra.mxu0 %v381
    %3657 = vmatprep.mubr.f32.mxu0 %v3165
    %3658 = vmatmul.mubr.f32.gmra.mxu0 %v3144
    %v3659 = vpop.f32.mrf.mxu0
    %v3660 = vadd.f32 %v155, %v3659
    %v3661 = vpop.f32.mrf.mxu0
    %v3662 = vadd.f32 %v159, %v3661
    %3663 = vdwg.mxu0
    %v3664 = vadd.f32 %v3305, %v3518
    %v3665 = vxor.u32 %v3664, 2147483648
    %v3666 = vmul.f32 %v3665, 1.442695
    %v3667 = vpow.pop %v3666
    %v3668 = vadd.f32 %v3667, 1.0
    %v3669 = vrcp.pop %v3668
    %v3670 = vmul.f32 1.0, %v3669
    %v3671 = vadd.f32 %v3307, %v3520
    %v3672 = vxor.u32 %v3671, 2147483648
    %v3673 = vmul.f32 %v3672, 1.442695
    %v3674 = vpow.pop %v3673
    %v3675 = vadd.f32 %v3674, 1.0
    %v3676 = vrcp.pop %v3675
    %v3677 = vmul.f32 1.0, %v3676
    %v3678 = vmul.f32 %v3670, %v3589
    %v3679 = vadd.f32 %v3376, %v3678
    %v3680 = vtanh.pop %v3679
    %v3681 = vsub.f32 1.0, %v3677
    %v3682 = vmul.f32 %v3681, %v3680
    %v3683 = vmul.f32 %v3677, %v3144
    %v3684 = vadd.f32 %v3682, %v3683
    %v3685 = vadd.f32 %v3378, %v3591
    %v3686 = vxor.u32 %v3685, 2147483648
    %v3687 = vmul.f32 %v3686, 1.442695
    %v3688 = vpow.pop %v3687
    %v3689 = vadd.f32 %v3688, 1.0
    %v3690 = vrcp.pop %v3689
    %v3691 = vmul.f32 1.0, %v3690
    %v3692 = vadd.f32 %v3447, %v3660
    %v3693 = vxor.u32 %v3692, 2147483648
    %v3694 = vmul.f32 %v3693, 1.442695
    %v3695 = vpow.pop %v3694
    %v3696 = vadd.f32 %v3695, 1.0
    %v3697 = vrcp.pop %v3696
    %v3698 = vmul.f32 1.0, %v3697
    %v3699 = vmul.f32 %v3691, %v3662
    %v3700 = vadd.f32 %v3449, %v3699
    %v3701 = vtanh.pop %v3700
    %v3702 = vsub.f32 1.0, %v3698
    %v3703 = vmul.f32 %v3702, %v3701
    %v3704 = vmul.f32 %v3698, %v3165
    %v3705 = vadd.f32 %v3703, %v3704
    %3706 = vmatprep.subr.mxu0 %v504
    %3707 = vmatpush1.msra.mxu0 %v503
    %3708 = vmatprep.subr.mxu0 %v502
    %3709 = vmatpush1.msra.mxu0 %v501
    %3710 = vmatprep.subr.mxu0 %v500
    %3711 = vmatpush1.msra.mxu0 %v499
    %3712 = vmatprep.subr.mxu0 %v498
    %3713 = vmatpush1.msra.mxu0 %v497
    %3714 = vmatprep.subr.mxu0 %v496
    %3715 = vmatpush1.msra.mxu0 %v495
    %3716 = vmatprep.subr.mxu0 %v494
    %3717 = vmatpush1.msra.mxu0 %v493
    %3718 = vmatprep.subr.mxu0 %v492
    %3719 = vmatpush1.msra.mxu0 %v491
    %3720 = vmatprep.subr.mxu0 %v490
    %3721 = vmatpush1.msra.mxu0 %v489
    %3722 = vmatprep.subr.mxu0 %v488
    %3723 = vmatpush1.msra.mxu0 %v487
    %3724 = vmatprep.subr.mxu0 %v486
    %3725 = vmatpush1.msra.mxu0 %v485
    %3726 = vmatprep.subr.mxu0 %v484
    %3727 = vmatpush1.msra.mxu0 %v483
    %3728 = vmatprep.subr.mxu0 %v482
    %3729 = vmatpush1.msra.mxu0 %v481
    %3730 = vmatprep.subr.mxu0 %v480
    %3731 = vmatpush1.msra.mxu0 %v479
    %3732 = vmatprep.subr.mxu0 %v478
    %3733 = vmatpush1.msra.mxu0 %v477
    %3734 = vmatprep.subr.mxu0 %v476
    %3735 = vmatpush1.msra.mxu0 %v475
    %3736 = vmatprep.subr.mxu0 %v474
    %3737 = vmatpush1.msra.mxu0 %v473
    %3738 = vmatprep.subr.mxu0 %v536
    %3739 = vmatpush2.msra.mxu0 %v535
    %3740 = vmatprep.subr.mxu0 %v534
    %3741 = vmatpush2.msra.mxu0 %v533
    %3742 = vmatprep.subr.mxu0 %v532
    %3743 = vmatpush2.msra.mxu0 %v531
    %3744 = vmatprep.subr.mxu0 %v530
    %3745 = vmatpush2.msra.mxu0 %v529
    %3746 = vmatprep.subr.mxu0 %v528
    %3747 = vmatpush2.msra.mxu0 %v527
    %3748 = vmatprep.subr.mxu0 %v526
    %3749 = vmatpush2.msra.mxu0 %v525
    %3750 = vmatprep.subr.mxu0 %v524
    %3751 = vmatpush2.msra.mxu0 %v523
    %3752 = vmatprep.subr.mxu0 %v522
    %3753 = vmatpush2.msra.mxu0 %v521
    %3754 = vmatprep.subr.mxu0 %v520
    %3755 = vmatpush2.msra.mxu0 %v519
    %3756 = vmatprep.subr.mxu0 %v518
    %3757 = vmatpush2.msra.mxu0 %v517
    %3758 = vmatprep.subr.mxu0 %v516
    %3759 = vmatpush2.msra.mxu0 %v515
    %3760 = vmatprep.subr.mxu0 %v514
    %3761 = vmatpush2.msra.mxu0 %v513
    %3762 = vmatprep.subr.mxu0 %v512
    %3763 = vmatpush2.msra.mxu0 %v511
    %3764 = vmatprep.subr.mxu0 %v510
    %3765 = vmatpush2.msra.mxu0 %v509
    %3766 = vmatprep.subr.mxu0 %v508
    %3767 = vmatpush2.msra.mxu0 %v507
    %3768 = vmatprep.subr.mxu0 %v506
    %3769 = vmatpush2.msra.mxu0 %v505
    %3770 = vmatprep.mubr.f32.mxu0 %v3705
    %3771 = vmatmul.mubr.f32.gmra.mxu0 %v3684
    %v3772 = vpop.f32.mrf.mxu0
    %v3773 = vadd.f32 %v171, %v3772
    %v3774 = vpop.f32.mrf.mxu0
    %3775 = vdwg.mxu0
    %v3776 = vmax.f32 %v3773, 0.0
    %v3777 = vld [vmem:[#allocation10] sm:$0xff]
    %v3778 = vld [vmem:[#allocation10 + $0x8] sm:$0xff]
    %v3779 = vld [vmem:[#allocation10 + $0x10] sm:$0xff]
    %v3780 = vld [vmem:[#allocation10 + $0x18] sm:$0xff]
    %v3781 = vld [vmem:[#allocation10 + $0x20] sm:$0xff]
    %v3782 = vld [vmem:[#allocation10 + $0x28] sm:$0xff]
    %v3783 = vld [vmem:[#allocation10 + $0x30] sm:$0xff]
    %v3784 = vld [vmem:[#allocation10 + $0x38] sm:$0xff]
    %v3785 = vld [vmem:[#allocation10 + $0x40] sm:$0xff]
    %v3786 = vld [vmem:[#allocation10 + $0x48] sm:$0xff]
    %v3787 = vld [vmem:[#allocation10 + $0x50] sm:$0xff]
    %v3788 = vld [vmem:[#allocation10 + $0x58] sm:$0xff]
    %v3789 = vld [vmem:[#allocation10 + $0x60] sm:$0xff]
    %v3790 = vld [vmem:[#allocation10 + $0x68] sm:$0xff]
    %v3791 = vld [vmem:[#allocation10 + $0x70] sm:$0xff]
    %v3792 = vld [vmem:[#allocation10 + $0x78] sm:$0xff]
    %v3793 = vld [vmem:[#allocation10 + $0x80] sm:$0xff]
    %v3794 = vld [vmem:[#allocation10 + $0x88] sm:$0xff]
    %v3795 = vld [vmem:[#allocation10 + $0x90] sm:$0xff]
    %v3796 = vld [vmem:[#allocation10 + $0x98] sm:$0xff]
    %v3797 = vld [vmem:[#allocation10 + $0xa0] sm:$0xff]
    %v3798 = vld [vmem:[#allocation10 + $0xa8] sm:$0xff]
    %v3799 = vld [vmem:[#allocation10 + $0xb0] sm:$0xff]
    %v3800 = vld [vmem:[#allocation10 + $0xb8] sm:$0xff]
    %v3801 = vld [vmem:[#allocation10 + $0xc0] sm:$0xff]
    %v3802 = vld [vmem:[#allocation10 + $0xc8] sm:$0xff]
    %v3803 = vld [vmem:[#allocation10 + $0xd0] sm:$0xff]
    %v3804 = vld [vmem:[#allocation10 + $0xd8] sm:$0xff]
    %v3805 = vld [vmem:[#allocation10 + $0xe0] sm:$0xff]
    %v3806 = vld [vmem:[#allocation10 + $0xe8] sm:$0xff]
    %v3807 = vld [vmem:[#allocation10 + $0xf0] sm:$0xff]
    %v3808 = vld [vmem:[#allocation10 + $0xf8] sm:$0xff]
    %v3809 = vld [vmem:[#allocation10 + $0x100] sm:$0xff]
    %v3810 = vld [vmem:[#allocation10 + $0x108] sm:$0xff]
    %v3811 = vld [vmem:[#allocation10 + $0x110] sm:$0xff]
    %v3812 = vld [vmem:[#allocation10 + $0x118] sm:$0xff]
    %v3813 = vld [vmem:[#allocation10 + $0x120] sm:$0xff]
    %v3814 = vld [vmem:[#allocation10 + $0x128] sm:$0xff]
    %v3815 = vld [vmem:[#allocation10 + $0x130] sm:$0xff]
    %v3816 = vld [vmem:[#allocation10 + $0x138] sm:$0xff]
    %v3817 = vld [vmem:[#allocation10 + $0x140] sm:$0xff]
    %v3818 = vld [vmem:[#allocation10 + $0x148] sm:$0xff]
    %v3819 = vld [vmem:[#allocation10 + $0x150] sm:$0xff]
    %v3820 = vld [vmem:[#allocation10 + $0x158] sm:$0xff]
    %v3821 = vld [vmem:[#allocation10 + $0x160] sm:$0xff]
    %v3822 = vld [vmem:[#allocation10 + $0x168] sm:$0xff]
    %v3823 = vld [vmem:[#allocation10 + $0x170] sm:$0xff]
    %v3824 = vld [vmem:[#allocation10 + $0x178] sm:$0xff]
    %v3825 = vld [vmem:[#allocation10 + $0x180] sm:$0xff]
    %v3826 = vld [vmem:[#allocation10 + $0x188] sm:$0xff]
    %v3827 = vld [vmem:[#allocation10 + $0x190] sm:$0xff]
    %v3828 = vld [vmem:[#allocation10 + $0x198] sm:$0xff]
    %v3829 = vld [vmem:[#allocation10 + $0x1a0] sm:$0xff]
    %v3830 = vld [vmem:[#allocation10 + $0x1a8] sm:$0xff]
    %v3831 = vld [vmem:[#allocation10 + $0x1b0] sm:$0xff]
    %v3832 = vld [vmem:[#allocation10 + $0x1b8] sm:$0xff]
    %v3833 = vld [vmem:[#allocation10 + $0x1c0] sm:$0xff]
    %v3834 = vld [vmem:[#allocation10 + $0x1c8] sm:$0xff]
    %v3835 = vld [vmem:[#allocation10 + $0x1d0] sm:$0xff]
    %v3836 = vld [vmem:[#allocation10 + $0x1d8] sm:$0xff]
    %v3837 = vld [vmem:[#allocation10 + $0x1e0] sm:$0xff]
    %v3838 = vld [vmem:[#allocation10 + $0x1e8] sm:$0xff]
    %v3839 = vld [vmem:[#allocation10 + $0x1f0] sm:$0xff]
    %v3840 = vld [vmem:[#allocation10 + $0x1f8] sm:$0xff]
    %v3841 = vld [vmem:[#allocation10 + $0x200] sm:$0xff]
    %v3842 = vld [vmem:[#allocation10 + $0x208] sm:$0xff]
    %v3843 = vld [vmem:[#allocation10 + $0x210] sm:$0xff]
    %v3844 = vld [vmem:[#allocation10 + $0x218] sm:$0xff]
    %v3845 = vld [vmem:[#allocation10 + $0x220] sm:$0xff]
    %v3846 = vld [vmem:[#allocation10 + $0x228] sm:$0xff]
    %v3847 = vld [vmem:[#allocation10 + $0x230] sm:$0xff]
    %v3848 = vld [vmem:[#allocation10 + $0x238] sm:$0xff]
    %v3849 = vld [vmem:[#allocation10 + $0x240] sm:$0xff]
    %v3850 = vld [vmem:[#allocation10 + $0x248] sm:$0xff]
    %v3851 = vld [vmem:[#allocation10 + $0x250] sm:$0xff]
    %v3852 = vld [vmem:[#allocation10 + $0x258] sm:$0xff]
    %v3853 = vld [vmem:[#allocation10 + $0x260] sm:$0xff]
    %v3854 = vld [vmem:[#allocation10 + $0x268] sm:$0xff]
    %v3855 = vld [vmem:[#allocation10 + $0x270] sm:$0xff]
    %v3856 = vld [vmem:[#allocation10 + $0x278] sm:$0xff]
    %v3857 = vld [vmem:[#allocation10 + $0x280] sm:$0xff]
    %v3858 = vld [vmem:[#allocation10 + $0x288] sm:$0xff]
    %v3859 = vld [vmem:[#allocation10 + $0x290] sm:$0xff]
    %v3860 = vld [vmem:[#allocation10 + $0x298] sm:$0xff]
    %v3861 = vld [vmem:[#allocation10 + $0x2a0] sm:$0xff]
    %v3862 = vld [vmem:[#allocation10 + $0x2a8] sm:$0xff]
    %v3863 = vld [vmem:[#allocation10 + $0x2b0] sm:$0xff]
    %v3864 = vld [vmem:[#allocation10 + $0x2b8] sm:$0xff]
    %v3865 = vld [vmem:[#allocation10 + $0x2c0] sm:$0xff]
    %v3866 = vld [vmem:[#allocation10 + $0x2c8] sm:$0xff]
    %v3867 = vld [vmem:[#allocation10 + $0x2d0] sm:$0xff]
    %v3868 = vld [vmem:[#allocation10 + $0x2d8] sm:$0xff]
    %v3869 = vld [vmem:[#allocation10 + $0x2e0] sm:$0xff]
    %v3870 = vld [vmem:[#allocation10 + $0x2e8] sm:$0xff]
    %v3871 = vld [vmem:[#allocation10 + $0x2f0] sm:$0xff]
    %v3872 = vld [vmem:[#allocation10 + $0x2f8] sm:$0xff]
    %3873 = vmatprep.subr.mxu0 0.0
    %3874 = vmatpush1.msra.mxu0 %v3792
    %3875 = vmatprep.subr.mxu0 0.0
    %3876 = vmatpush1.msra.mxu0 %v3791
    %3877 = vmatprep.subr.mxu0 0.0
    %3878 = vmatpush1.msra.mxu0 %v3790
    %3879 = vmatprep.subr.mxu0 0.0
    %3880 = vmatpush1.msra.mxu0 %v3789
    %3881 = vmatprep.subr.mxu0 0.0
    %3882 = vmatpush1.msra.mxu0 %v3788
    %3883 = vmatprep.subr.mxu0 0.0
    %3884 = vmatpush1.msra.mxu0 %v3787
    %3885 = vmatprep.subr.mxu0 0.0
    %3886 = vmatpush1.msra.mxu0 %v3786
    %3887 = vmatprep.subr.mxu0 0.0
    %3888 = vmatpush1.msra.mxu0 %v3785
    %3889 = vmatprep.subr.mxu0 0.0
    %3890 = vmatpush1.msra.mxu0 %v3784
    %3891 = vmatprep.subr.mxu0 0.0
    %3892 = vmatpush1.msra.mxu0 %v3783
    %3893 = vmatprep.subr.mxu0 0.0
    %3894 = vmatpush1.msra.mxu0 %v3782
    %3895 = vmatprep.subr.mxu0 0.0
    %3896 = vmatpush1.msra.mxu0 %v3781
    %3897 = vmatprep.subr.mxu0 0.0
    %3898 = vmatpush1.msra.mxu0 %v3780
    %3899 = vmatprep.subr.mxu0 0.0
    %3900 = vmatpush1.msra.mxu0 %v3779
    %3901 = vmatprep.subr.mxu0 0.0
    %3902 = vmatpush1.msra.mxu0 %v3778
    %3903 = vmatprep.subr.mxu0 0.0
    %3904 = vmatpush1.msra.mxu0 %v3777
    %3905 = vmatprep.subr.mxu0 0.0
    %3906 = vmatpush2.msra.mxu0 %v3808
    %3907 = vmatprep.subr.mxu0 0.0
    %3908 = vmatpush2.msra.mxu0 %v3807
    %3909 = vmatprep.subr.mxu0 0.0
    %3910 = vmatpush2.msra.mxu0 %v3806
    %3911 = vmatprep.subr.mxu0 0.0
    %3912 = vmatpush2.msra.mxu0 %v3805
    %3913 = vmatprep.subr.mxu0 0.0
    %3914 = vmatpush2.msra.mxu0 %v3804
    %3915 = vmatprep.subr.mxu0 0.0
    %3916 = vmatpush2.msra.mxu0 %v3803
    %3917 = vmatprep.subr.mxu0 0.0
    %3918 = vmatpush2.msra.mxu0 %v3802
    %3919 = vmatprep.subr.mxu0 0.0
    %3920 = vmatpush2.msra.mxu0 %v3801
    %3921 = vmatprep.subr.mxu0 0.0
    %3922 = vmatpush2.msra.mxu0 %v3800
    %3923 = vmatprep.subr.mxu0 0.0
    %3924 = vmatpush2.msra.mxu0 %v3799
    %3925 = vmatprep.subr.mxu0 0.0
    %3926 = vmatpush2.msra.mxu0 %v3798
    %3927 = vmatprep.subr.mxu0 0.0
    %3928 = vmatpush2.msra.mxu0 %v3797
    %3929 = vmatprep.subr.mxu0 0.0
    %3930 = vmatpush2.msra.mxu0 %v3796
    %3931 = vmatprep.subr.mxu0 0.0
    %3932 = vmatpush2.msra.mxu0 %v3795
    %3933 = vmatprep.subr.mxu0 0.0
    %3934 = vmatpush2.msra.mxu0 %v3794
    %3935 = vmatprep.subr.mxu0 0.0
    %3936 = vmatpush2.msra.mxu0 %v3793
    %3937 = vmatprep.mubr.f32.mxu0 %v1617
    %3938 = vmatmul.mubr.f32.gmra.mxu0 %v1077
    %v3939 = vpop.f32.mrf.mxu0
    %v3940 = vadd.f32 %v183, %v3939
    %v3941 = vpop.f32.mrf.mxu0
    %3942 = vdwg.mxu0
    %3943 = vmatprep.subr.mxu0 0.0
    %3944 = vmatpush1.msra.mxu0 %v3824
    %3945 = vmatprep.subr.mxu0 0.0
    %3946 = vmatpush1.msra.mxu0 %v3823
    %3947 = vmatprep.subr.mxu0 0.0
    %3948 = vmatpush1.msra.mxu0 %v3822
    %3949 = vmatprep.subr.mxu0 0.0
    %3950 = vmatpush1.msra.mxu0 %v3821
    %3951 = vmatprep.subr.mxu0 0.0
    %3952 = vmatpush1.msra.mxu0 %v3820
    %3953 = vmatprep.subr.mxu0 0.0
    %3954 = vmatpush1.msra.mxu0 %v3819
    %3955 = vmatprep.subr.mxu0 0.0
    %3956 = vmatpush1.msra.mxu0 %v3818
    %3957 = vmatprep.subr.mxu0 0.0
    %3958 = vmatpush1.msra.mxu0 %v3817
    %3959 = vmatprep.subr.mxu0 0.0
    %3960 = vmatpush1.msra.mxu0 %v3816
    %3961 = vmatprep.subr.mxu0 0.0
    %3962 = vmatpush1.msra.mxu0 %v3815
    %3963 = vmatprep.subr.mxu0 0.0
    %3964 = vmatpush1.msra.mxu0 %v3814
    %3965 = vmatprep.subr.mxu0 0.0
    %3966 = vmatpush1.msra.mxu0 %v3813
    %3967 = vmatprep.subr.mxu0 0.0
    %3968 = vmatpush1.msra.mxu0 %v3812
    %3969 = vmatprep.subr.mxu0 0.0
    %3970 = vmatpush1.msra.mxu0 %v3811
    %3971 = vmatprep.subr.mxu0 0.0
    %3972 = vmatpush1.msra.mxu0 %v3810
    %3973 = vmatprep.subr.mxu0 0.0
    %3974 = vmatpush1.msra.mxu0 %v3809
    %3975 = vmatprep.subr.mxu0 0.0
    %3976 = vmatpush2.msra.mxu0 %v3840
    %3977 = vmatprep.subr.mxu0 0.0
    %3978 = vmatpush2.msra.mxu0 %v3839
    %3979 = vmatprep.subr.mxu0 0.0
    %3980 = vmatpush2.msra.mxu0 %v3838
    %3981 = vmatprep.subr.mxu0 0.0
    %3982 = vmatpush2.msra.mxu0 %v3837
    %3983 = vmatprep.subr.mxu0 0.0
    %3984 = vmatpush2.msra.mxu0 %v3836
    %3985 = vmatprep.subr.mxu0 0.0
    %3986 = vmatpush2.msra.mxu0 %v3835
    %3987 = vmatprep.subr.mxu0 0.0
    %3988 = vmatpush2.msra.mxu0 %v3834
    %3989 = vmatprep.subr.mxu0 0.0
    %3990 = vmatpush2.msra.mxu0 %v3833
    %3991 = vmatprep.subr.mxu0 0.0
    %3992 = vmatpush2.msra.mxu0 %v3832
    %3993 = vmatprep.subr.mxu0 0.0
    %3994 = vmatpush2.msra.mxu0 %v3831
    %3995 = vmatprep.subr.mxu0 0.0
    %3996 = vmatpush2.msra.mxu0 %v3830
    %3997 = vmatprep.subr.mxu0 0.0
    %3998 = vmatpush2.msra.mxu0 %v3829
    %3999 = vmatprep.subr.mxu0 0.0
    %4000 = vmatpush2.msra.mxu0 %v3828
    %4001 = vmatprep.subr.mxu0 0.0
    %4002 = vmatpush2.msra.mxu0 %v3827
    %4003 = vmatprep.subr.mxu0 0.0
    %4004 = vmatpush2.msra.mxu0 %v3826
    %4005 = vmatprep.subr.mxu0 0.0
    %4006 = vmatpush2.msra.mxu0 %v3825
    %4007 = vmatprep.mubr.f32.mxu0 %v2697
    %4008 = vmatmul.mubr.f32.gmra.mxu0 %v2157
    %v4009 = vpop.f32.mrf.mxu0
    %v4010 = vadd.f32 %v3940, %v4009
    %v4011 = vpop.f32.mrf.mxu0
    %4012 = vdwg.mxu0
    %4013 = vmatprep.subr.mxu0 0.0
    %4014 = vmatpush1.msra.mxu0 %v3856
    %4015 = vmatprep.subr.mxu0 0.0
    %4016 = vmatpush1.msra.mxu0 %v3855
    %4017 = vmatprep.subr.mxu0 0.0
    %4018 = vmatpush1.msra.mxu0 %v3854
    %4019 = vmatprep.subr.mxu0 0.0
    %4020 = vmatpush1.msra.mxu0 %v3853
    %4021 = vmatprep.subr.mxu0 0.0
    %4022 = vmatpush1.msra.mxu0 %v3852
    %4023 = vmatprep.subr.mxu0 0.0
    %4024 = vmatpush1.msra.mxu0 %v3851
    %4025 = vmatprep.subr.mxu0 0.0
    %4026 = vmatpush1.msra.mxu0 %v3850
    %4027 = vmatprep.subr.mxu0 0.0
    %4028 = vmatpush1.msra.mxu0 %v3849
    %4029 = vmatprep.subr.mxu0 0.0
    %4030 = vmatpush1.msra.mxu0 %v3848
    %4031 = vmatprep.subr.mxu0 0.0
    %4032 = vmatpush1.msra.mxu0 %v3847
    %4033 = vmatprep.subr.mxu0 0.0
    %4034 = vmatpush1.msra.mxu0 %v3846
    %4035 = vmatprep.subr.mxu0 0.0
    %4036 = vmatpush1.msra.mxu0 %v3845
    %4037 = vmatprep.subr.mxu0 0.0
    %4038 = vmatpush1.msra.mxu0 %v3844
    %4039 = vmatprep.subr.mxu0 0.0
    %4040 = vmatpush1.msra.mxu0 %v3843
    %4041 = vmatprep.subr.mxu0 0.0
    %4042 = vmatpush1.msra.mxu0 %v3842
    %4043 = vmatprep.subr.mxu0 0.0
    %4044 = vmatpush1.msra.mxu0 %v3841
    %4045 = vmatprep.subr.mxu0 0.0
    %4046 = vmatpush2.msra.mxu0 %v3872
    %4047 = vmatprep.subr.mxu0 0.0
    %4048 = vmatpush2.msra.mxu0 %v3871
    %4049 = vmatprep.subr.mxu0 0.0
    %4050 = vmatpush2.msra.mxu0 %v3870
    %4051 = vmatprep.subr.mxu0 0.0
    %4052 = vmatpush2.msra.mxu0 %v3869
    %4053 = vmatprep.subr.mxu0 0.0
    %4054 = vmatpush2.msra.mxu0 %v3868
    %4055 = vmatprep.subr.mxu0 0.0
    %4056 = vmatpush2.msra.mxu0 %v3867
    %4057 = vmatprep.subr.mxu0 0.0
    %4058 = vmatpush2.msra.mxu0 %v3866
    %4059 = vmatprep.subr.mxu0 0.0
    %4060 = vmatpush2.msra.mxu0 %v3865
    %4061 = vmatprep.subr.mxu0 0.0
    %4062 = vmatpush2.msra.mxu0 %v3864
    %4063 = vmatprep.subr.mxu0 0.0
    %4064 = vmatpush2.msra.mxu0 %v3863
    %4065 = vmatprep.subr.mxu0 0.0
    %4066 = vmatpush2.msra.mxu0 %v3862
    %4067 = vmatprep.subr.mxu0 0.0
    %4068 = vmatpush2.msra.mxu0 %v3861
    %4069 = vmatprep.subr.mxu0 0.0
    %4070 = vmatpush2.msra.mxu0 %v3860
    %4071 = vmatprep.subr.mxu0 0.0
    %4072 = vmatpush2.msra.mxu0 %v3859
    %4073 = vmatprep.subr.mxu0 0.0
    %4074 = vmatpush2.msra.mxu0 %v3858
    %4075 = vmatprep.subr.mxu0 0.0
    %4076 = vmatpush2.msra.mxu0 %v3857
    %4077 = vmatprep.mubr.f32.mxu0 %v3776
    %4078 = vmatmul.mubr.f32.gmra.mxu0 %v3237
    %v4079 = vpop.f32.mrf.mxu0
    %v4080 = vadd.f32 %v4010, %v4079
    %v4081 = vpop.f32.mrf.mxu0
    %4082 = vdwg.mxu0
    %4083 = vst [vmem:[#allocation13] sm:$0xff] %v4080
    // Predicated region
    $region50: #{tpu_custom_call.1} parent=1 // pred_check
      _
    $region51: #{tpu_custom_call.1} parent=1 // pred_check_branch
      %4085 = sbr.rel (0) target = $region53
    $region52: #{tpu_custom_call.1} parent=1 // pred_region
      %s4087 = ssub.s32 128, 128
      %4088 = vsyncadd [#allocation4], %s4087
      %s4090 = sshll.u32 [#allocation13], 4
      %s4091 = int_to_ptr.vmem [resolvable:$true] %s4090
      %4093 = dma.vmem_to_hbm [thread:$0]  %s4091, 128, %s6, [#allocation4]
    $region53: #{tpu_custom_call.1} parent=1 // pred_fallthru
      _
    // Predicated region
    $region54: #{tpu_custom_call.1} parent=1 // pred_check
      _
    $region55: #{tpu_custom_call.1} parent=1 // pred_check_branch
      %4095 = sbr.rel (0) target = $region57
    $region56: #{tpu_custom_call.1} parent=1 // pred_region
      %4096 = dma.done [#allocation4], 128
    $region57: #{tpu_custom_call.1} parent=1 // pred_fallthru
      _
    %4097 = vsyncpa [#allocation3], 1
    %4098 = vsyncpa [#allocation6], 1
    %4099 = vsyncpa [#allocation9], 1
    %4100 = vsyncpa [#allocation12], 1
    %4101 = vsyncpa [#allocation4], 1

</llo_original>
